<compile_context>
chip_gen: v7x
topology: tpu7x:2x2x1
jax: 0.10.0
libtpu: 0.0.40
codegen_flags: <defaults>
</compile_context>

<pallas_src>
import math
from functools import partial

import numpy as np
import jax
import jax.numpy as jnp
from jax import lax
from jax.experimental import pallas as pl
from jax.experimental.pallas import tpu as pltpu


def _attention_kernel(x_ref, wqkv_ref, wproj_ref, bproj_ref,
                      out_ref, attn_ref, xo_ref, *,
                      num_heads, head_dim, batch_block):
    # x_ref:    (bb, C, N)  f32, native NCHW slab (channels-major per pixel)
    # wqkv_ref: (C, 3C)     bf16, qkv 1x1-conv weight, (in, out), q cols pre-scaled
    # wproj_ref:(C, C)      bf16, proj 1x1-conv weight, (in, out)
    # bproj_ref:(1, C)      f32, proj bias
    # out_ref:  (bb, C, N)  projected output in NCHW layout
    # attn_ref: (bb, num_heads, N, N)  attn.transpose(-1, -2), final layout
    # xo_ref:   (bb*N, C)   bf16 VMEM scratch staging the per-head PV results
    bb = batch_block
    N = x_ref.shape[2]

    # (C, N) -> (N, C) per batch element on the XLU, merge rows, cast to bf16.
    if bb == 1:
        xt = x_ref[0].T                                                # (N, C) f32
    else:
        xt = jnp.concatenate([x_ref[b].T for b in range(bb)], axis=0)  # (bb*N, C) f32
    xt = xt.astype(jnp.bfloat16)

    # QKV 1x1 conv as one per-pixel matmul (softmax scale already folded into the
    # q columns of wqkv).  Cast ONCE to bf16 so every later MXU operand is bf16.
    qkv = jnp.dot(xt, wqkv_ref[...],
                  preferred_element_type=jnp.float32).astype(jnp.bfloat16)  # (bb*N, 3C)

    for b in range(bb):
        rows = slice(b * N, (b + 1) * N)
        for h in range(num_heads):
            base = h * 3 * head_dim
            # PyTorch reshape (B,3C,N)->(B,nh,3*hd,N), chunk(3, dim=2):
            # per-head channel block is [q(hd) | k(hd) | v(hd)].
            qh = qkv[rows, base:base + head_dim]                       # (N, hd) bf16
            kh = qkv[rows, base + head_dim:base + 2 * head_dim]        # (N, hd) bf16
            vh = qkv[rows, base + 2 * head_dim:base + 3 * head_dim]    # (N, hd) bf16

            # Query-major logits: logits[j, i] = q_j . k_i  (== attn.transpose(-1,-2))
            logits = lax.dot_general(qh, kh, (((1,), (1,)), ((), ())),
                                     preferred_element_type=jnp.float32)  # (Nq, Nk)
            # softmax over the key axis (last axis here) -- all f32 element-wise.
            logits = logits - jnp.max(logits, axis=-1, keepdims=True)
            e = jnp.exp(logits)
            denom = jnp.sum(e, axis=-1, keepdims=True)
            p = e * pl.reciprocal(denom, approx=True)                  # (Nq, Nk) f32

            # attn written directly in its final (B, nh, N, N) layout.
            attn_ref[b, h] = p.astype(attn_ref.dtype)

            # PV, staged into the bf16 scratch at this head's channel (lane) slot.
            pv = jnp.dot(p.astype(jnp.bfloat16), vh,
                         preferred_element_type=jnp.float32)           # (N, hd) f32
            xo_ref[rows, h * head_dim:(h + 1) * head_dim] = pv.astype(jnp.bfloat16)

    # Single K=C projection matmul over all bb*N rows + bias.
    y = jnp.dot(xo_ref[...], wproj_ref[...],
                preferred_element_type=jnp.float32) + bproj_ref[...]   # (bb*N, C) f32
    for b in range(bb):
        # (N, C) -> (C, N) so the HBM output is already NCHW (free reshape outside).
        out_ref[b] = y[b * N:(b + 1) * N, :].T.astype(out_ref.dtype)


def _pick_batch_block(B, N):
    """Batch elements folded into one grid step.

    v7x has 2 TensorCores per chip -> keep one batch element per step so the
    'parallel' batch axis can be split across cores.  v5e/v6e have a single TC
    -> merge the batch into one step (bigger MXU M dim, fewer grid steps), as
    long as the merged row count stays small.
    """
    try:
        kind = jax.devices()[0].device_kind.lower()
    except Exception:
        kind = ""
    if B > 1 and ("v7" in kind or "7x" in kind or "tpu7" in kind):
        return 1
    bb = B
    while bb > 1 and (B % bb != 0 or bb * N > 512):
        bb -= 1
    return max(bb, 1)


def attention_forward(x_nchw, w_qkv, w_proj, b_proj, num_heads,
                      attn_dtype=jnp.float32, batch_block=None):
    """Pallas version of Attention.forward. Returns (y_nchw, attn_transposed).

    attn is the dominant HBM tensor; pass attn_dtype=jnp.bfloat16 to halve its
    writeback if the consumer tolerates it (default f32 keeps module semantics).
    """
    B, C, H, W = x_nchw.shape
    N = H * W
    assert C % num_heads == 0
    head_dim = C // num_heads
    scale = head_dim ** (-0.5)
    bb = _pick_batch_block(B, N) if batch_block is None else batch_block
    assert B % bb == 0

    # x keeps its native layout -- reshape to (B, C, N) is free (contiguous);
    # the transpose to channels-last happens in-kernel.
    x_cn = x_nchw.reshape(B, C, N)

    # Weight prep (tiny, amortized): fold the softmax scale into the q rows of
    # the qkv weight, transpose to (in, out), cast MXU operands to bf16.
    wqkv = w_qkv.reshape(3 * C, C)
    row = jnp.arange(3 * C)
    is_q = (row % (3 * head_dim)) < head_dim          # q rows of every head
    wqkv = wqkv * jnp.where(is_q, scale, 1.0)[:, None]
    wqkv_t = wqkv.T.astype(jnp.bfloat16)              # (C, 3C)
    wproj_t = w_proj.reshape(C, C).T.astype(jnp.bfloat16)  # (C_in, C_out)
    bproj = b_proj.reshape(1, C).astype(jnp.float32)

    kernel = partial(_attention_kernel, num_heads=num_heads, head_dim=head_dim,
                     batch_block=bb)

    out_cn, attn_t = pl.pallas_call(
        kernel,
        out_shape=(
            jax.ShapeDtypeStruct((B, C, N), x_nchw.dtype),
            jax.ShapeDtypeStruct((B, num_heads, N, N), attn_dtype),
        ),
        grid=(B // bb,),
        in_specs=[
            pl.BlockSpec((bb, C, N), lambda i: (i, 0, 0)),
            pl.BlockSpec((C, 3 * C), lambda i: (0, 0)),
            pl.BlockSpec((C, C), lambda i: (0, 0)),
            pl.BlockSpec((1, C), lambda i: (0, 0)),
        ],
        out_specs=(
            pl.BlockSpec((bb, C, N), lambda i: (i, 0, 0)),
            pl.BlockSpec((bb, num_heads, N, N), lambda i: (i, 0, 0, 0)),
        ),
        scratch_shapes=[pltpu.VMEM((bb * N, C), jnp.bfloat16)],
        compiler_params=pltpu.CompilerParams(dimension_semantics=("parallel",)),
    )(x_cn, wqkv_t, wproj_t, bproj)

    y_nchw = out_cn.reshape(B, C, H, W)   # free reshape, no wrapper transpose
    return y_nchw, attn_t


def attention_reference(x, w_qkv, w_proj, b_proj, num_heads):
    """Pure-JAX f32 transcription of the PyTorch forward (NCHW), for verification."""
    B, C, H, W = x.shape
    N = H * W
    hd = C // num_heads
    scale = hd ** (-0.5)
    qkv = jnp.einsum('oc,bchw->bohw', w_qkv.reshape(3 * C, C), x)      # (B, 3C, H, W)
    qkv = qkv.reshape(B, num_heads, hd * 3, N)
    q, k, v = qkv[:, :, :hd], qkv[:, :, hd:2 * hd], qkv[:, :, 2 * hd:]
    attn = jnp.einsum('bhdi,bhdj->bhij', k, q) * scale
    attn = jax.nn.softmax(attn, axis=-2)
    xo = jnp.einsum('bhdi,bhij->bhdj', v, attn).reshape(B, C, H, W)
    xo = jnp.einsum('oc,bchw->bohw', w_proj.reshape(C, C), xo) + b_proj[None, :, None, None]
    return xo, attn.transpose(0, 1, 3, 2)


if __name__ == "__main__":
    B, C, H, W = 2, 32, 8, 8        # dim=32, spatial 8x8 -> N=64
    num_heads = 8                   # head_dim = 4
    key = jax.random.PRNGKey(0)
    kx, kq, kp, kb = jax.random.split(key, 4)

    x = jax.random.normal(kx, (B, C, H, W), dtype=jnp.float32)
    # qkv: Conv2d(dim, 3*dim, 1, bias=False) -> weight (3C, C, 1, 1)
    w_qkv = jax.random.normal(kq, (3 * C, C, 1, 1), dtype=jnp.float32) * (1.0 / math.sqrt(C))
    # proj: Conv2d(dim, dim, 1) (bias=True)  -> weight (C, C, 1, 1), bias (C,)
    w_proj = jax.random.normal(kp, (C, C, 1, 1), dtype=jnp.float32) * (1.0 / math.sqrt(C))
    b_proj = jax.random.normal(kb, (C,), dtype=jnp.float32) * 0.1

    y, attn_t = attention_forward(x, w_qkv, w_proj, b_proj, num_heads)
    jax.block_until_ready((y, attn_t))

    y_ref, attn_ref_out = attention_reference(x, w_qkv, w_proj, b_proj, num_heads)
    # Tolerances account for bf16 MXU operands (f32 accumulation) + approx reciprocal.
    np.testing.assert_allclose(np.asarray(y), np.asarray(y_ref), rtol=5e-2, atol=5e-2)
    np.testing.assert_allclose(np.asarray(attn_t), np.asarray(attn_ref_out), rtol=5e-2, atol=5e-2)

    print("KERNEL_OK")
</pallas_src>

<mosaic_0001>
module attributes {stable_mosaic.version = 11 : i64} {
  func.func @_attention_kernel(%arg0: i32, %arg1: memref<2x32x64xf32, #tpu.memory_space<vmem>>, %arg2: memref<32x96xbf16, #tpu.memory_space<vmem>>, %arg3: memref<32x32xbf16, #tpu.memory_space<vmem>>, %arg4: memref<1x32xf32, #tpu.memory_space<vmem>>, %arg5: memref<2x32x64xf32, #tpu.memory_space<vmem>>, %arg6: memref<2x8x64x64xf32, #tpu.memory_space<vmem>>, %arg7: memref<128x32xbf16, #tpu.memory_space<vmem>>) attributes {dimension_semantics = [#tpu.dimension_semantics<parallel>], iteration_bounds = array<i64: 1>, scalar_prefetch = 0 : i64, scratch_operands = 1 : i64, tpu.core_type = #tpu.core_type<tc>, window_params = [{transform_indices = @transform_0, window_bounds = array<i64: 2, 32, 64>}, {pipeline_mode = #tpu.pipeline_mode<synchronous>, transform_indices = @transform_1, window_bounds = array<i64: 32, 96>}, {pipeline_mode = #tpu.pipeline_mode<synchronous>, transform_indices = @transform_2, window_bounds = array<i64: 32, 32>}, {pipeline_mode = #tpu.pipeline_mode<synchronous>, transform_indices = @transform_3, window_bounds = array<i64: 1, 32>}, {transform_indices = @transform_4, window_bounds = array<i64: 2, 32, 64>}, {transform_indices = @transform_5, window_bounds = array<i64: 2, 8, 64, 64>}]} {
    %c0 = arith.constant 0 : index
    %c0_0 = arith.constant 0 : index
    %c0_1 = arith.constant 0 : index
    %0 = vector.load %arg1[%c0, %c0_0, %c0_1] : memref<2x32x64xf32, #tpu.memory_space<vmem>>, vector<1x32x64xf32>
    %1 = vector.shape_cast %0 : vector<1x32x64xf32> to vector<32x64xf32>
    %2 = tpu.transpose %1, [1, 0] : vector<32x64xf32> -> vector<64x32xf32>
    %c1 = arith.constant 1 : index
    %c0_2 = arith.constant 0 : index
    %c0_3 = arith.constant 0 : index
    %3 = vector.load %arg1[%c1, %c0_2, %c0_3] : memref<2x32x64xf32, #tpu.memory_space<vmem>>, vector<1x32x64xf32>
    %4 = vector.shape_cast %3 : vector<1x32x64xf32> to vector<32x64xf32>
    %5 = tpu.transpose %4, [1, 0] : vector<32x64xf32> -> vector<64x32xf32>
    %6 = tpu.concatenate %2, %5 in 0 : vector<64x32xf32>, vector<64x32xf32> -> vector<128x32xf32>
    %7 = arith.truncf %6 : vector<128x32xf32> to vector<128x32xbf16>
    %c0_4 = arith.constant 0 : index
    %c0_5 = arith.constant 0 : index
    %8 = vector.load %arg2[%c0_4, %c0_5] : memref<32x96xbf16, #tpu.memory_space<vmem>>, vector<32x96xbf16>
    %cst = arith.constant dense<0.000000e+00> : vector<128x96xf32>
    %9 = tpu.matmul %7, %8, %cst {dimension_numbers = #tpu.dot_dimension_numbers<[1], [0], [0], [1], [0, 0, 1, 1], [], []>} : vector<128x32xbf16>, vector<32x96xbf16>, vector<128x96xf32> -> vector<128x96xf32>
    %10 = arith.truncf %9 : vector<128x96xf32> to vector<128x96xbf16>
    %11 = vector.extract_strided_slice %10 {offsets = [0, 0], sizes = [64, 4], strides = [1, 1]} : vector<128x96xbf16> to vector<64x4xbf16>
    %12 = vector.extract_strided_slice %10 {offsets = [0, 4], sizes = [64, 4], strides = [1, 1]} : vector<128x96xbf16> to vector<64x4xbf16>
    %13 = vector.extract_strided_slice %10 {offsets = [0, 8], sizes = [64, 4], strides = [1, 1]} : vector<128x96xbf16> to vector<64x4xbf16>
    %cst_6 = arith.constant dense<0.000000e+00> : vector<64x64xf32>
    %14 = tpu.matmul %11, %12, %cst_6 {dimension_numbers = #tpu.dot_dimension_numbers<[1], [1], [0], [0], [0, 0, 1, 0], [], []>} : vector<64x4xbf16>, vector<64x4xbf16>, vector<64x64xf32> -> vector<64x64xf32>
    %cst_7 = arith.constant dense<0xFF800000> : vector<64xf32>
    %15 = vector.multi_reduction <maximumf>, %14, %cst_7 [1] : vector<64x64xf32> to vector<64xf32>
    %16 = vector.shape_cast %15 : vector<64xf32> to vector<64x1xf32>
    %17 = vector.broadcast %16 : vector<64x1xf32> to vector<64x64xf32>
    %18 = arith.subf %14, %17 : vector<64x64xf32>
    %19 = math.exp %18 : vector<64x64xf32>
    %cst_8 = arith.constant dense<0.000000e+00> : vector<64xf32>
    %20 = vector.multi_reduction <add>, %19, %cst_8 [1] : vector<64x64xf32> to vector<64xf32>
    %21 = vector.shape_cast %20 : vector<64xf32> to vector<64x1xf32>
    %22 = tpu.reciprocal %21 {approx = true} : vector<64x1xf32> -> vector<64x1xf32>
    %23 = vector.broadcast %22 : vector<64x1xf32> to vector<64x64xf32>
    %24 = arith.mulf %19, %23 : vector<64x64xf32>
    %c0_9 = arith.constant 0 : index
    %c0_10 = arith.constant 0 : index
    %c0_11 = arith.constant 0 : index
    %c0_12 = arith.constant 0 : index
    %25 = vector.load %arg6[%c0_9, %c0_10, %c0_11, %c0_12] : memref<2x8x64x64xf32, #tpu.memory_space<vmem>>, vector<1x1x64x64xf32>
    %26 = vector.shape_cast %25 : vector<1x1x64x64xf32> to vector<64x64xf32>
    %27 = vector.shape_cast %24 : vector<64x64xf32> to vector<1x1x64x64xf32>
    tpu.vector_store %arg6[%c0_9, %c0_10, %c0_11, %c0_12], %27 {strides = array<i32>} : memref<2x8x64x64xf32, #tpu.memory_space<vmem>>, vector<1x1x64x64xf32>,
    %28 = arith.truncf %24 : vector<64x64xf32> to vector<64x64xbf16>
    %cst_13 = arith.constant dense<0.000000e+00> : vector<64x4xf32>
    %29 = tpu.matmul %28, %13, %cst_13 {dimension_numbers = #tpu.dot_dimension_numbers<[1], [0], [0], [1], [0, 0, 1, 1], [], []>} : vector<64x64xbf16>, vector<64x4xbf16>, vector<64x4xf32> -> vector<64x4xf32>
    %30 = arith.truncf %29 : vector<64x4xf32> to vector<64x4xbf16>
    %c0_14 = arith.constant 0 : index
    %c0_15 = arith.constant 0 : index
    %31 = vector.load %arg7[%c0_14, %c0_15] : memref<128x32xbf16, #tpu.memory_space<vmem>>, vector<64x4xbf16>
    tpu.vector_store %arg7[%c0_14, %c0_15], %30 {strides = array<i32>} : memref<128x32xbf16, #tpu.memory_space<vmem>>, vector<64x4xbf16>,
    %32 = vector.extract_strided_slice %10 {offsets = [0, 12], sizes = [64, 4], strides = [1, 1]} : vector<128x96xbf16> to vector<64x4xbf16>
    %33 = vector.extract_strided_slice %10 {offsets = [0, 16], sizes = [64, 4], strides = [1, 1]} : vector<128x96xbf16> to vector<64x4xbf16>
    %34 = vector.extract_strided_slice %10 {offsets = [0, 20], sizes = [64, 4], strides = [1, 1]} : vector<128x96xbf16> to vector<64x4xbf16>
    %cst_16 = arith.constant dense<0.000000e+00> : vector<64x64xf32>
    %35 = tpu.matmul %32, %33, %cst_16 {dimension_numbers = #tpu.dot_dimension_numbers<[1], [1], [0], [0], [0, 0, 1, 0], [], []>} : vector<64x4xbf16>, vector<64x4xbf16>, vector<64x64xf32> -> vector<64x64xf32>
    %cst_17 = arith.constant dense<0xFF800000> : vector<64xf32>
    %36 = vector.multi_reduction <maximumf>, %35, %cst_17 [1] : vector<64x64xf32> to vector<64xf32>
    %37 = vector.shape_cast %36 : vector<64xf32> to vector<64x1xf32>
    %38 = vector.broadcast %37 : vector<64x1xf32> to vector<64x64xf32>
    %39 = arith.subf %35, %38 : vector<64x64xf32>
    %40 = math.exp %39 : vector<64x64xf32>
    %cst_18 = arith.constant dense<0.000000e+00> : vector<64xf32>
    %41 = vector.multi_reduction <add>, %40, %cst_18 [1] : vector<64x64xf32> to vector<64xf32>
    %42 = vector.shape_cast %41 : vector<64xf32> to vector<64x1xf32>
    %43 = tpu.reciprocal %42 {approx = true} : vector<64x1xf32> -> vector<64x1xf32>
    %44 = vector.broadcast %43 : vector<64x1xf32> to vector<64x64xf32>
    %45 = arith.mulf %40, %44 : vector<64x64xf32>
    %c0_19 = arith.constant 0 : index
    %c1_20 = arith.constant 1 : index
    %c0_21 = arith.constant 0 : index
    %c0_22 = arith.constant 0 : index
    %46 = vector.load %arg6[%c0_19, %c1_20, %c0_21, %c0_22] : memref<2x8x64x64xf32, #tpu.memory_space<vmem>>, vector<1x1x64x64xf32>
    %47 = vector.shape_cast %46 : vector<1x1x64x64xf32> to vector<64x64xf32>
    %48 = vector.shape_cast %45 : vector<64x64xf32> to vector<1x1x64x64xf32>
    tpu.vector_store %arg6[%c0_19, %c1_20, %c0_21, %c0_22], %48 {strides = array<i32>} : memref<2x8x64x64xf32, #tpu.memory_space<vmem>>, vector<1x1x64x64xf32>,
    %49 = arith.truncf %45 : vector<64x64xf32> to vector<64x64xbf16>
    %cst_23 = arith.constant dense<0.000000e+00> : vector<64x4xf32>
    %50 = tpu.matmul %49, %34, %cst_23 {dimension_numbers = #tpu.dot_dimension_numbers<[1], [0], [0], [1], [0, 0, 1, 1], [], []>} : vector<64x64xbf16>, vector<64x4xbf16>, vector<64x4xf32> -> vector<64x4xf32>
    %51 = arith.truncf %50 : vector<64x4xf32> to vector<64x4xbf16>
    %c0_24 = arith.constant 0 : index
    %c4 = arith.constant 4 : index
    %52 = vector.load %arg7[%c0_24, %c4] : memref<128x32xbf16, #tpu.memory_space<vmem>>, vector<64x4xbf16>
    tpu.vector_store %arg7[%c0_24, %c4], %51 {strides = array<i32>} : memref<128x32xbf16, #tpu.memory_space<vmem>>, vector<64x4xbf16>,
    %53 = vector.extract_strided_slice %10 {offsets = [0, 24], sizes = [64, 4], strides = [1, 1]} : vector<128x96xbf16> to vector<64x4xbf16>
    %54 = vector.extract_strided_slice %10 {offsets = [0, 28], sizes = [64, 4], strides = [1, 1]} : vector<128x96xbf16> to vector<64x4xbf16>
    %55 = vector.extract_strided_slice %10 {offsets = [0, 32], sizes = [64, 4], strides = [1, 1]} : vector<128x96xbf16> to vector<64x4xbf16>
    %cst_25 = arith.constant dense<0.000000e+00> : vector<64x64xf32>
    %56 = tpu.matmul %53, %54, %cst_25 {dimension_numbers = #tpu.dot_dimension_numbers<[1], [1], [0], [0], [0, 0, 1, 0], [], []>} : vector<64x4xbf16>, vector<64x4xbf16>, vector<64x64xf32> -> vector<64x64xf32>
    %cst_26 = arith.constant dense<0xFF800000> : vector<64xf32>
    %57 = vector.multi_reduction <maximumf>, %56, %cst_26 [1] : vector<64x64xf32> to vector<64xf32>
    %58 = vector.shape_cast %57 : vector<64xf32> to vector<64x1xf32>
    %59 = vector.broadcast %58 : vector<64x1xf32> to vector<64x64xf32>
    %60 = arith.subf %56, %59 : vector<64x64xf32>
    %61 = math.exp %60 : vector<64x64xf32>
    %cst_27 = arith.constant dense<0.000000e+00> : vector<64xf32>
    %62 = vector.multi_reduction <add>, %61, %cst_27 [1] : vector<64x64xf32> to vector<64xf32>
    %63 = vector.shape_cast %62 : vector<64xf32> to vector<64x1xf32>
    %64 = tpu.reciprocal %63 {approx = true} : vector<64x1xf32> -> vector<64x1xf32>
    %65 = vector.broadcast %64 : vector<64x1xf32> to vector<64x64xf32>
    %66 = arith.mulf %61, %65 : vector<64x64xf32>
    %c0_28 = arith.constant 0 : index
    %c2 = arith.constant 2 : index
    %c0_29 = arith.constant 0 : index
    %c0_30 = arith.constant 0 : index
    %67 = vector.load %arg6[%c0_28, %c2, %c0_29, %c0_30] : memref<2x8x64x64xf32, #tpu.memory_space<vmem>>, vector<1x1x64x64xf32>
    %68 = vector.shape_cast %67 : vector<1x1x64x64xf32> to vector<64x64xf32>
    %69 = vector.shape_cast %66 : vector<64x64xf32> to vector<1x1x64x64xf32>
    tpu.vector_store %arg6[%c0_28, %c2, %c0_29, %c0_30], %69 {strides = array<i32>} : memref<2x8x64x64xf32, #tpu.memory_space<vmem>>, vector<1x1x64x64xf32>,
    %70 = arith.truncf %66 : vector<64x64xf32> to vector<64x64xbf16>
    %cst_31 = arith.constant dense<0.000000e+00> : vector<64x4xf32>
    %71 = tpu.matmul %70, %55, %cst_31 {dimension_numbers = #tpu.dot_dimension_numbers<[1], [0], [0], [1], [0, 0, 1, 1], [], []>} : vector<64x64xbf16>, vector<64x4xbf16>, vector<64x4xf32> -> vector<64x4xf32>
    %72 = arith.truncf %71 : vector<64x4xf32> to vector<64x4xbf16>
    %c0_32 = arith.constant 0 : index
    %c8 = arith.constant 8 : index
    %73 = vector.load %arg7[%c0_32, %c8] : memref<128x32xbf16, #tpu.memory_space<vmem>>, vector<64x4xbf16>
    tpu.vector_store %arg7[%c0_32, %c8], %72 {strides = array<i32>} : memref<128x32xbf16, #tpu.memory_space<vmem>>, vector<64x4xbf16>,
    %74 = vector.extract_strided_slice %10 {offsets = [0, 36], sizes = [64, 4], strides = [1, 1]} : vector<128x96xbf16> to vector<64x4xbf16>
    %75 = vector.extract_strided_slice %10 {offsets = [0, 40], sizes = [64, 4], strides = [1, 1]} : vector<128x96xbf16> to vector<64x4xbf16>
    %76 = vector.extract_strided_slice %10 {offsets = [0, 44], sizes = [64, 4], strides = [1, 1]} : vector<128x96xbf16> to vector<64x4xbf16>
    %cst_33 = arith.constant dense<0.000000e+00> : vector<64x64xf32>
    %77 = tpu.matmul %74, %75, %cst_33 {dimension_numbers = #tpu.dot_dimension_numbers<[1], [1], [0], [0], [0, 0, 1, 0], [], []>} : vector<64x4xbf16>, vector<64x4xbf16>, vector<64x64xf32> -> vector<64x64xf32>
    %cst_34 = arith.constant dense<0xFF800000> : vector<64xf32>
    %78 = vector.multi_reduction <maximumf>, %77, %cst_34 [1] : vector<64x64xf32> to vector<64xf32>
    %79 = vector.shape_cast %78 : vector<64xf32> to vector<64x1xf32>
    %80 = vector.broadcast %79 : vector<64x1xf32> to vector<64x64xf32>
    %81 = arith.subf %77, %80 : vector<64x64xf32>
    %82 = math.exp %81 : vector<64x64xf32>
    %cst_35 = arith.constant dense<0.000000e+00> : vector<64xf32>
    %83 = vector.multi_reduction <add>, %82, %cst_35 [1] : vector<64x64xf32> to vector<64xf32>
    %84 = vector.shape_cast %83 : vector<64xf32> to vector<64x1xf32>
    %85 = tpu.reciprocal %84 {approx = true} : vector<64x1xf32> -> vector<64x1xf32>
    %86 = vector.broadcast %85 : vector<64x1xf32> to vector<64x64xf32>
    %87 = arith.mulf %82, %86 : vector<64x64xf32>
    %c0_36 = arith.constant 0 : index
    %c3 = arith.constant 3 : index
    %c0_37 = arith.constant 0 : index
    %c0_38 = arith.constant 0 : index
    %88 = vector.load %arg6[%c0_36, %c3, %c0_37, %c0_38] : memref<2x8x64x64xf32, #tpu.memory_space<vmem>>, vector<1x1x64x64xf32>
    %89 = vector.shape_cast %88 : vector<1x1x64x64xf32> to vector<64x64xf32>
    %90 = vector.shape_cast %87 : vector<64x64xf32> to vector<1x1x64x64xf32>
    tpu.vector_store %arg6[%c0_36, %c3, %c0_37, %c0_38], %90 {strides = array<i32>} : memref<2x8x64x64xf32, #tpu.memory_space<vmem>>, vector<1x1x64x64xf32>,
    %91 = arith.truncf %87 : vector<64x64xf32> to vector<64x64xbf16>
    %cst_39 = arith.constant dense<0.000000e+00> : vector<64x4xf32>
    %92 = tpu.matmul %91, %76, %cst_39 {dimension_numbers = #tpu.dot_dimension_numbers<[1], [0], [0], [1], [0, 0, 1, 1], [], []>} : vector<64x64xbf16>, vector<64x4xbf16>, vector<64x4xf32> -> vector<64x4xf32>
    %93 = arith.truncf %92 : vector<64x4xf32> to vector<64x4xbf16>
    %c0_40 = arith.constant 0 : index
    %c12 = arith.constant 12 : index
    %94 = vector.load %arg7[%c0_40, %c12] : memref<128x32xbf16, #tpu.memory_space<vmem>>, vector<64x4xbf16>
    tpu.vector_store %arg7[%c0_40, %c12], %93 {strides = array<i32>} : memref<128x32xbf16, #tpu.memory_space<vmem>>, vector<64x4xbf16>,
    %95 = vector.extract_strided_slice %10 {offsets = [0, 48], sizes = [64, 4], strides = [1, 1]} : vector<128x96xbf16> to vector<64x4xbf16>
    %96 = vector.extract_strided_slice %10 {offsets = [0, 52], sizes = [64, 4], strides = [1, 1]} : vector<128x96xbf16> to vector<64x4xbf16>
    %97 = vector.extract_strided_slice %10 {offsets = [0, 56], sizes = [64, 4], strides = [1, 1]} : vector<128x96xbf16> to vector<64x4xbf16>
    %cst_41 = arith.constant dense<0.000000e+00> : vector<64x64xf32>
    %98 = tpu.matmul %95, %96, %cst_41 {dimension_numbers = #tpu.dot_dimension_numbers<[1], [1], [0], [0], [0, 0, 1, 0], [], []>} : vector<64x4xbf16>, vector<64x4xbf16>, vector<64x64xf32> -> vector<64x64xf32>
    %cst_42 = arith.constant dense<0xFF800000> : vector<64xf32>
    %99 = vector.multi_reduction <maximumf>, %98, %cst_42 [1] : vector<64x64xf32> to vector<64xf32>
    %100 = vector.shape_cast %99 : vector<64xf32> to vector<64x1xf32>
    %101 = vector.broadcast %100 : vector<64x1xf32> to vector<64x64xf32>
    %102 = arith.subf %98, %101 : vector<64x64xf32>
    %103 = math.exp %102 : vector<64x64xf32>
    %cst_43 = arith.constant dense<0.000000e+00> : vector<64xf32>
    %104 = vector.multi_reduction <add>, %103, %cst_43 [1] : vector<64x64xf32> to vector<64xf32>
    %105 = vector.shape_cast %104 : vector<64xf32> to vector<64x1xf32>
    %106 = tpu.reciprocal %105 {approx = true} : vector<64x1xf32> -> vector<64x1xf32>
    %107 = vector.broadcast %106 : vector<64x1xf32> to vector<64x64xf32>
    %108 = arith.mulf %103, %107 : vector<64x64xf32>
    %c0_44 = arith.constant 0 : index
    %c4_45 = arith.constant 4 : index
    %c0_46 = arith.constant 0 : index
    %c0_47 = arith.constant 0 : index
    %109 = vector.load %arg6[%c0_44, %c4_45, %c0_46, %c0_47] : memref<2x8x64x64xf32, #tpu.memory_space<vmem>>, vector<1x1x64x64xf32>
    %110 = vector.shape_cast %109 : vector<1x1x64x64xf32> to vector<64x64xf32>
    %111 = vector.shape_cast %108 : vector<64x64xf32> to vector<1x1x64x64xf32>
    tpu.vector_store %arg6[%c0_44, %c4_45, %c0_46, %c0_47], %111 {strides = array<i32>} : memref<2x8x64x64xf32, #tpu.memory_space<vmem>>, vector<1x1x64x64xf32>,
    %112 = arith.truncf %108 : vector<64x64xf32> to vector<64x64xbf16>
    %cst_48 = arith.constant dense<0.000000e+00> : vector<64x4xf32>
    %113 = tpu.matmul %112, %97, %cst_48 {dimension_numbers = #tpu.dot_dimension_numbers<[1], [0], [0], [1], [0, 0, 1, 1], [], []>} : vector<64x64xbf16>, vector<64x4xbf16>, vector<64x4xf32> -> vector<64x4xf32>
    %114 = arith.truncf %113 : vector<64x4xf32> to vector<64x4xbf16>
    %c0_49 = arith.constant 0 : index
    %c16 = arith.constant 16 : index
    %115 = vector.load %arg7[%c0_49, %c16] : memref<128x32xbf16, #tpu.memory_space<vmem>>, vector<64x4xbf16>
    tpu.vector_store %arg7[%c0_49, %c16], %114 {strides = array<i32>} : memref<128x32xbf16, #tpu.memory_space<vmem>>, vector<64x4xbf16>,
    %116 = vector.extract_strided_slice %10 {offsets = [0, 60], sizes = [64, 4], strides = [1, 1]} : vector<128x96xbf16> to vector<64x4xbf16>
    %117 = vector.extract_strided_slice %10 {offsets = [0, 64], sizes = [64, 4], strides = [1, 1]} : vector<128x96xbf16> to vector<64x4xbf16>
    %118 = vector.extract_strided_slice %10 {offsets = [0, 68], sizes = [64, 4], strides = [1, 1]} : vector<128x96xbf16> to vector<64x4xbf16>
    %cst_50 = arith.constant dense<0.000000e+00> : vector<64x64xf32>
    %119 = tpu.matmul %116, %117, %cst_50 {dimension_numbers = #tpu.dot_dimension_numbers<[1], [1], [0], [0], [0, 0, 1, 0], [], []>} : vector<64x4xbf16>, vector<64x4xbf16>, vector<64x64xf32> -> vector<64x64xf32>
    %cst_51 = arith.constant dense<0xFF800000> : vector<64xf32>
    %120 = vector.multi_reduction <maximumf>, %119, %cst_51 [1] : vector<64x64xf32> to vector<64xf32>
    %121 = vector.shape_cast %120 : vector<64xf32> to vector<64x1xf32>
    %122 = vector.broadcast %121 : vector<64x1xf32> to vector<64x64xf32>
    %123 = arith.subf %119, %122 : vector<64x64xf32>
    %124 = math.exp %123 : vector<64x64xf32>
    %cst_52 = arith.constant dense<0.000000e+00> : vector<64xf32>
    %125 = vector.multi_reduction <add>, %124, %cst_52 [1] : vector<64x64xf32> to vector<64xf32>
    %126 = vector.shape_cast %125 : vector<64xf32> to vector<64x1xf32>
    %127 = tpu.reciprocal %126 {approx = true} : vector<64x1xf32> -> vector<64x1xf32>
    %128 = vector.broadcast %127 : vector<64x1xf32> to vector<64x64xf32>
    %129 = arith.mulf %124, %128 : vector<64x64xf32>
    %c0_53 = arith.constant 0 : index
    %c5 = arith.constant 5 : index
    %c0_54 = arith.constant 0 : index
    %c0_55 = arith.constant 0 : index
    %130 = vector.load %arg6[%c0_53, %c5, %c0_54, %c0_55] : memref<2x8x64x64xf32, #tpu.memory_space<vmem>>, vector<1x1x64x64xf32>
    %131 = vector.shape_cast %130 : vector<1x1x64x64xf32> to vector<64x64xf32>
    %132 = vector.shape_cast %129 : vector<64x64xf32> to vector<1x1x64x64xf32>
    tpu.vector_store %arg6[%c0_53, %c5, %c0_54, %c0_55], %132 {strides = array<i32>} : memref<2x8x64x64xf32, #tpu.memory_space<vmem>>, vector<1x1x64x64xf32>,
    %133 = arith.truncf %129 : vector<64x64xf32> to vector<64x64xbf16>
    %cst_56 = arith.constant dense<0.000000e+00> : vector<64x4xf32>
    %134 = tpu.matmul %133, %118, %cst_56 {dimension_numbers = #tpu.dot_dimension_numbers<[1], [0], [0], [1], [0, 0, 1, 1], [], []>} : vector<64x64xbf16>, vector<64x4xbf16>, vector<64x4xf32> -> vector<64x4xf32>
    %135 = arith.truncf %134 : vector<64x4xf32> to vector<64x4xbf16>
    %c0_57 = arith.constant 0 : index
    %c20 = arith.constant 20 : index
    %136 = vector.load %arg7[%c0_57, %c20] : memref<128x32xbf16, #tpu.memory_space<vmem>>, vector<64x4xbf16>
    tpu.vector_store %arg7[%c0_57, %c20], %135 {strides = array<i32>} : memref<128x32xbf16, #tpu.memory_space<vmem>>, vector<64x4xbf16>,
    %137 = vector.extract_strided_slice %10 {offsets = [0, 72], sizes = [64, 4], strides = [1, 1]} : vector<128x96xbf16> to vector<64x4xbf16>
    %138 = vector.extract_strided_slice %10 {offsets = [0, 76], sizes = [64, 4], strides = [1, 1]} : vector<128x96xbf16> to vector<64x4xbf16>
    %139 = vector.extract_strided_slice %10 {offsets = [0, 80], sizes = [64, 4], strides = [1, 1]} : vector<128x96xbf16> to vector<64x4xbf16>
    %cst_58 = arith.constant dense<0.000000e+00> : vector<64x64xf32>
    %140 = tpu.matmul %137, %138, %cst_58 {dimension_numbers = #tpu.dot_dimension_numbers<[1], [1], [0], [0], [0, 0, 1, 0], [], []>} : vector<64x4xbf16>, vector<64x4xbf16>, vector<64x64xf32> -> vector<64x64xf32>
    %cst_59 = arith.constant dense<0xFF800000> : vector<64xf32>
    %141 = vector.multi_reduction <maximumf>, %140, %cst_59 [1] : vector<64x64xf32> to vector<64xf32>
    %142 = vector.shape_cast %141 : vector<64xf32> to vector<64x1xf32>
    %143 = vector.broadcast %142 : vector<64x1xf32> to vector<64x64xf32>
    %144 = arith.subf %140, %143 : vector<64x64xf32>
    %145 = math.exp %144 : vector<64x64xf32>
    %cst_60 = arith.constant dense<0.000000e+00> : vector<64xf32>
    %146 = vector.multi_reduction <add>, %145, %cst_60 [1] : vector<64x64xf32> to vector<64xf32>
    %147 = vector.shape_cast %146 : vector<64xf32> to vector<64x1xf32>
    %148 = tpu.reciprocal %147 {approx = true} : vector<64x1xf32> -> vector<64x1xf32>
    %149 = vector.broadcast %148 : vector<64x1xf32> to vector<64x64xf32>
    %150 = arith.mulf %145, %149 : vector<64x64xf32>
    %c0_61 = arith.constant 0 : index
    %c6 = arith.constant 6 : index
    %c0_62 = arith.constant 0 : index
    %c0_63 = arith.constant 0 : index
    %151 = vector.load %arg6[%c0_61, %c6, %c0_62, %c0_63] : memref<2x8x64x64xf32, #tpu.memory_space<vmem>>, vector<1x1x64x64xf32>
    %152 = vector.shape_cast %151 : vector<1x1x64x64xf32> to vector<64x64xf32>
    %153 = vector.shape_cast %150 : vector<64x64xf32> to vector<1x1x64x64xf32>
    tpu.vector_store %arg6[%c0_61, %c6, %c0_62, %c0_63], %153 {strides = array<i32>} : memref<2x8x64x64xf32, #tpu.memory_space<vmem>>, vector<1x1x64x64xf32>,
    %154 = arith.truncf %150 : vector<64x64xf32> to vector<64x64xbf16>
    %cst_64 = arith.constant dense<0.000000e+00> : vector<64x4xf32>
    %155 = tpu.matmul %154, %139, %cst_64 {dimension_numbers = #tpu.dot_dimension_numbers<[1], [0], [0], [1], [0, 0, 1, 1], [], []>} : vector<64x64xbf16>, vector<64x4xbf16>, vector<64x4xf32> -> vector<64x4xf32>
    %156 = arith.truncf %155 : vector<64x4xf32> to vector<64x4xbf16>
    %c0_65 = arith.constant 0 : index
    %c24 = arith.constant 24 : index
    %157 = vector.load %arg7[%c0_65, %c24] : memref<128x32xbf16, #tpu.memory_space<vmem>>, vector<64x4xbf16>
    tpu.vector_store %arg7[%c0_65, %c24], %156 {strides = array<i32>} : memref<128x32xbf16, #tpu.memory_space<vmem>>, vector<64x4xbf16>,
    %158 = vector.extract_strided_slice %10 {offsets = [0, 84], sizes = [64, 4], strides = [1, 1]} : vector<128x96xbf16> to vector<64x4xbf16>
    %159 = vector.extract_strided_slice %10 {offsets = [0, 88], sizes = [64, 4], strides = [1, 1]} : vector<128x96xbf16> to vector<64x4xbf16>
    %160 = vector.extract_strided_slice %10 {offsets = [0, 92], sizes = [64, 4], strides = [1, 1]} : vector<128x96xbf16> to vector<64x4xbf16>
    %cst_66 = arith.constant dense<0.000000e+00> : vector<64x64xf32>
    %161 = tpu.matmul %158, %159, %cst_66 {dimension_numbers = #tpu.dot_dimension_numbers<[1], [1], [0], [0], [0, 0, 1, 0], [], []>} : vector<64x4xbf16>, vector<64x4xbf16>, vector<64x64xf32> -> vector<64x64xf32>
    %cst_67 = arith.constant dense<0xFF800000> : vector<64xf32>
    %162 = vector.multi_reduction <maximumf>, %161, %cst_67 [1] : vector<64x64xf32> to vector<64xf32>
    %163 = vector.shape_cast %162 : vector<64xf32> to vector<64x1xf32>
    %164 = vector.broadcast %163 : vector<64x1xf32> to vector<64x64xf32>
    %165 = arith.subf %161, %164 : vector<64x64xf32>
    %166 = math.exp %165 : vector<64x64xf32>
    %cst_68 = arith.constant dense<0.000000e+00> : vector<64xf32>
    %167 = vector.multi_reduction <add>, %166, %cst_68 [1] : vector<64x64xf32> to vector<64xf32>
    %168 = vector.shape_cast %167 : vector<64xf32> to vector<64x1xf32>
    %169 = tpu.reciprocal %168 {approx = true} : vector<64x1xf32> -> vector<64x1xf32>
    %170 = vector.broadcast %169 : vector<64x1xf32> to vector<64x64xf32>
    %171 = arith.mulf %166, %170 : vector<64x64xf32>
    %c0_69 = arith.constant 0 : index
    %c7 = arith.constant 7 : index
    %c0_70 = arith.constant 0 : index
    %c0_71 = arith.constant 0 : index
    %172 = vector.load %arg6[%c0_69, %c7, %c0_70, %c0_71] : memref<2x8x64x64xf32, #tpu.memory_space<vmem>>, vector<1x1x64x64xf32>
    %173 = vector.shape_cast %172 : vector<1x1x64x64xf32> to vector<64x64xf32>
    %174 = vector.shape_cast %171 : vector<64x64xf32> to vector<1x1x64x64xf32>
    tpu.vector_store %arg6[%c0_69, %c7, %c0_70, %c0_71], %174 {strides = array<i32>} : memref<2x8x64x64xf32, #tpu.memory_space<vmem>>, vector<1x1x64x64xf32>,
    %175 = arith.truncf %171 : vector<64x64xf32> to vector<64x64xbf16>
    %cst_72 = arith.constant dense<0.000000e+00> : vector<64x4xf32>
    %176 = tpu.matmul %175, %160, %cst_72 {dimension_numbers = #tpu.dot_dimension_numbers<[1], [0], [0], [1], [0, 0, 1, 1], [], []>} : vector<64x64xbf16>, vector<64x4xbf16>, vector<64x4xf32> -> vector<64x4xf32>
    %177 = arith.truncf %176 : vector<64x4xf32> to vector<64x4xbf16>
    %c0_73 = arith.constant 0 : index
    %c28 = arith.constant 28 : index
    %178 = vector.load %arg7[%c0_73, %c28] : memref<128x32xbf16, #tpu.memory_space<vmem>>, vector<64x4xbf16>
    tpu.vector_store %arg7[%c0_73, %c28], %177 {strides = array<i32>} : memref<128x32xbf16, #tpu.memory_space<vmem>>, vector<64x4xbf16>,
    %179 = vector.extract_strided_slice %10 {offsets = [64, 0], sizes = [64, 4], strides = [1, 1]} : vector<128x96xbf16> to vector<64x4xbf16>
    %180 = vector.extract_strided_slice %10 {offsets = [64, 4], sizes = [64, 4], strides = [1, 1]} : vector<128x96xbf16> to vector<64x4xbf16>
    %181 = vector.extract_strided_slice %10 {offsets = [64, 8], sizes = [64, 4], strides = [1, 1]} : vector<128x96xbf16> to vector<64x4xbf16>
    %cst_74 = arith.constant dense<0.000000e+00> : vector<64x64xf32>
    %182 = tpu.matmul %179, %180, %cst_74 {dimension_numbers = #tpu.dot_dimension_numbers<[1], [1], [0], [0], [0, 0, 1, 0], [], []>} : vector<64x4xbf16>, vector<64x4xbf16>, vector<64x64xf32> -> vector<64x64xf32>
    %cst_75 = arith.constant dense<0xFF800000> : vector<64xf32>
    %183 = vector.multi_reduction <maximumf>, %182, %cst_75 [1] : vector<64x64xf32> to vector<64xf32>
    %184 = vector.shape_cast %183 : vector<64xf32> to vector<64x1xf32>
    %185 = vector.broadcast %184 : vector<64x1xf32> to vector<64x64xf32>
    %186 = arith.subf %182, %185 : vector<64x64xf32>
    %187 = math.exp %186 : vector<64x64xf32>
    %cst_76 = arith.constant dense<0.000000e+00> : vector<64xf32>
    %188 = vector.multi_reduction <add>, %187, %cst_76 [1] : vector<64x64xf32> to vector<64xf32>
    %189 = vector.shape_cast %188 : vector<64xf32> to vector<64x1xf32>
    %190 = tpu.reciprocal %189 {approx = true} : vector<64x1xf32> -> vector<64x1xf32>
    %191 = vector.broadcast %190 : vector<64x1xf32> to vector<64x64xf32>
    %192 = arith.mulf %187, %191 : vector<64x64xf32>
    %c1_77 = arith.constant 1 : index
    %c0_78 = arith.constant 0 : index
    %c0_79 = arith.constant 0 : index
    %c0_80 = arith.constant 0 : index
    %193 = vector.load %arg6[%c1_77, %c0_78, %c0_79, %c0_80] : memref<2x8x64x64xf32, #tpu.memory_space<vmem>>, vector<1x1x64x64xf32>
    %194 = vector.shape_cast %193 : vector<1x1x64x64xf32> to vector<64x64xf32>
    %195 = vector.shape_cast %192 : vector<64x64xf32> to vector<1x1x64x64xf32>
    tpu.vector_store %arg6[%c1_77, %c0_78, %c0_79, %c0_80], %195 {strides = array<i32>} : memref<2x8x64x64xf32, #tpu.memory_space<vmem>>, vector<1x1x64x64xf32>,
    %196 = arith.truncf %192 : vector<64x64xf32> to vector<64x64xbf16>
    %cst_81 = arith.constant dense<0.000000e+00> : vector<64x4xf32>
    %197 = tpu.matmul %196, %181, %cst_81 {dimension_numbers = #tpu.dot_dimension_numbers<[1], [0], [0], [1], [0, 0, 1, 1], [], []>} : vector<64x64xbf16>, vector<64x4xbf16>, vector<64x4xf32> -> vector<64x4xf32>
    %198 = arith.truncf %197 : vector<64x4xf32> to vector<64x4xbf16>
    %c64 = arith.constant 64 : index
    %c0_82 = arith.constant 0 : index
    %199 = vector.load %arg7[%c64, %c0_82] : memref<128x32xbf16, #tpu.memory_space<vmem>>, vector<64x4xbf16>
    tpu.vector_store %arg7[%c64, %c0_82], %198 {strides = array<i32>} : memref<128x32xbf16, #tpu.memory_space<vmem>>, vector<64x4xbf16>,
    %200 = vector.extract_strided_slice %10 {offsets = [64, 12], sizes = [64, 4], strides = [1, 1]} : vector<128x96xbf16> to vector<64x4xbf16>
    %201 = vector.extract_strided_slice %10 {offsets = [64, 16], sizes = [64, 4], strides = [1, 1]} : vector<128x96xbf16> to vector<64x4xbf16>
    %202 = vector.extract_strided_slice %10 {offsets = [64, 20], sizes = [64, 4], strides = [1, 1]} : vector<128x96xbf16> to vector<64x4xbf16>
    %cst_83 = arith.constant dense<0.000000e+00> : vector<64x64xf32>
    %203 = tpu.matmul %200, %201, %cst_83 {dimension_numbers = #tpu.dot_dimension_numbers<[1], [1], [0], [0], [0, 0, 1, 0], [], []>} : vector<64x4xbf16>, vector<64x4xbf16>, vector<64x64xf32> -> vector<64x64xf32>
    %cst_84 = arith.constant dense<0xFF800000> : vector<64xf32>
    %204 = vector.multi_reduction <maximumf>, %203, %cst_84 [1] : vector<64x64xf32> to vector<64xf32>
    %205 = vector.shape_cast %204 : vector<64xf32> to vector<64x1xf32>
    %206 = vector.broadcast %205 : vector<64x1xf32> to vector<64x64xf32>
    %207 = arith.subf %203, %206 : vector<64x64xf32>
    %208 = math.exp %207 : vector<64x64xf32>
    %cst_85 = arith.constant dense<0.000000e+00> : vector<64xf32>
    %209 = vector.multi_reduction <add>, %208, %cst_85 [1] : vector<64x64xf32> to vector<64xf32>
    %210 = vector.shape_cast %209 : vector<64xf32> to vector<64x1xf32>
    %211 = tpu.reciprocal %210 {approx = true} : vector<64x1xf32> -> vector<64x1xf32>
    %212 = vector.broadcast %211 : vector<64x1xf32> to vector<64x64xf32>
    %213 = arith.mulf %208, %212 : vector<64x64xf32>
    %c1_86 = arith.constant 1 : index
    %c1_87 = arith.constant 1 : index
    %c0_88 = arith.constant 0 : index
    %c0_89 = arith.constant 0 : index
    %214 = vector.load %arg6[%c1_86, %c1_87, %c0_88, %c0_89] : memref<2x8x64x64xf32, #tpu.memory_space<vmem>>, vector<1x1x64x64xf32>
    %215 = vector.shape_cast %214 : vector<1x1x64x64xf32> to vector<64x64xf32>
    %216 = vector.shape_cast %213 : vector<64x64xf32> to vector<1x1x64x64xf32>
    tpu.vector_store %arg6[%c1_86, %c1_87, %c0_88, %c0_89], %216 {strides = array<i32>} : memref<2x8x64x64xf32, #tpu.memory_space<vmem>>, vector<1x1x64x64xf32>,
    %217 = arith.truncf %213 : vector<64x64xf32> to vector<64x64xbf16>
    %cst_90 = arith.constant dense<0.000000e+00> : vector<64x4xf32>
    %218 = tpu.matmul %217, %202, %cst_90 {dimension_numbers = #tpu.dot_dimension_numbers<[1], [0], [0], [1], [0, 0, 1, 1], [], []>} : vector<64x64xbf16>, vector<64x4xbf16>, vector<64x4xf32> -> vector<64x4xf32>
    %219 = arith.truncf %218 : vector<64x4xf32> to vector<64x4xbf16>
    %c64_91 = arith.constant 64 : index
    %c4_92 = arith.constant 4 : index
    %220 = vector.load %arg7[%c64_91, %c4_92] : memref<128x32xbf16, #tpu.memory_space<vmem>>, vector<64x4xbf16>
    tpu.vector_store %arg7[%c64_91, %c4_92], %219 {strides = array<i32>} : memref<128x32xbf16, #tpu.memory_space<vmem>>, vector<64x4xbf16>,
    %221 = vector.extract_strided_slice %10 {offsets = [64, 24], sizes = [64, 4], strides = [1, 1]} : vector<128x96xbf16> to vector<64x4xbf16>
    %222 = vector.extract_strided_slice %10 {offsets = [64, 28], sizes = [64, 4], strides = [1, 1]} : vector<128x96xbf16> to vector<64x4xbf16>
    %223 = vector.extract_strided_slice %10 {offsets = [64, 32], sizes = [64, 4], strides = [1, 1]} : vector<128x96xbf16> to vector<64x4xbf16>
    %cst_93 = arith.constant dense<0.000000e+00> : vector<64x64xf32>
    %224 = tpu.matmul %221, %222, %cst_93 {dimension_numbers = #tpu.dot_dimension_numbers<[1], [1], [0], [0], [0, 0, 1, 0], [], []>} : vector<64x4xbf16>, vector<64x4xbf16>, vector<64x64xf32> -> vector<64x64xf32>
    %cst_94 = arith.constant dense<0xFF800000> : vector<64xf32>
    %225 = vector.multi_reduction <maximumf>, %224, %cst_94 [1] : vector<64x64xf32> to vector<64xf32>
    %226 = vector.shape_cast %225 : vector<64xf32> to vector<64x1xf32>
    %227 = vector.broadcast %226 : vector<64x1xf32> to vector<64x64xf32>
    %228 = arith.subf %224, %227 : vector<64x64xf32>
    %229 = math.exp %228 : vector<64x64xf32>
    %cst_95 = arith.constant dense<0.000000e+00> : vector<64xf32>
    %230 = vector.multi_reduction <add>, %229, %cst_95 [1] : vector<64x64xf32> to vector<64xf32>
    %231 = vector.shape_cast %230 : vector<64xf32> to vector<64x1xf32>
    %232 = tpu.reciprocal %231 {approx = true} : vector<64x1xf32> -> vector<64x1xf32>
    %233 = vector.broadcast %232 : vector<64x1xf32> to vector<64x64xf32>
    %234 = arith.mulf %229, %233 : vector<64x64xf32>
    %c1_96 = arith.constant 1 : index
    %c2_97 = arith.constant 2 : index
    %c0_98 = arith.constant 0 : index
    %c0_99 = arith.constant 0 : index
    %235 = vector.load %arg6[%c1_96, %c2_97, %c0_98, %c0_99] : memref<2x8x64x64xf32, #tpu.memory_space<vmem>>, vector<1x1x64x64xf32>
    %236 = vector.shape_cast %235 : vector<1x1x64x64xf32> to vector<64x64xf32>
    %237 = vector.shape_cast %234 : vector<64x64xf32> to vector<1x1x64x64xf32>
    tpu.vector_store %arg6[%c1_96, %c2_97, %c0_98, %c0_99], %237 {strides = array<i32>} : memref<2x8x64x64xf32, #tpu.memory_space<vmem>>, vector<1x1x64x64xf32>,
    %238 = arith.truncf %234 : vector<64x64xf32> to vector<64x64xbf16>
    %cst_100 = arith.constant dense<0.000000e+00> : vector<64x4xf32>
    %239 = tpu.matmul %238, %223, %cst_100 {dimension_numbers = #tpu.dot_dimension_numbers<[1], [0], [0], [1], [0, 0, 1, 1], [], []>} : vector<64x64xbf16>, vector<64x4xbf16>, vector<64x4xf32> -> vector<64x4xf32>
    %240 = arith.truncf %239 : vector<64x4xf32> to vector<64x4xbf16>
    %c64_101 = arith.constant 64 : index
    %c8_102 = arith.constant 8 : index
    %241 = vector.load %arg7[%c64_101, %c8_102] : memref<128x32xbf16, #tpu.memory_space<vmem>>, vector<64x4xbf16>
    tpu.vector_store %arg7[%c64_101, %c8_102], %240 {strides = array<i32>} : memref<128x32xbf16, #tpu.memory_space<vmem>>, vector<64x4xbf16>,
    %242 = vector.extract_strided_slice %10 {offsets = [64, 36], sizes = [64, 4], strides = [1, 1]} : vector<128x96xbf16> to vector<64x4xbf16>
    %243 = vector.extract_strided_slice %10 {offsets = [64, 40], sizes = [64, 4], strides = [1, 1]} : vector<128x96xbf16> to vector<64x4xbf16>
    %244 = vector.extract_strided_slice %10 {offsets = [64, 44], sizes = [64, 4], strides = [1, 1]} : vector<128x96xbf16> to vector<64x4xbf16>
    %cst_103 = arith.constant dense<0.000000e+00> : vector<64x64xf32>
    %245 = tpu.matmul %242, %243, %cst_103 {dimension_numbers = #tpu.dot_dimension_numbers<[1], [1], [0], [0], [0, 0, 1, 0], [], []>} : vector<64x4xbf16>, vector<64x4xbf16>, vector<64x64xf32> -> vector<64x64xf32>
    %cst_104 = arith.constant dense<0xFF800000> : vector<64xf32>
    %246 = vector.multi_reduction <maximumf>, %245, %cst_104 [1] : vector<64x64xf32> to vector<64xf32>
    %247 = vector.shape_cast %246 : vector<64xf32> to vector<64x1xf32>
    %248 = vector.broadcast %247 : vector<64x1xf32> to vector<64x64xf32>
    %249 = arith.subf %245, %248 : vector<64x64xf32>
    %250 = math.exp %249 : vector<64x64xf32>
    %cst_105 = arith.constant dense<0.000000e+00> : vector<64xf32>
    %251 = vector.multi_reduction <add>, %250, %cst_105 [1] : vector<64x64xf32> to vector<64xf32>
    %252 = vector.shape_cast %251 : vector<64xf32> to vector<64x1xf32>
    %253 = tpu.reciprocal %252 {approx = true} : vector<64x1xf32> -> vector<64x1xf32>
    %254 = vector.broadcast %253 : vector<64x1xf32> to vector<64x64xf32>
    %255 = arith.mulf %250, %254 : vector<64x64xf32>
    %c1_106 = arith.constant 1 : index
    %c3_107 = arith.constant 3 : index
    %c0_108 = arith.constant 0 : index
    %c0_109 = arith.constant 0 : index
    %256 = vector.load %arg6[%c1_106, %c3_107, %c0_108, %c0_109] : memref<2x8x64x64xf32, #tpu.memory_space<vmem>>, vector<1x1x64x64xf32>
    %257 = vector.shape_cast %256 : vector<1x1x64x64xf32> to vector<64x64xf32>
    %258 = vector.shape_cast %255 : vector<64x64xf32> to vector<1x1x64x64xf32>
    tpu.vector_store %arg6[%c1_106, %c3_107, %c0_108, %c0_109], %258 {strides = array<i32>} : memref<2x8x64x64xf32, #tpu.memory_space<vmem>>, vector<1x1x64x64xf32>,
    %259 = arith.truncf %255 : vector<64x64xf32> to vector<64x64xbf16>
    %cst_110 = arith.constant dense<0.000000e+00> : vector<64x4xf32>
    %260 = tpu.matmul %259, %244, %cst_110 {dimension_numbers = #tpu.dot_dimension_numbers<[1], [0], [0], [1], [0, 0, 1, 1], [], []>} : vector<64x64xbf16>, vector<64x4xbf16>, vector<64x4xf32> -> vector<64x4xf32>
    %261 = arith.truncf %260 : vector<64x4xf32> to vector<64x4xbf16>
    %c64_111 = arith.constant 64 : index
    %c12_112 = arith.constant 12 : index
    %262 = vector.load %arg7[%c64_111, %c12_112] : memref<128x32xbf16, #tpu.memory_space<vmem>>, vector<64x4xbf16>
    tpu.vector_store %arg7[%c64_111, %c12_112], %261 {strides = array<i32>} : memref<128x32xbf16, #tpu.memory_space<vmem>>, vector<64x4xbf16>,
    %263 = vector.extract_strided_slice %10 {offsets = [64, 48], sizes = [64, 4], strides = [1, 1]} : vector<128x96xbf16> to vector<64x4xbf16>
    %264 = vector.extract_strided_slice %10 {offsets = [64, 52], sizes = [64, 4], strides = [1, 1]} : vector<128x96xbf16> to vector<64x4xbf16>
    %265 = vector.extract_strided_slice %10 {offsets = [64, 56], sizes = [64, 4], strides = [1, 1]} : vector<128x96xbf16> to vector<64x4xbf16>
    %cst_113 = arith.constant dense<0.000000e+00> : vector<64x64xf32>
    %266 = tpu.matmul %263, %264, %cst_113 {dimension_numbers = #tpu.dot_dimension_numbers<[1], [1], [0], [0], [0, 0, 1, 0], [], []>} : vector<64x4xbf16>, vector<64x4xbf16>, vector<64x64xf32> -> vector<64x64xf32>
    %cst_114 = arith.constant dense<0xFF800000> : vector<64xf32>
    %267 = vector.multi_reduction <maximumf>, %266, %cst_114 [1] : vector<64x64xf32> to vector<64xf32>
    %268 = vector.shape_cast %267 : vector<64xf32> to vector<64x1xf32>
    %269 = vector.broadcast %268 : vector<64x1xf32> to vector<64x64xf32>
    %270 = arith.subf %266, %269 : vector<64x64xf32>
    %271 = math.exp %270 : vector<64x64xf32>
    %cst_115 = arith.constant dense<0.000000e+00> : vector<64xf32>
    %272 = vector.multi_reduction <add>, %271, %cst_115 [1] : vector<64x64xf32> to vector<64xf32>
    %273 = vector.shape_cast %272 : vector<64xf32> to vector<64x1xf32>
    %274 = tpu.reciprocal %273 {approx = true} : vector<64x1xf32> -> vector<64x1xf32>
    %275 = vector.broadcast %274 : vector<64x1xf32> to vector<64x64xf32>
    %276 = arith.mulf %271, %275 : vector<64x64xf32>
    %c1_116 = arith.constant 1 : index
    %c4_117 = arith.constant 4 : index
    %c0_118 = arith.constant 0 : index
    %c0_119 = arith.constant 0 : index
    %277 = vector.load %arg6[%c1_116, %c4_117, %c0_118, %c0_119] : memref<2x8x64x64xf32, #tpu.memory_space<vmem>>, vector<1x1x64x64xf32>
    %278 = vector.shape_cast %277 : vector<1x1x64x64xf32> to vector<64x64xf32>
    %279 = vector.shape_cast %276 : vector<64x64xf32> to vector<1x1x64x64xf32>
    tpu.vector_store %arg6[%c1_116, %c4_117, %c0_118, %c0_119], %279 {strides = array<i32>} : memref<2x8x64x64xf32, #tpu.memory_space<vmem>>, vector<1x1x64x64xf32>,
    %280 = arith.truncf %276 : vector<64x64xf32> to vector<64x64xbf16>
    %cst_120 = arith.constant dense<0.000000e+00> : vector<64x4xf32>
    %281 = tpu.matmul %280, %265, %cst_120 {dimension_numbers = #tpu.dot_dimension_numbers<[1], [0], [0], [1], [0, 0, 1, 1], [], []>} : vector<64x64xbf16>, vector<64x4xbf16>, vector<64x4xf32> -> vector<64x4xf32>
    %282 = arith.truncf %281 : vector<64x4xf32> to vector<64x4xbf16>
    %c64_121 = arith.constant 64 : index
    %c16_122 = arith.constant 16 : index
    %283 = vector.load %arg7[%c64_121, %c16_122] : memref<128x32xbf16, #tpu.memory_space<vmem>>, vector<64x4xbf16>
    tpu.vector_store %arg7[%c64_121, %c16_122], %282 {strides = array<i32>} : memref<128x32xbf16, #tpu.memory_space<vmem>>, vector<64x4xbf16>,
    %284 = vector.extract_strided_slice %10 {offsets = [64, 60], sizes = [64, 4], strides = [1, 1]} : vector<128x96xbf16> to vector<64x4xbf16>
    %285 = vector.extract_strided_slice %10 {offsets = [64, 64], sizes = [64, 4], strides = [1, 1]} : vector<128x96xbf16> to vector<64x4xbf16>
    %286 = vector.extract_strided_slice %10 {offsets = [64, 68], sizes = [64, 4], strides = [1, 1]} : vector<128x96xbf16> to vector<64x4xbf16>
    %cst_123 = arith.constant dense<0.000000e+00> : vector<64x64xf32>
    %287 = tpu.matmul %284, %285, %cst_123 {dimension_numbers = #tpu.dot_dimension_numbers<[1], [1], [0], [0], [0, 0, 1, 0], [], []>} : vector<64x4xbf16>, vector<64x4xbf16>, vector<64x64xf32> -> vector<64x64xf32>
    %cst_124 = arith.constant dense<0xFF800000> : vector<64xf32>
    %288 = vector.multi_reduction <maximumf>, %287, %cst_124 [1] : vector<64x64xf32> to vector<64xf32>
    %289 = vector.shape_cast %288 : vector<64xf32> to vector<64x1xf32>
    %290 = vector.broadcast %289 : vector<64x1xf32> to vector<64x64xf32>
    %291 = arith.subf %287, %290 : vector<64x64xf32>
    %292 = math.exp %291 : vector<64x64xf32>
    %cst_125 = arith.constant dense<0.000000e+00> : vector<64xf32>
    %293 = vector.multi_reduction <add>, %292, %cst_125 [1] : vector<64x64xf32> to vector<64xf32>
    %294 = vector.shape_cast %293 : vector<64xf32> to vector<64x1xf32>
    %295 = tpu.reciprocal %294 {approx = true} : vector<64x1xf32> -> vector<64x1xf32>
    %296 = vector.broadcast %295 : vector<64x1xf32> to vector<64x64xf32>
    %297 = arith.mulf %292, %296 : vector<64x64xf32>
    %c1_126 = arith.constant 1 : index
    %c5_127 = arith.constant 5 : index
    %c0_128 = arith.constant 0 : index
    %c0_129 = arith.constant 0 : index
    %298 = vector.load %arg6[%c1_126, %c5_127, %c0_128, %c0_129] : memref<2x8x64x64xf32, #tpu.memory_space<vmem>>, vector<1x1x64x64xf32>
    %299 = vector.shape_cast %298 : vector<1x1x64x64xf32> to vector<64x64xf32>
    %300 = vector.shape_cast %297 : vector<64x64xf32> to vector<1x1x64x64xf32>
    tpu.vector_store %arg6[%c1_126, %c5_127, %c0_128, %c0_129], %300 {strides = array<i32>} : memref<2x8x64x64xf32, #tpu.memory_space<vmem>>, vector<1x1x64x64xf32>,
    %301 = arith.truncf %297 : vector<64x64xf32> to vector<64x64xbf16>
    %cst_130 = arith.constant dense<0.000000e+00> : vector<64x4xf32>
    %302 = tpu.matmul %301, %286, %cst_130 {dimension_numbers = #tpu.dot_dimension_numbers<[1], [0], [0], [1], [0, 0, 1, 1], [], []>} : vector<64x64xbf16>, vector<64x4xbf16>, vector<64x4xf32> -> vector<64x4xf32>
    %303 = arith.truncf %302 : vector<64x4xf32> to vector<64x4xbf16>
    %c64_131 = arith.constant 64 : index
    %c20_132 = arith.constant 20 : index
    %304 = vector.load %arg7[%c64_131, %c20_132] : memref<128x32xbf16, #tpu.memory_space<vmem>>, vector<64x4xbf16>
    tpu.vector_store %arg7[%c64_131, %c20_132], %303 {strides = array<i32>} : memref<128x32xbf16, #tpu.memory_space<vmem>>, vector<64x4xbf16>,
    %305 = vector.extract_strided_slice %10 {offsets = [64, 72], sizes = [64, 4], strides = [1, 1]} : vector<128x96xbf16> to vector<64x4xbf16>
    %306 = vector.extract_strided_slice %10 {offsets = [64, 76], sizes = [64, 4], strides = [1, 1]} : vector<128x96xbf16> to vector<64x4xbf16>
    %307 = vector.extract_strided_slice %10 {offsets = [64, 80], sizes = [64, 4], strides = [1, 1]} : vector<128x96xbf16> to vector<64x4xbf16>
    %cst_133 = arith.constant dense<0.000000e+00> : vector<64x64xf32>
    %308 = tpu.matmul %305, %306, %cst_133 {dimension_numbers = #tpu.dot_dimension_numbers<[1], [1], [0], [0], [0, 0, 1, 0], [], []>} : vector<64x4xbf16>, vector<64x4xbf16>, vector<64x64xf32> -> vector<64x64xf32>
    %cst_134 = arith.constant dense<0xFF800000> : vector<64xf32>
    %309 = vector.multi_reduction <maximumf>, %308, %cst_134 [1] : vector<64x64xf32> to vector<64xf32>
    %310 = vector.shape_cast %309 : vector<64xf32> to vector<64x1xf32>
    %311 = vector.broadcast %310 : vector<64x1xf32> to vector<64x64xf32>
    %312 = arith.subf %308, %311 : vector<64x64xf32>
    %313 = math.exp %312 : vector<64x64xf32>
    %cst_135 = arith.constant dense<0.000000e+00> : vector<64xf32>
    %314 = vector.multi_reduction <add>, %313, %cst_135 [1] : vector<64x64xf32> to vector<64xf32>
    %315 = vector.shape_cast %314 : vector<64xf32> to vector<64x1xf32>
    %316 = tpu.reciprocal %315 {approx = true} : vector<64x1xf32> -> vector<64x1xf32>
    %317 = vector.broadcast %316 : vector<64x1xf32> to vector<64x64xf32>
    %318 = arith.mulf %313, %317 : vector<64x64xf32>
    %c1_136 = arith.constant 1 : index
    %c6_137 = arith.constant 6 : index
    %c0_138 = arith.constant 0 : index
    %c0_139 = arith.constant 0 : index
    %319 = vector.load %arg6[%c1_136, %c6_137, %c0_138, %c0_139] : memref<2x8x64x64xf32, #tpu.memory_space<vmem>>, vector<1x1x64x64xf32>
    %320 = vector.shape_cast %319 : vector<1x1x64x64xf32> to vector<64x64xf32>
    %321 = vector.shape_cast %318 : vector<64x64xf32> to vector<1x1x64x64xf32>
    tpu.vector_store %arg6[%c1_136, %c6_137, %c0_138, %c0_139], %321 {strides = array<i32>} : memref<2x8x64x64xf32, #tpu.memory_space<vmem>>, vector<1x1x64x64xf32>,
    %322 = arith.truncf %318 : vector<64x64xf32> to vector<64x64xbf16>
    %cst_140 = arith.constant dense<0.000000e+00> : vector<64x4xf32>
    %323 = tpu.matmul %322, %307, %cst_140 {dimension_numbers = #tpu.dot_dimension_numbers<[1], [0], [0], [1], [0, 0, 1, 1], [], []>} : vector<64x64xbf16>, vector<64x4xbf16>, vector<64x4xf32> -> vector<64x4xf32>
    %324 = arith.truncf %323 : vector<64x4xf32> to vector<64x4xbf16>
    %c64_141 = arith.constant 64 : index
    %c24_142 = arith.constant 24 : index
    %325 = vector.load %arg7[%c64_141, %c24_142] : memref<128x32xbf16, #tpu.memory_space<vmem>>, vector<64x4xbf16>
    tpu.vector_store %arg7[%c64_141, %c24_142], %324 {strides = array<i32>} : memref<128x32xbf16, #tpu.memory_space<vmem>>, vector<64x4xbf16>,
    %326 = vector.extract_strided_slice %10 {offsets = [64, 84], sizes = [64, 4], strides = [1, 1]} : vector<128x96xbf16> to vector<64x4xbf16>
    %327 = vector.extract_strided_slice %10 {offsets = [64, 88], sizes = [64, 4], strides = [1, 1]} : vector<128x96xbf16> to vector<64x4xbf16>
    %328 = vector.extract_strided_slice %10 {offsets = [64, 92], sizes = [64, 4], strides = [1, 1]} : vector<128x96xbf16> to vector<64x4xbf16>
    %cst_143 = arith.constant dense<0.000000e+00> : vector<64x64xf32>
    %329 = tpu.matmul %326, %327, %cst_143 {dimension_numbers = #tpu.dot_dimension_numbers<[1], [1], [0], [0], [0, 0, 1, 0], [], []>} : vector<64x4xbf16>, vector<64x4xbf16>, vector<64x64xf32> -> vector<64x64xf32>
    %cst_144 = arith.constant dense<0xFF800000> : vector<64xf32>
    %330 = vector.multi_reduction <maximumf>, %329, %cst_144 [1] : vector<64x64xf32> to vector<64xf32>
    %331 = vector.shape_cast %330 : vector<64xf32> to vector<64x1xf32>
    %332 = vector.broadcast %331 : vector<64x1xf32> to vector<64x64xf32>
    %333 = arith.subf %329, %332 : vector<64x64xf32>
    %334 = math.exp %333 : vector<64x64xf32>
    %cst_145 = arith.constant dense<0.000000e+00> : vector<64xf32>
    %335 = vector.multi_reduction <add>, %334, %cst_145 [1] : vector<64x64xf32> to vector<64xf32>
    %336 = vector.shape_cast %335 : vector<64xf32> to vector<64x1xf32>
    %337 = tpu.reciprocal %336 {approx = true} : vector<64x1xf32> -> vector<64x1xf32>
    %338 = vector.broadcast %337 : vector<64x1xf32> to vector<64x64xf32>
    %339 = arith.mulf %334, %338 : vector<64x64xf32>
    %c1_146 = arith.constant 1 : index
    %c7_147 = arith.constant 7 : index
    %c0_148 = arith.constant 0 : index
    %c0_149 = arith.constant 0 : index
    %340 = vector.load %arg6[%c1_146, %c7_147, %c0_148, %c0_149] : memref<2x8x64x64xf32, #tpu.memory_space<vmem>>, vector<1x1x64x64xf32>
    %341 = vector.shape_cast %340 : vector<1x1x64x64xf32> to vector<64x64xf32>
    %342 = vector.shape_cast %339 : vector<64x64xf32> to vector<1x1x64x64xf32>
    tpu.vector_store %arg6[%c1_146, %c7_147, %c0_148, %c0_149], %342 {strides = array<i32>} : memref<2x8x64x64xf32, #tpu.memory_space<vmem>>, vector<1x1x64x64xf32>,
    %343 = arith.truncf %339 : vector<64x64xf32> to vector<64x64xbf16>
    %cst_150 = arith.constant dense<0.000000e+00> : vector<64x4xf32>
    %344 = tpu.matmul %343, %328, %cst_150 {dimension_numbers = #tpu.dot_dimension_numbers<[1], [0], [0], [1], [0, 0, 1, 1], [], []>} : vector<64x64xbf16>, vector<64x4xbf16>, vector<64x4xf32> -> vector<64x4xf32>
    %345 = arith.truncf %344 : vector<64x4xf32> to vector<64x4xbf16>
    %c64_151 = arith.constant 64 : index
    %c28_152 = arith.constant 28 : index
    %346 = vector.load %arg7[%c64_151, %c28_152] : memref<128x32xbf16, #tpu.memory_space<vmem>>, vector<64x4xbf16>
    tpu.vector_store %arg7[%c64_151, %c28_152], %345 {strides = array<i32>} : memref<128x32xbf16, #tpu.memory_space<vmem>>, vector<64x4xbf16>,
    %c0_153 = arith.constant 0 : index
    %c0_154 = arith.constant 0 : index
    %347 = vector.load %arg7[%c0_153, %c0_154] : memref<128x32xbf16, #tpu.memory_space<vmem>>, vector<128x32xbf16>
    %c0_155 = arith.constant 0 : index
    %c0_156 = arith.constant 0 : index
    %348 = vector.load %arg3[%c0_155, %c0_156] : memref<32x32xbf16, #tpu.memory_space<vmem>>, vector<32x32xbf16>
    %cst_157 = arith.constant dense<0.000000e+00> : vector<128x32xf32>
    %349 = tpu.matmul %347, %348, %cst_157 {dimension_numbers = #tpu.dot_dimension_numbers<[1], [0], [0], [1], [0, 0, 1, 1], [], []>} : vector<128x32xbf16>, vector<32x32xbf16>, vector<128x32xf32> -> vector<128x32xf32>
    %c0_158 = arith.constant 0 : index
    %c0_159 = arith.constant 0 : index
    %350 = vector.load %arg4[%c0_158, %c0_159] : memref<1x32xf32, #tpu.memory_space<vmem>>, vector<1x32xf32>
    %351 = vector.broadcast %350 : vector<1x32xf32> to vector<128x32xf32>
    %352 = arith.addf %349, %351 : vector<128x32xf32>
    %353 = vector.extract_strided_slice %352 {offsets = [0, 0], sizes = [64, 32], strides = [1, 1]} : vector<128x32xf32> to vector<64x32xf32>
    %354 = tpu.transpose %353, [1, 0] : vector<64x32xf32> -> vector<32x64xf32>
    %c0_160 = arith.constant 0 : index
    %c0_161 = arith.constant 0 : index
    %c0_162 = arith.constant 0 : index
    %355 = vector.load %arg5[%c0_160, %c0_161, %c0_162] : memref<2x32x64xf32, #tpu.memory_space<vmem>>, vector<1x32x64xf32>
    %356 = vector.shape_cast %355 : vector<1x32x64xf32> to vector<32x64xf32>
    %357 = vector.shape_cast %354 : vector<32x64xf32> to vector<1x32x64xf32>
    tpu.vector_store %arg5[%c0_160, %c0_161, %c0_162], %357 {strides = array<i32>} : memref<2x32x64xf32, #tpu.memory_space<vmem>>, vector<1x32x64xf32>,
    %358 = vector.extract_strided_slice %352 {offsets = [64, 0], sizes = [64, 32], strides = [1, 1]} : vector<128x32xf32> to vector<64x32xf32>
    %359 = tpu.transpose %358, [1, 0] : vector<64x32xf32> -> vector<32x64xf32>
    %c1_163 = arith.constant 1 : index
    %c0_164 = arith.constant 0 : index
    %c0_165 = arith.constant 0 : index
    %360 = vector.load %arg5[%c1_163, %c0_164, %c0_165] : memref<2x32x64xf32, #tpu.memory_space<vmem>>, vector<1x32x64xf32>
    %361 = vector.shape_cast %360 : vector<1x32x64xf32> to vector<32x64xf32>
    %362 = vector.shape_cast %359 : vector<32x64xf32> to vector<1x32x64xf32>
    tpu.vector_store %arg5[%c1_163, %c0_164, %c0_165], %362 {strides = array<i32>} : memref<2x32x64xf32, #tpu.memory_space<vmem>>, vector<1x32x64xf32>,
    return
  }
  func.func @transform_0(%arg0: i32) -> (i32, i32, i32) {
    %c0_i32 = arith.constant 0 : i32
    %c0_i32_0 = arith.constant 0 : i32
    %c0_i32_1 = arith.constant 0 : i32
    return %arg0, %c0_i32, %c0_i32_0 : i32, i32, i32
  }
  func.func @transform_1(%arg0: i32) -> (i32, i32) {
    %c0_i32 = arith.constant 0 : i32
    %c0_i32_0 = arith.constant 0 : i32
    %c0_i32_1 = arith.constant 0 : i32
    return %c0_i32, %c0_i32_0 : i32, i32
  }
  func.func @transform_2(%arg0: i32) -> (i32, i32) {
    %c0_i32 = arith.constant 0 : i32
    %c0_i32_0 = arith.constant 0 : i32
    %c0_i32_1 = arith.constant 0 : i32
    return %c0_i32, %c0_i32_0 : i32, i32
  }
  func.func @transform_3(%arg0: i32) -> (i32, i32) {
    %c0_i32 = arith.constant 0 : i32
    %c0_i32_0 = arith.constant 0 : i32
    %c0_i32_1 = arith.constant 0 : i32
    return %c0_i32, %c0_i32_0 : i32, i32
  }
  func.func @transform_4(%arg0: i32) -> (i32, i32, i32) {
    %c0_i32 = arith.constant 0 : i32
    %c0_i32_0 = arith.constant 0 : i32
    %c0_i32_1 = arith.constant 0 : i32
    return %arg0, %c0_i32, %c0_i32_0 : i32, i32, i32
  }
  func.func @transform_5(%arg0: i32) -> (i32, i32, i32, i32) {
    %c0_i32 = arith.constant 0 : i32
    %c0_i32_0 = arith.constant 0 : i32
    %c0_i32_1 = arith.constant 0 : i32
    %c0_i32_2 = arith.constant 0 : i32
    return %arg0, %c0_i32, %c0_i32_0, %c0_i32_1 : i32, i32, i32, i32
  }
}

</mosaic_0001>

<llo_original>
// kernel: tpu_custom_call.1
$region0: #{tpu_custom_call.1}
  #allocation0 [shape = 'u32[]', space=smem, size = 0x4, offset = 0x4, fixed_abs, tag = 'smem constant byte address 0x4 - core index']
  #allocation1 [shape = 'u32[144,128]{1,0:T(1,128)}', space=vmem, size = 0x12000, scoped, tag = 'internal scratch']
  #allocation2 [shape = 'bf16[128,32]{1,0:T(16,128)(2,1)}', space=vmem, size = 0x8000, scoped, tag = 'scratch operand']
  %s0 = inlined_call_operand.hbm [shape: f32[2,32,64], index: 0, kind: input, shape index: {}]
  %s1 = inlined_call_operand.hbm [shape: bf16[32,96], index: 1, kind: input, shape index: {}]
  %s2 = inlined_call_operand.hbm [shape: bf16[32,32], index: 2, kind: input, shape index: {}]
  %s3 = inlined_call_operand.vmem [shape: f32[1,32], index: 3, kind: input, shape index: {}]
  %s4 = inlined_call_operand.hbm [shape: f32[2,32,64], index: 4, kind: output, shape index: {0}]
  %s5 = inlined_call_operand.hbm [shape: f32[2,8,64,64], index: 5, kind: output, shape index: {1}]
  %6 = xla_tuple %s4, %s5
  %s7 = sld [smem:[#allocation0]]
  $region46: #{tpu_custom_call.1} parent=0
    _
  %s9 = ssub.s32 1, %s7
  %s10 = scalar_select 0, %s9, %s7
  $region1: #{tpu_custom_call.1} parent=0
    #allocation3 [shape = 'u8[32768]{0}', space=vmem, size = 0x8000, scoped, tag = 'input window, operand 0, single buffered']
    #allocation4 [shape = 's32[1]{0}', space=sflag, size = 0x4, scoped, tag = 'scoped memory for tpu_custom_call.1']
    #allocation5 [shape = 's32[1]{0}', space=sflag, size = 0x4, scoped, tag = 'scoped memory for tpu_custom_call.1']
    #allocation6 [shape = 'u8[8192]{0}', space=vmem, size = 0x2000, scoped, tag = 'input window, operand 1, single buffered']
    #allocation7 [shape = 's32[1]{0}', space=sflag, size = 0x4, scoped, tag = 'scoped memory for tpu_custom_call.1']
    #allocation8 [shape = 'u8[8192]{0}', space=vmem, size = 0x2000, scoped, tag = 'input window, operand 2, single buffered']
    #allocation9 [shape = 'u8[32768]{0}', space=vmem, size = 0x8000, scoped, tag = 'output window, operand 0, single buffered']
    #allocation10 [shape = 'u8[524288]{0}', space=vmem, size = 0x80000, scoped, tag = 'output window, operand 1, single buffered']
    #allocation11 [shape = 's32[1]{0}', space=sflag, size = 0x4, scoped, tag = 'scoped memory for tpu_custom_call.1']
    %11 = vsyncpa [#allocation4], 0
    %12 = vsyncpa [#allocation7], 0
    %13 = vsyncpa [#allocation5], 0
    %14 = vsyncpa [#allocation11], 0
    // Predicated region
    $region2: #{tpu_custom_call.1} parent=1 // pred_check
      _
    $region3: #{tpu_custom_call.1} parent=1 // pred_check_branch
      %16 = sbr.rel (0) target = $region5
    $region4: #{tpu_custom_call.1} parent=1 // pred_region
      %s18 = ssub.s32 1024, 1024
      %19 = vsyncadd [#allocation4], %s18
      %s20 = sshll.u32 [#allocation3], 4
      %s21 = int_to_ptr.vmem [resolvable:$true] %s20
      %26 = dma.hbm_to_vmem [thread:$0]  %s0, 1024, %s21, [#allocation4], 128, 128, 8
    $region5: #{tpu_custom_call.1} parent=1 // pred_fallthru
      _
    // Predicated region
    $region6: #{tpu_custom_call.1} parent=1 // pred_check
      _
    $region7: #{tpu_custom_call.1} parent=1 // pred_check_branch
      %28 = sbr.rel (0) target = $region9
    $region8: #{tpu_custom_call.1} parent=1 // pred_region
      %s30 = ssub.s32 256, 256
      %31 = vsyncadd [#allocation7], %s30
      %s32 = sshll.u32 [#allocation6], 4
      %s33 = int_to_ptr.vmem [resolvable:$true] %s32
      %38 = dma.hbm_to_vmem [thread:$0]  %s1, 256, %s33, [#allocation7], 64, 64, 4
    $region9: #{tpu_custom_call.1} parent=1 // pred_fallthru
      _
    // Predicated region
    $region10: #{tpu_custom_call.1} parent=1 // pred_check
      _
    $region11: #{tpu_custom_call.1} parent=1 // pred_check_branch
      %40 = sbr.rel (0) target = $region13
    $region12: #{tpu_custom_call.1} parent=1 // pred_region
      %s42 = ssub.s32 256, 256
      %43 = vsyncadd [#allocation7], %s42
      %s44 = sshll.u32 [#allocation8], 4
      %s45 = int_to_ptr.vmem [resolvable:$true] %s44
      %50 = dma.hbm_to_vmem [thread:$0]  %s2, 256, %s45, [#allocation7], 64, 64, 4
    $region13: #{tpu_custom_call.1} parent=1 // pred_fallthru
      _
    // Predicated region
    $region14: #{tpu_custom_call.1} parent=1 // pred_check
      _
    $region15: #{tpu_custom_call.1} parent=1 // pred_check_branch
      %52 = sbr.rel (0) target = $region17
    $region16: #{tpu_custom_call.1} parent=1 // pred_region
      _
    $region17: #{tpu_custom_call.1} parent=1 // pred_fallthru
      _
    // Predicated region
    $region18: #{tpu_custom_call.1} parent=1 // pred_check
      _
    $region19: #{tpu_custom_call.1} parent=1 // pred_check_branch
      %54 = sbr.rel (0) target = $region21
    $region20: #{tpu_custom_call.1} parent=1 // pred_region
      %55 = dma.done [#allocation4], 1024
    $region21: #{tpu_custom_call.1} parent=1 // pred_fallthru
      _
    // Predicated region
    $region22: #{tpu_custom_call.1} parent=1 // pred_check
      _
    $region23: #{tpu_custom_call.1} parent=1 // pred_check_branch
      %57 = sbr.rel (0) target = $region25
    $region24: #{tpu_custom_call.1} parent=1 // pred_region
      %58 = dma.done [#allocation7], 256
    $region25: #{tpu_custom_call.1} parent=1 // pred_fallthru
      _
    // Predicated region
    $region26: #{tpu_custom_call.1} parent=1 // pred_check
      _
    $region27: #{tpu_custom_call.1} parent=1 // pred_check_branch
      %60 = sbr.rel (0) target = $region29
    $region28: #{tpu_custom_call.1} parent=1 // pred_region
      %61 = dma.done [#allocation7], 256
    $region29: #{tpu_custom_call.1} parent=1 // pred_fallthru
      _
    %v63 = vld [vmem:[#allocation3] sm:$0xff]
    %v64 = vld [vmem:[#allocation3 + $0x8] sm:$0xff]
    %v65 = vld [vmem:[#allocation3 + $0x10] sm:$0xff]
    %v66 = vld [vmem:[#allocation3 + $0x18] sm:$0xff]
    %67 = vxpose.xlu0.b32.start [1/16] %v63, 128
    %68 = vxpose.xlu0.b32.cont [2/16] %v64, 128
    %69 = vxpose.xlu0.b32.cont [3/16] %v65, 128
    %70 = vxpose.xlu0.b32.cont [4/16] %v66, 128
    %71 = vxpose.xlu0.b32.cont [5/16] 0.0, 128
    %72 = vxpose.xlu0.b32.cont [6/16] 0.0, 128
    %73 = vxpose.xlu0.b32.cont [7/16] 0.0, 128
    %74 = vxpose.xlu0.b32.cont [8/16] 0.0, 128
    %75 = vxpose.xlu0.b32.cont [9/16] 0.0, 128
    %76 = vxpose.xlu0.b32.cont [10/16] 0.0, 128
    %77 = vxpose.xlu0.b32.cont [11/16] 0.0, 128
    %78 = vxpose.xlu0.b32.cont [12/16] 0.0, 128
    %79 = vxpose.xlu0.b32.cont [13/16] 0.0, 128
    %80 = vxpose.xlu0.b32.cont [14/16] 0.0, 128
    %81 = vxpose.xlu0.b32.cont [15/16] 0.0, 128
    %82 = vxpose.xlu0.b32.end [16/16] 0.0, 128
    %v83 = vpop.trf.xlu0
    %v84 = vpop.trf.xlu0
    %v85 = vpop.trf.xlu0
    %v86 = vpop.trf.xlu0
    %v87 = vpop.trf.xlu0
    %v88 = vpop.trf.xlu0
    %v89 = vpop.trf.xlu0
    %v90 = vpop.trf.xlu0
    %v91 = vpop.trf.xlu0
    %v92 = vpop.trf.xlu0
    %v93 = vpop.trf.xlu0
    %v94 = vpop.trf.xlu0
    %v95 = vpop.trf.xlu0
    %v96 = vpop.trf.xlu0
    %v97 = vpop.trf.xlu0
    %v98 = vpop.trf.xlu0
    %s99 = scalar_lea.vmem [#allocation3], 32
    %v100 = vld [vmem:[%s99] sm:$0xff]
    %v101 = vld [vmem:[%s99 + $0x8] sm:$0xff]
    %v102 = vld [vmem:[%s99 + $0x10] sm:$0xff]
    %v103 = vld [vmem:[%s99 + $0x18] sm:$0xff]
    %104 = vxpose.xlu0.b32.start [1/16] %v100, 128
    %105 = vxpose.xlu0.b32.cont [2/16] %v101, 128
    %106 = vxpose.xlu0.b32.cont [3/16] %v102, 128
    %107 = vxpose.xlu0.b32.cont [4/16] %v103, 128
    %108 = vxpose.xlu0.b32.cont [5/16] 0.0, 128
    %109 = vxpose.xlu0.b32.cont [6/16] 0.0, 128
    %110 = vxpose.xlu0.b32.cont [7/16] 0.0, 128
    %111 = vxpose.xlu0.b32.cont [8/16] 0.0, 128
    %112 = vxpose.xlu0.b32.cont [9/16] 0.0, 128
    %113 = vxpose.xlu0.b32.cont [10/16] 0.0, 128
    %114 = vxpose.xlu0.b32.cont [11/16] 0.0, 128
    %115 = vxpose.xlu0.b32.cont [12/16] 0.0, 128
    %116 = vxpose.xlu0.b32.cont [13/16] 0.0, 128
    %117 = vxpose.xlu0.b32.cont [14/16] 0.0, 128
    %118 = vxpose.xlu0.b32.cont [15/16] 0.0, 128
    %119 = vxpose.xlu0.b32.end [16/16] 0.0, 128
    %v120 = vpop.trf.xlu0
    %v121 = vpop.trf.xlu0
    %v122 = vpop.trf.xlu0
    %v123 = vpop.trf.xlu0
    %v124 = vpop.trf.xlu0
    %v125 = vpop.trf.xlu0
    %v126 = vpop.trf.xlu0
    %v127 = vpop.trf.xlu0
    %v128 = vpop.trf.xlu0
    %v129 = vpop.trf.xlu0
    %v130 = vpop.trf.xlu0
    %v131 = vpop.trf.xlu0
    %v132 = vpop.trf.xlu0
    %v133 = vpop.trf.xlu0
    %v134 = vpop.trf.xlu0
    %v135 = vpop.trf.xlu0
    %v136 = vpack.c.bf16 %v84, %v83
    %v137 = vpack.c.bf16 %v86, %v85
    %v138 = vpack.c.bf16 %v88, %v87
    %v139 = vpack.c.bf16 %v90, %v89
    %v140 = vpack.c.bf16 %v121, %v120
    %v141 = vpack.c.bf16 %v123, %v122
    %v142 = vpack.c.bf16 %v125, %v124
    %v143 = vpack.c.bf16 %v127, %v126
    %v144 = vld [vmem:[#allocation6] sm:$0xf]
    %v145 = vld [vmem:[#allocation6 + $0x4] sm:$0xf]
    %v146 = vld [vmem:[#allocation6 + $0x8] sm:$0xf]
    %v147 = vld [vmem:[#allocation6 + $0xc] sm:$0xf]
    %v152 = vunpack.c.l.b16 %v144
    %v153 = vunpack.c.l.b16 %v145
    %v154 = vunpack.c.l.b16 %v146
    %v155 = vunpack.c.l.b16 %v147
    %v156 = vpack.c.b16 %v153, %v152
    %v157 = vpack.c.b16 %v155, %v154
    %vm160 = vcmask 261120
    %v162 = vsel %vm160, %v136, 0
    %v165 = vsel %vm160, %v137, 0
    %v168 = vsel %vm160, %v138, 0
    %v171 = vsel %vm160, %v139, 0
    %v174 = vsel %vm160, %v140, 0
    %v177 = vsel %vm160, %v141, 0
    %v180 = vsel %vm160, %v142, 0
    %v183 = vsel %vm160, %v143, 0
    %185 = vmatprep.subr.bf16.mxu0 0
    %186 = vmatpush1.bf16.msra.mxu0 %v156
    %187 = vmatprep.subr.bf16.mxu0 0
    %188 = vmatpush1.bf16.msra.mxu0 %v157
    %189 = vmatprep.subr.bf16.mxu0 0
    %190 = vmatpush1.bf16.msra.mxu0 0
    %191 = vmatprep.subr.bf16.mxu0 0
    %192 = vmatpush1.bf16.msra.mxu0 0
    %193 = vmatprep.subr.bf16.mxu0 0
    %194 = vmatpush1.bf16.msra.mxu0 0
    %195 = vmatprep.subr.bf16.mxu0 0
    %196 = vmatpush1.bf16.msra.mxu0 0
    %197 = vmatprep.subr.bf16.mxu0 0
    %198 = vmatpush1.bf16.msra.mxu0 0
    %199 = vmatprep.subr.bf16.mxu0 0
    %200 = vmatpush1.bf16.msra.mxu0 0
    %201 = vmatprep.subr.bf16.mxu0 0
    %202 = vmatpush1.bf16.msra.mxu0 0
    %203 = vmatprep.subr.bf16.mxu0 0
    %204 = vmatpush1.bf16.msra.mxu0 0
    %205 = vmatprep.subr.bf16.mxu0 0
    %206 = vmatpush1.bf16.msra.mxu0 0
    %207 = vmatprep.subr.bf16.mxu0 0
    %208 = vmatpush1.bf16.msra.mxu0 0
    %209 = vmatprep.subr.bf16.mxu0 0
    %210 = vmatpush1.bf16.msra.mxu0 0
    %211 = vmatprep.subr.bf16.mxu0 0
    %212 = vmatpush1.bf16.msra.mxu0 0
    %213 = vmatprep.subr.bf16.mxu0 0
    %214 = vmatpush1.bf16.msra.mxu0 0
    %215 = vmatprep.subr.bf16.mxu0 0
    %216 = vmatpush1.bf16.msra.mxu0 0
    %217 = vmatprep.mubr.bf16.mxu0 0
    %218 = vmatmul.mubr.bf16.gmra.mrb[0].mxu0 %v162
    %v219 = vpop.f32.mrb[0].mxu0
    %v220 = vadd.f32 0.0, %v219
    %v221 = vpop.f32.mrb[0].mxu0
    %v222 = vpop.f32.mrb[0].mxu0
    %v223 = vadd.f32 0.0, %v222
    %v224 = vpop.f32.mrb[0].mxu0
    %225 = vmatprep.mubr.bf16.mxu0 0
    %226 = vmatmul.mubr.bf16.gmra.mrb[0].mxu0 %v165
    %v227 = vpop.f32.mrb[0].mxu0
    %v228 = vadd.f32 0.0, %v227
    %v229 = vpop.f32.mrb[0].mxu0
    %v230 = vpop.f32.mrb[0].mxu0
    %v231 = vadd.f32 0.0, %v230
    %v232 = vpop.f32.mrb[0].mxu0
    %233 = vmatprep.mubr.bf16.mxu0 0
    %234 = vmatmul.mubr.bf16.gmra.mrb[0].mxu0 %v168
    %v235 = vpop.f32.mrb[0].mxu0
    %v236 = vadd.f32 0.0, %v235
    %v237 = vpop.f32.mrb[0].mxu0
    %v238 = vpop.f32.mrb[0].mxu0
    %v239 = vadd.f32 0.0, %v238
    %v240 = vpop.f32.mrb[0].mxu0
    %241 = vmatprep.mubr.bf16.mxu0 0
    %242 = vmatmul.mubr.bf16.gmra.mrb[0].mxu0 %v171
    %v243 = vpop.f32.mrb[0].mxu0
    %v244 = vadd.f32 0.0, %v243
    %v245 = vpop.f32.mrb[0].mxu0
    %v246 = vpop.f32.mrb[0].mxu0
    %v247 = vadd.f32 0.0, %v246
    %v248 = vpop.f32.mrb[0].mxu0
    %249 = vmatprep.mubr.bf16.mxu0 0
    %250 = vmatmul.mubr.bf16.gmra.mrb[0].mxu0 %v174
    %v251 = vpop.f32.mrb[0].mxu0
    %v252 = vadd.f32 0.0, %v251
    %v253 = vpop.f32.mrb[0].mxu0
    %v254 = vpop.f32.mrb[0].mxu0
    %v255 = vadd.f32 0.0, %v254
    %v256 = vpop.f32.mrb[0].mxu0
    %257 = vmatprep.mubr.bf16.mxu0 0
    %258 = vmatmul.mubr.bf16.gmra.mrb[0].mxu0 %v177
    %v259 = vpop.f32.mrb[0].mxu0
    %v260 = vadd.f32 0.0, %v259
    %v261 = vpop.f32.mrb[0].mxu0
    %v262 = vpop.f32.mrb[0].mxu0
    %v263 = vadd.f32 0.0, %v262
    %v264 = vpop.f32.mrb[0].mxu0
    %265 = vmatprep.mubr.bf16.mxu0 0
    %266 = vmatmul.mubr.bf16.gmra.mrb[0].mxu0 %v180
    %v267 = vpop.f32.mrb[0].mxu0
    %v268 = vadd.f32 0.0, %v267
    %v269 = vpop.f32.mrb[0].mxu0
    %v270 = vpop.f32.mrb[0].mxu0
    %v271 = vadd.f32 0.0, %v270
    %v272 = vpop.f32.mrb[0].mxu0
    %273 = vmatprep.mubr.bf16.mxu0 0
    %274 = vmatmul.mubr.bf16.gmra.mrb[0].mxu0 %v183
    %v275 = vpop.f32.mrb[0].mxu0
    %v276 = vadd.f32 0.0, %v275
    %v277 = vpop.f32.mrb[0].mxu0
    %v278 = vpop.f32.mrb[0].mxu0
    %v279 = vadd.f32 0.0, %v278
    %v280 = vpop.f32.mrb[0].mxu0
    %281 = vdwg.mxu0
    %v282 = vpack.c.bf16 %v223, %v220
    %v283 = vpack.c.bf16 %v231, %v228
    %v284 = vpack.c.bf16 %v239, %v236
    %v285 = vpack.c.bf16 %v247, %v244
    %v286 = vpack.c.bf16 %v255, %v252
    %v287 = vpack.c.bf16 %v263, %v260
    %v288 = vpack.c.bf16 %v271, %v268
    %v289 = vpack.c.bf16 %v279, %v276
    %294 = vrot.lane.b32.xlu0 %v282, 124
    %v295 = vpop.permute.xlu0 %294
    %296 = vrot.lane.b32.xlu0 %v283, 124
    %v297 = vpop.permute.xlu0 %296
    %298 = vrot.lane.b32.xlu0 %v284, 124
    %v299 = vpop.permute.xlu0 %298
    %300 = vrot.lane.b32.xlu0 %v285, 124
    %v301 = vpop.permute.xlu0 %300
    %vm302 = vcmask 31744
    %v304 = vsel %vm302, %v282, 0
    %v307 = vsel %vm302, %v283, 0
    %v310 = vsel %vm302, %v284, 0
    %v313 = vsel %vm302, %v285, 0
    %v316 = vsel %vm302, %v295, 0
    %v319 = vsel %vm302, %v297, 0
    %v322 = vsel %vm302, %v299, 0
    %v325 = vsel %vm302, %v301, 0
    %327 = vmatprep.subr.bf16.mxu0 0
    %328 = vmatpush1.bf16.xpose.msra.mxu0 %v316
    %329 = vmatprep.subr.bf16.mxu0 0
    %330 = vmatpush1.bf16.xpose.msra.mxu0 %v319
    %331 = vmatprep.subr.bf16.mxu0 0
    %332 = vmatpush1.bf16.xpose.msra.mxu0 %v322
    %333 = vmatprep.subr.bf16.mxu0 0
    %334 = vmatpush1.bf16.xpose.msra.mxu0 %v325
    %335 = vmatprep.subr.bf16.mxu0 0
    %336 = vmatpush1.bf16.xpose.msra.mxu0 0
    %337 = vmatprep.subr.bf16.mxu0 0
    %338 = vmatpush1.bf16.xpose.msra.mxu0 0
    %339 = vmatprep.subr.bf16.mxu0 0
    %340 = vmatpush1.bf16.xpose.msra.mxu0 0
    %341 = vmatprep.subr.bf16.mxu0 0
    %342 = vmatpush1.bf16.xpose.msra.mxu0 0
    %343 = vmatprep.subr.bf16.mxu0 0
    %344 = vmatpush1.bf16.xpose.msra.mxu0 0
    %345 = vmatprep.subr.bf16.mxu0 0
    %346 = vmatpush1.bf16.xpose.msra.mxu0 0
    %347 = vmatprep.subr.bf16.mxu0 0
    %348 = vmatpush1.bf16.xpose.msra.mxu0 0
    %349 = vmatprep.subr.bf16.mxu0 0
    %350 = vmatpush1.bf16.xpose.msra.mxu0 0
    %351 = vmatprep.subr.bf16.mxu0 0
    %352 = vmatpush1.bf16.xpose.msra.mxu0 0
    %353 = vmatprep.subr.bf16.mxu0 0
    %354 = vmatpush1.bf16.xpose.msra.mxu0 0
    %355 = vmatprep.subr.bf16.mxu0 0
    %356 = vmatpush1.bf16.xpose.msra.mxu0 0
    %357 = vmatprep.subr.bf16.mxu0 0
    %358 = vmatpush1.bf16.xpose.msra.mxu0 0
    %359 = vmatprep.mubr.bf16.mxu0 0
    %360 = vmatmul.mubr.bf16.gmra.mrb[0].mxu0 %v304
    %v361 = vpop.f32.mrb[0].mxu0
    %v362 = vadd.f32 0.0, %v361
    %v363 = vpop.f32.mrb[0].mxu0
    %v364 = vpop.f32.mrb[0].mxu0
    %v365 = vadd.f32 0.0, %v364
    %v366 = vpop.f32.mrb[0].mxu0
    %367 = vmatprep.mubr.bf16.mxu0 0
    %368 = vmatmul.mubr.bf16.gmra.mrb[0].mxu0 %v307
    %v369 = vpop.f32.mrb[0].mxu0
    %v370 = vadd.f32 0.0, %v369
    %v371 = vpop.f32.mrb[0].mxu0
    %v372 = vpop.f32.mrb[0].mxu0
    %v373 = vadd.f32 0.0, %v372
    %v374 = vpop.f32.mrb[0].mxu0
    %375 = vmatprep.mubr.bf16.mxu0 0
    %376 = vmatmul.mubr.bf16.gmra.mrb[0].mxu0 %v310
    %v377 = vpop.f32.mrb[0].mxu0
    %v378 = vadd.f32 0.0, %v377
    %v379 = vpop.f32.mrb[0].mxu0
    %v380 = vpop.f32.mrb[0].mxu0
    %v381 = vadd.f32 0.0, %v380
    %v382 = vpop.f32.mrb[0].mxu0
    %383 = vmatprep.mubr.bf16.mxu0 0
    %384 = vmatmul.mubr.bf16.gmra.mrb[0].mxu0 %v313
    %v385 = vpop.f32.mrb[0].mxu0
    %v386 = vadd.f32 0.0, %v385
    %v387 = vpop.f32.mrb[0].mxu0
    %v388 = vpop.f32.mrb[0].mxu0
    %v389 = vadd.f32 0.0, %v388
    %v390 = vpop.f32.mrb[0].mxu0
    %391 = vdwg.mxu0
    %vm392 = vcmask 523264
    %v393 = vsel %vm392, %v362, -inf
    %394 = vmax.xlane.f32.xlu0 %v393
    %v395 = vpop.xlane.xlu0 %394
    %v396 = vsel %vm392, %v365, -inf
    %397 = vmax.xlane.f32.xlu0 %v396
    %v398 = vpop.xlane.xlu0 %397
    %v399 = vsel %vm392, %v370, -inf
    %400 = vmax.xlane.f32.xlu0 %v399
    %v401 = vpop.xlane.xlu0 %400
    %v402 = vsel %vm392, %v373, -inf
    %403 = vmax.xlane.f32.xlu0 %v402
    %v404 = vpop.xlane.xlu0 %403
    %v405 = vsel %vm392, %v378, -inf
    %406 = vmax.xlane.f32.xlu0 %v405
    %v407 = vpop.xlane.xlu0 %406
    %v408 = vsel %vm392, %v381, -inf
    %409 = vmax.xlane.f32.xlu0 %v408
    %v410 = vpop.xlane.xlu0 %409
    %v411 = vsel %vm392, %v386, -inf
    %412 = vmax.xlane.f32.xlu0 %v411
    %v413 = vpop.xlane.xlu0 %412
    %v414 = vsel %vm392, %v389, -inf
    %415 = vmax.xlane.f32.xlu0 %v414
    %v416 = vpop.xlane.xlu0 %415
    %v417 = vsub.f32 %v362, %v395
    %v418 = vsub.f32 %v365, %v398
    %v419 = vsub.f32 %v370, %v401
    %v420 = vsub.f32 %v373, %v404
    %v421 = vsub.f32 %v378, %v407
    %v422 = vsub.f32 %v381, %v410
    %v423 = vsub.f32 %v386, %v413
    %v424 = vsub.f32 %v389, %v416
    %v425 = vmul.f32 %v417, 1.442695
    %v426 = vpow.pop %v425
    %v427 = vmul.f32 %v418, 1.442695
    %v428 = vpow.pop %v427
    %v429 = vmul.f32 %v419, 1.442695
    %v430 = vpow.pop %v429
    %v431 = vmul.f32 %v420, 1.442695
    %v432 = vpow.pop %v431
    %v433 = vmul.f32 %v421, 1.442695
    %v434 = vpow.pop %v433
    %v435 = vmul.f32 %v422, 1.442695
    %v436 = vpow.pop %v435
    %v437 = vmul.f32 %v423, 1.442695
    %v438 = vpow.pop %v437
    %v439 = vmul.f32 %v424, 1.442695
    %v440 = vpow.pop %v439
    %v441 = vsel %vm392, %v426, 0.0
    %442 = vadd.xlane.f32.xlu0 %v441
    %v443 = vpop.xlane.xlu0 %442
    %v444 = vsel %vm392, %v428, 0.0
    %445 = vadd.xlane.f32.xlu0 %v444
    %v446 = vpop.xlane.xlu0 %445
    %v447 = vsel %vm392, %v430, 0.0
    %448 = vadd.xlane.f32.xlu0 %v447
    %v449 = vpop.xlane.xlu0 %448
    %v450 = vsel %vm392, %v432, 0.0
    %451 = vadd.xlane.f32.xlu0 %v450
    %v452 = vpop.xlane.xlu0 %451
    %v453 = vsel %vm392, %v434, 0.0
    %454 = vadd.xlane.f32.xlu0 %v453
    %v455 = vpop.xlane.xlu0 %454
    %v456 = vsel %vm392, %v436, 0.0
    %457 = vadd.xlane.f32.xlu0 %v456
    %v458 = vpop.xlane.xlu0 %457
    %v459 = vsel %vm392, %v438, 0.0
    %460 = vadd.xlane.f32.xlu0 %v459
    %v461 = vpop.xlane.xlu0 %460
    %v462 = vsel %vm392, %v440, 0.0
    %463 = vadd.xlane.f32.xlu0 %v462
    %v464 = vpop.xlane.xlu0 %463
    %v465 = vrcp.pop %v443
    %v466 = vrcp.pop %v446
    %v467 = vrcp.pop %v449
    %v468 = vrcp.pop %v452
    %v469 = vrcp.pop %v455
    %v470 = vrcp.pop %v458
    %v471 = vrcp.pop %v461
    %v472 = vrcp.pop %v464
    %v473 = vmul.f32 %v426, %v465
    %v474 = vmul.f32 %v428, %v466
    %v475 = vmul.f32 %v430, %v467
    %v476 = vmul.f32 %v432, %v468
    %v477 = vmul.f32 %v434, %v469
    %v478 = vmul.f32 %v436, %v470
    %v479 = vmul.f32 %v438, %v471
    %v480 = vmul.f32 %v440, %v472
    %481 = vst.msk [vmem:[#allocation10] sm:$0xff] %vm392, %v473
    %482 = vst.msk [vmem:[#allocation10 + $0x8] sm:$0xff] %vm392, %v474
    %483 = vst.msk [vmem:[#allocation10 + $0x10] sm:$0xff] %vm392, %v475
    %484 = vst.msk [vmem:[#allocation10 + $0x18] sm:$0xff] %vm392, %v476
    %485 = vst.msk [vmem:[#allocation10 + $0x20] sm:$0xff] %vm392, %v477
    %486 = vst.msk [vmem:[#allocation10 + $0x28] sm:$0xff] %vm392, %v478
    %487 = vst.msk [vmem:[#allocation10 + $0x30] sm:$0xff] %vm392, %v479
    %488 = vst.msk [vmem:[#allocation10 + $0x38] sm:$0xff] %vm392, %v480
    %v489 = vpack.c.bf16 %v474, %v473
    %v490 = vpack.c.bf16 %v476, %v475
    %v491 = vpack.c.bf16 %v478, %v477
    %v492 = vpack.c.bf16 %v480, %v479
    %493 = vrot.lane.b32.xlu0 %v282, 120
    %v494 = vpop.permute.xlu0 %493
    %495 = vrot.lane.b32.xlu0 %v283, 120
    %v496 = vpop.permute.xlu0 %495
    %497 = vrot.lane.b32.xlu0 %v284, 120
    %v498 = vpop.permute.xlu0 %497
    %499 = vrot.lane.b32.xlu0 %v285, 120
    %v500 = vpop.permute.xlu0 %499
    %v506 = vsel %vm392, %v489, 0
    %v509 = vsel %vm392, %v490, 0
    %v512 = vsel %vm392, %v491, 0
    %v515 = vsel %vm392, %v492, 0
    %517 = vmatprep.subr.bf16.mxu0 0
    %518 = vmatpush1.bf16.msra.mxu0 %v494
    %519 = vmatprep.subr.bf16.mxu0 0
    %520 = vmatpush1.bf16.msra.mxu0 %v496
    %521 = vmatprep.subr.bf16.mxu0 0
    %522 = vmatpush1.bf16.msra.mxu0 %v498
    %523 = vmatprep.subr.bf16.mxu0 0
    %524 = vmatpush1.bf16.msra.mxu0 %v500
    %525 = vmatprep.subr.bf16.mxu0 0
    %526 = vmatpush1.bf16.msra.mxu0 0
    %527 = vmatprep.subr.bf16.mxu0 0
    %528 = vmatpush1.bf16.msra.mxu0 0
    %529 = vmatprep.subr.bf16.mxu0 0
    %530 = vmatpush1.bf16.msra.mxu0 0
    %531 = vmatprep.subr.bf16.mxu0 0
    %532 = vmatpush1.bf16.msra.mxu0 0
    %533 = vmatprep.subr.bf16.mxu0 0
    %534 = vmatpush1.bf16.msra.mxu0 0
    %535 = vmatprep.subr.bf16.mxu0 0
    %536 = vmatpush1.bf16.msra.mxu0 0
    %537 = vmatprep.subr.bf16.mxu0 0
    %538 = vmatpush1.bf16.msra.mxu0 0
    %539 = vmatprep.subr.bf16.mxu0 0
    %540 = vmatpush1.bf16.msra.mxu0 0
    %541 = vmatprep.subr.bf16.mxu0 0
    %542 = vmatpush1.bf16.msra.mxu0 0
    %543 = vmatprep.subr.bf16.mxu0 0
    %544 = vmatpush1.bf16.msra.mxu0 0
    %545 = vmatprep.subr.bf16.mxu0 0
    %546 = vmatpush1.bf16.msra.mxu0 0
    %547 = vmatprep.subr.bf16.mxu0 0
    %548 = vmatpush1.bf16.msra.mxu0 0
    %549 = vmatprep.mubr.bf16.mxu0 0
    %550 = vmatmul.mubr.bf16.gmra.mrb[0].mxu0 %v506
    %v551 = vpop.f32.mrb[0].mxu0
    %v552 = vadd.f32 0.0, %v551
    %v553 = vpop.f32.mrb[0].mxu0
    %v554 = vpop.f32.mrb[0].mxu0
    %v555 = vadd.f32 0.0, %v554
    %v556 = vpop.f32.mrb[0].mxu0
    %557 = vmatprep.mubr.bf16.mxu0 0
    %558 = vmatmul.mubr.bf16.gmra.mrb[0].mxu0 %v509
    %v559 = vpop.f32.mrb[0].mxu0
    %v560 = vadd.f32 0.0, %v559
    %v561 = vpop.f32.mrb[0].mxu0
    %v562 = vpop.f32.mrb[0].mxu0
    %v563 = vadd.f32 0.0, %v562
    %v564 = vpop.f32.mrb[0].mxu0
    %565 = vmatprep.mubr.bf16.mxu0 0
    %566 = vmatmul.mubr.bf16.gmra.mrb[0].mxu0 %v512
    %v567 = vpop.f32.mrb[0].mxu0
    %v568 = vadd.f32 0.0, %v567
    %v569 = vpop.f32.mrb[0].mxu0
    %v570 = vpop.f32.mrb[0].mxu0
    %v571 = vadd.f32 0.0, %v570
    %v572 = vpop.f32.mrb[0].mxu0
    %573 = vmatprep.mubr.bf16.mxu0 0
    %574 = vmatmul.mubr.bf16.gmra.mrb[0].mxu0 %v515
    %v575 = vpop.f32.mrb[0].mxu0
    %v576 = vadd.f32 0.0, %v575
    %v577 = vpop.f32.mrb[0].mxu0
    %v578 = vpop.f32.mrb[0].mxu0
    %v579 = vadd.f32 0.0, %v578
    %v580 = vpop.f32.mrb[0].mxu0
    %581 = vdwg.mxu0
    %v582 = vpack.c.bf16 %v555, %v552
    %v583 = vpack.c.bf16 %v563, %v560
    %v584 = vpack.c.bf16 %v571, %v568
    %v585 = vpack.c.bf16 %v579, %v576
    %586 = vst.msk [vmem:[#allocation2] sm:$0xff] %vm302, %v582
    %587 = vst.msk [vmem:[#allocation2 + $0x8] sm:$0xff] %vm302, %v583
    %588 = vst.msk [vmem:[#allocation2 + $0x10] sm:$0xff] %vm302, %v584
    %589 = vst.msk [vmem:[#allocation2 + $0x18] sm:$0xff] %vm302, %v585
    %590 = vrot.lane.b32.xlu0 %v282, 116
    %v591 = vpop.permute.xlu0 %590
    %592 = vrot.lane.b32.xlu0 %v283, 116
    %v593 = vpop.permute.xlu0 %592
    %594 = vrot.lane.b32.xlu0 %v284, 116
    %v595 = vpop.permute.xlu0 %594
    %596 = vrot.lane.b32.xlu0 %v285, 116
    %v597 = vpop.permute.xlu0 %596
    %598 = vrot.lane.b32.xlu0 %v282, 112
    %v599 = vpop.permute.xlu0 %598
    %600 = vrot.lane.b32.xlu0 %v283, 112
    %v601 = vpop.permute.xlu0 %600
    %602 = vrot.lane.b32.xlu0 %v284, 112
    %v603 = vpop.permute.xlu0 %602
    %604 = vrot.lane.b32.xlu0 %v285, 112
    %v605 = vpop.permute.xlu0 %604
    %v607 = vsel %vm302, %v591, 0
    %v610 = vsel %vm302, %v593, 0
    %v613 = vsel %vm302, %v595, 0
    %v616 = vsel %vm302, %v597, 0
    %v619 = vsel %vm302, %v599, 0
    %v622 = vsel %vm302, %v601, 0
    %v625 = vsel %vm302, %v603, 0
    %v628 = vsel %vm302, %v605, 0
    %630 = vmatprep.subr.bf16.mxu0 0
    %631 = vmatpush1.bf16.xpose.msra.mxu0 %v619
    %632 = vmatprep.subr.bf16.mxu0 0
    %633 = vmatpush1.bf16.xpose.msra.mxu0 %v622
    %634 = vmatprep.subr.bf16.mxu0 0
    %635 = vmatpush1.bf16.xpose.msra.mxu0 %v625
    %636 = vmatprep.subr.bf16.mxu0 0
    %637 = vmatpush1.bf16.xpose.msra.mxu0 %v628
    %638 = vmatprep.subr.bf16.mxu0 0
    %639 = vmatpush1.bf16.xpose.msra.mxu0 0
    %640 = vmatprep.subr.bf16.mxu0 0
    %641 = vmatpush1.bf16.xpose.msra.mxu0 0
    %642 = vmatprep.subr.bf16.mxu0 0
    %643 = vmatpush1.bf16.xpose.msra.mxu0 0
    %644 = vmatprep.subr.bf16.mxu0 0
    %645 = vmatpush1.bf16.xpose.msra.mxu0 0
    %646 = vmatprep.subr.bf16.mxu0 0
    %647 = vmatpush1.bf16.xpose.msra.mxu0 0
    %648 = vmatprep.subr.bf16.mxu0 0
    %649 = vmatpush1.bf16.xpose.msra.mxu0 0
    %650 = vmatprep.subr.bf16.mxu0 0
    %651 = vmatpush1.bf16.xpose.msra.mxu0 0
    %652 = vmatprep.subr.bf16.mxu0 0
    %653 = vmatpush1.bf16.xpose.msra.mxu0 0
    %654 = vmatprep.subr.bf16.mxu0 0
    %655 = vmatpush1.bf16.xpose.msra.mxu0 0
    %656 = vmatprep.subr.bf16.mxu0 0
    %657 = vmatpush1.bf16.xpose.msra.mxu0 0
    %658 = vmatprep.subr.bf16.mxu0 0
    %659 = vmatpush1.bf16.xpose.msra.mxu0 0
    %660 = vmatprep.subr.bf16.mxu0 0
    %661 = vmatpush1.bf16.xpose.msra.mxu0 0
    %662 = vmatprep.mubr.bf16.mxu0 0
    %663 = vmatmul.mubr.bf16.gmra.mrb[0].mxu0 %v607
    %v664 = vpop.f32.mrb[0].mxu0
    %v665 = vadd.f32 0.0, %v664
    %v666 = vpop.f32.mrb[0].mxu0
    %v667 = vpop.f32.mrb[0].mxu0
    %v668 = vadd.f32 0.0, %v667
    %v669 = vpop.f32.mrb[0].mxu0
    %670 = vmatprep.mubr.bf16.mxu0 0
    %671 = vmatmul.mubr.bf16.gmra.mrb[0].mxu0 %v610
    %v672 = vpop.f32.mrb[0].mxu0
    %v673 = vadd.f32 0.0, %v672
    %v674 = vpop.f32.mrb[0].mxu0
    %v675 = vpop.f32.mrb[0].mxu0
    %v676 = vadd.f32 0.0, %v675
    %v677 = vpop.f32.mrb[0].mxu0
    %678 = vmatprep.mubr.bf16.mxu0 0
    %679 = vmatmul.mubr.bf16.gmra.mrb[0].mxu0 %v613
    %v680 = vpop.f32.mrb[0].mxu0
    %v681 = vadd.f32 0.0, %v680
    %v682 = vpop.f32.mrb[0].mxu0
    %v683 = vpop.f32.mrb[0].mxu0
    %v684 = vadd.f32 0.0, %v683
    %v685 = vpop.f32.mrb[0].mxu0
    %686 = vmatprep.mubr.bf16.mxu0 0
    %687 = vmatmul.mubr.bf16.gmra.mrb[0].mxu0 %v616
    %v688 = vpop.f32.mrb[0].mxu0
    %v689 = vadd.f32 0.0, %v688
    %v690 = vpop.f32.mrb[0].mxu0
    %v691 = vpop.f32.mrb[0].mxu0
    %v692 = vadd.f32 0.0, %v691
    %v693 = vpop.f32.mrb[0].mxu0
    %694 = vdwg.mxu0
    %v695 = vsel %vm392, %v665, -inf
    %696 = vmax.xlane.f32.xlu0 %v695
    %v697 = vpop.xlane.xlu0 %696
    %v698 = vsel %vm392, %v668, -inf
    %699 = vmax.xlane.f32.xlu0 %v698
    %v700 = vpop.xlane.xlu0 %699
    %v701 = vsel %vm392, %v673, -inf
    %702 = vmax.xlane.f32.xlu0 %v701
    %v703 = vpop.xlane.xlu0 %702
    %v704 = vsel %vm392, %v676, -inf
    %705 = vmax.xlane.f32.xlu0 %v704
    %v706 = vpop.xlane.xlu0 %705
    %v707 = vsel %vm392, %v681, -inf
    %708 = vmax.xlane.f32.xlu0 %v707
    %v709 = vpop.xlane.xlu0 %708
    %v710 = vsel %vm392, %v684, -inf
    %711 = vmax.xlane.f32.xlu0 %v710
    %v712 = vpop.xlane.xlu0 %711
    %v713 = vsel %vm392, %v689, -inf
    %714 = vmax.xlane.f32.xlu0 %v713
    %v715 = vpop.xlane.xlu0 %714
    %v716 = vsel %vm392, %v692, -inf
    %717 = vmax.xlane.f32.xlu0 %v716
    %v718 = vpop.xlane.xlu0 %717
    %v719 = vsub.f32 %v665, %v697
    %v720 = vsub.f32 %v668, %v700
    %v721 = vsub.f32 %v673, %v703
    %v722 = vsub.f32 %v676, %v706
    %v723 = vsub.f32 %v681, %v709
    %v724 = vsub.f32 %v684, %v712
    %v725 = vsub.f32 %v689, %v715
    %v726 = vsub.f32 %v692, %v718
    %v727 = vmul.f32 %v719, 1.442695
    %v728 = vpow.pop %v727
    %v729 = vmul.f32 %v720, 1.442695
    %v730 = vpow.pop %v729
    %v731 = vmul.f32 %v721, 1.442695
    %v732 = vpow.pop %v731
    %v733 = vmul.f32 %v722, 1.442695
    %v734 = vpow.pop %v733
    %v735 = vmul.f32 %v723, 1.442695
    %v736 = vpow.pop %v735
    %v737 = vmul.f32 %v724, 1.442695
    %v738 = vpow.pop %v737
    %v739 = vmul.f32 %v725, 1.442695
    %v740 = vpow.pop %v739
    %v741 = vmul.f32 %v726, 1.442695
    %v742 = vpow.pop %v741
    %v743 = vsel %vm392, %v728, 0.0
    %744 = vadd.xlane.f32.xlu0 %v743
    %v745 = vpop.xlane.xlu0 %744
    %v746 = vsel %vm392, %v730, 0.0
    %747 = vadd.xlane.f32.xlu0 %v746
    %v748 = vpop.xlane.xlu0 %747
    %v749 = vsel %vm392, %v732, 0.0
    %750 = vadd.xlane.f32.xlu0 %v749
    %v751 = vpop.xlane.xlu0 %750
    %v752 = vsel %vm392, %v734, 0.0
    %753 = vadd.xlane.f32.xlu0 %v752
    %v754 = vpop.xlane.xlu0 %753
    %v755 = vsel %vm392, %v736, 0.0
    %756 = vadd.xlane.f32.xlu0 %v755
    %v757 = vpop.xlane.xlu0 %756
    %v758 = vsel %vm392, %v738, 0.0
    %759 = vadd.xlane.f32.xlu0 %v758
    %v760 = vpop.xlane.xlu0 %759
    %v761 = vsel %vm392, %v740, 0.0
    %762 = vadd.xlane.f32.xlu0 %v761
    %v763 = vpop.xlane.xlu0 %762
    %v764 = vsel %vm392, %v742, 0.0
    %765 = vadd.xlane.f32.xlu0 %v764
    %v766 = vpop.xlane.xlu0 %765
    %v767 = vrcp.pop %v745
    %v768 = vrcp.pop %v748
    %v769 = vrcp.pop %v751
    %v770 = vrcp.pop %v754
    %v771 = vrcp.pop %v757
    %v772 = vrcp.pop %v760
    %v773 = vrcp.pop %v763
    %v774 = vrcp.pop %v766
    %v775 = vmul.f32 %v728, %v767
    %v776 = vmul.f32 %v730, %v768
    %v777 = vmul.f32 %v732, %v769
    %v778 = vmul.f32 %v734, %v770
    %v779 = vmul.f32 %v736, %v771
    %v780 = vmul.f32 %v738, %v772
    %v781 = vmul.f32 %v740, %v773
    %v782 = vmul.f32 %v742, %v774
    %s783 = scalar_lea.vmem [#allocation10], 64
    %784 = vst.msk [vmem:[%s783] sm:$0xff] %vm392, %v775
    %785 = vst.msk [vmem:[%s783 + $0x8] sm:$0xff] %vm392, %v776
    %786 = vst.msk [vmem:[%s783 + $0x10] sm:$0xff] %vm392, %v777
    %787 = vst.msk [vmem:[%s783 + $0x18] sm:$0xff] %vm392, %v778
    %788 = vst.msk [vmem:[%s783 + $0x20] sm:$0xff] %vm392, %v779
    %789 = vst.msk [vmem:[%s783 + $0x28] sm:$0xff] %vm392, %v780
    %790 = vst.msk [vmem:[%s783 + $0x30] sm:$0xff] %vm392, %v781
    %791 = vst.msk [vmem:[%s783 + $0x38] sm:$0xff] %vm392, %v782
    %v792 = vpack.c.bf16 %v776, %v775
    %v793 = vpack.c.bf16 %v778, %v777
    %v794 = vpack.c.bf16 %v780, %v779
    %v795 = vpack.c.bf16 %v782, %v781
    %796 = vrot.lane.b32.xlu0 %v282, 108
    %v797 = vpop.permute.xlu0 %796
    %798 = vrot.lane.b32.xlu0 %v283, 108
    %v799 = vpop.permute.xlu0 %798
    %800 = vrot.lane.b32.xlu0 %v284, 108
    %v801 = vpop.permute.xlu0 %800
    %802 = vrot.lane.b32.xlu0 %v285, 108
    %v803 = vpop.permute.xlu0 %802
    %v809 = vsel %vm392, %v792, 0
    %v812 = vsel %vm392, %v793, 0
    %v815 = vsel %vm392, %v794, 0
    %v818 = vsel %vm392, %v795, 0
    %820 = vmatprep.subr.bf16.mxu0 0
    %821 = vmatpush1.bf16.msra.mxu0 %v797
    %822 = vmatprep.subr.bf16.mxu0 0
    %823 = vmatpush1.bf16.msra.mxu0 %v799
    %824 = vmatprep.subr.bf16.mxu0 0
    %825 = vmatpush1.bf16.msra.mxu0 %v801
    %826 = vmatprep.subr.bf16.mxu0 0
    %827 = vmatpush1.bf16.msra.mxu0 %v803
    %828 = vmatprep.subr.bf16.mxu0 0
    %829 = vmatpush1.bf16.msra.mxu0 0
    %830 = vmatprep.subr.bf16.mxu0 0
    %831 = vmatpush1.bf16.msra.mxu0 0
    %832 = vmatprep.subr.bf16.mxu0 0
    %833 = vmatpush1.bf16.msra.mxu0 0
    %834 = vmatprep.subr.bf16.mxu0 0
    %835 = vmatpush1.bf16.msra.mxu0 0
    %836 = vmatprep.subr.bf16.mxu0 0
    %837 = vmatpush1.bf16.msra.mxu0 0
    %838 = vmatprep.subr.bf16.mxu0 0
    %839 = vmatpush1.bf16.msra.mxu0 0
    %840 = vmatprep.subr.bf16.mxu0 0
    %841 = vmatpush1.bf16.msra.mxu0 0
    %842 = vmatprep.subr.bf16.mxu0 0
    %843 = vmatpush1.bf16.msra.mxu0 0
    %844 = vmatprep.subr.bf16.mxu0 0
    %845 = vmatpush1.bf16.msra.mxu0 0
    %846 = vmatprep.subr.bf16.mxu0 0
    %847 = vmatpush1.bf16.msra.mxu0 0
    %848 = vmatprep.subr.bf16.mxu0 0
    %849 = vmatpush1.bf16.msra.mxu0 0
    %850 = vmatprep.subr.bf16.mxu0 0
    %851 = vmatpush1.bf16.msra.mxu0 0
    %852 = vmatprep.mubr.bf16.mxu0 0
    %853 = vmatmul.mubr.bf16.gmra.mrb[0].mxu0 %v809
    %v854 = vpop.f32.mrb[0].mxu0
    %v855 = vadd.f32 0.0, %v854
    %v856 = vpop.f32.mrb[0].mxu0
    %v857 = vpop.f32.mrb[0].mxu0
    %v858 = vadd.f32 0.0, %v857
    %v859 = vpop.f32.mrb[0].mxu0
    %860 = vmatprep.mubr.bf16.mxu0 0
    %861 = vmatmul.mubr.bf16.gmra.mrb[0].mxu0 %v812
    %v862 = vpop.f32.mrb[0].mxu0
    %v863 = vadd.f32 0.0, %v862
    %v864 = vpop.f32.mrb[0].mxu0
    %v865 = vpop.f32.mrb[0].mxu0
    %v866 = vadd.f32 0.0, %v865
    %v867 = vpop.f32.mrb[0].mxu0
    %868 = vmatprep.mubr.bf16.mxu0 0
    %869 = vmatmul.mubr.bf16.gmra.mrb[0].mxu0 %v815
    %v870 = vpop.f32.mrb[0].mxu0
    %v871 = vadd.f32 0.0, %v870
    %v872 = vpop.f32.mrb[0].mxu0
    %v873 = vpop.f32.mrb[0].mxu0
    %v874 = vadd.f32 0.0, %v873
    %v875 = vpop.f32.mrb[0].mxu0
    %876 = vmatprep.mubr.bf16.mxu0 0
    %877 = vmatmul.mubr.bf16.gmra.mrb[0].mxu0 %v818
    %v878 = vpop.f32.mrb[0].mxu0
    %v879 = vadd.f32 0.0, %v878
    %v880 = vpop.f32.mrb[0].mxu0
    %v881 = vpop.f32.mrb[0].mxu0
    %v882 = vadd.f32 0.0, %v881
    %v883 = vpop.f32.mrb[0].mxu0
    %884 = vdwg.mxu0
    %v885 = vpack.c.bf16 %v858, %v855
    %v886 = vpack.c.bf16 %v866, %v863
    %v887 = vpack.c.bf16 %v874, %v871
    %v888 = vpack.c.bf16 %v882, %v879
    %893 = vrot.lane.b32.xlu0 %v885, 4
    %v894 = vpop.permute.xlu0 %893
    %895 = vrot.lane.b32.xlu0 %v886, 4
    %v896 = vpop.permute.xlu0 %895
    %897 = vrot.lane.b32.xlu0 %v887, 4
    %v898 = vpop.permute.xlu0 %897
    %899 = vrot.lane.b32.xlu0 %v888, 4
    %v900 = vpop.permute.xlu0 %899
    %vm905 = vcmask 64544
    %906 = vst.msk [vmem:[#allocation2] sm:$0xff] %vm905, %v894
    %907 = vst.msk [vmem:[#allocation2 + $0x8] sm:$0xff] %vm905, %v896
    %908 = vst.msk [vmem:[#allocation2 + $0x10] sm:$0xff] %vm905, %v898
    %909 = vst.msk [vmem:[#allocation2 + $0x18] sm:$0xff] %vm905, %v900
    %910 = vrot.lane.b32.xlu0 %v282, 104
    %v911 = vpop.permute.xlu0 %910
    %912 = vrot.lane.b32.xlu0 %v283, 104
    %v913 = vpop.permute.xlu0 %912
    %914 = vrot.lane.b32.xlu0 %v284, 104
    %v915 = vpop.permute.xlu0 %914
    %916 = vrot.lane.b32.xlu0 %v285, 104
    %v917 = vpop.permute.xlu0 %916
    %918 = vrot.lane.b32.xlu0 %v282, 100
    %v919 = vpop.permute.xlu0 %918
    %920 = vrot.lane.b32.xlu0 %v283, 100
    %v921 = vpop.permute.xlu0 %920
    %922 = vrot.lane.b32.xlu0 %v284, 100
    %v923 = vpop.permute.xlu0 %922
    %924 = vrot.lane.b32.xlu0 %v285, 100
    %v925 = vpop.permute.xlu0 %924
    %v927 = vsel %vm302, %v911, 0
    %v930 = vsel %vm302, %v913, 0
    %v933 = vsel %vm302, %v915, 0
    %v936 = vsel %vm302, %v917, 0
    %v939 = vsel %vm302, %v919, 0
    %v942 = vsel %vm302, %v921, 0
    %v945 = vsel %vm302, %v923, 0
    %v948 = vsel %vm302, %v925, 0
    %950 = vmatprep.subr.bf16.mxu0 0
    %951 = vmatpush1.bf16.xpose.msra.mxu0 %v939
    %952 = vmatprep.subr.bf16.mxu0 0
    %953 = vmatpush1.bf16.xpose.msra.mxu0 %v942
    %954 = vmatprep.subr.bf16.mxu0 0
    %955 = vmatpush1.bf16.xpose.msra.mxu0 %v945
    %956 = vmatprep.subr.bf16.mxu0 0
    %957 = vmatpush1.bf16.xpose.msra.mxu0 %v948
    %958 = vmatprep.subr.bf16.mxu0 0
    %959 = vmatpush1.bf16.xpose.msra.mxu0 0
    %960 = vmatprep.subr.bf16.mxu0 0
    %961 = vmatpush1.bf16.xpose.msra.mxu0 0
    %962 = vmatprep.subr.bf16.mxu0 0
    %963 = vmatpush1.bf16.xpose.msra.mxu0 0
    %964 = vmatprep.subr.bf16.mxu0 0
    %965 = vmatpush1.bf16.xpose.msra.mxu0 0
    %966 = vmatprep.subr.bf16.mxu0 0
    %967 = vmatpush1.bf16.xpose.msra.mxu0 0
    %968 = vmatprep.subr.bf16.mxu0 0
    %969 = vmatpush1.bf16.xpose.msra.mxu0 0
    %970 = vmatprep.subr.bf16.mxu0 0
    %971 = vmatpush1.bf16.xpose.msra.mxu0 0
    %972 = vmatprep.subr.bf16.mxu0 0
    %973 = vmatpush1.bf16.xpose.msra.mxu0 0
    %974 = vmatprep.subr.bf16.mxu0 0
    %975 = vmatpush1.bf16.xpose.msra.mxu0 0
    %976 = vmatprep.subr.bf16.mxu0 0
    %977 = vmatpush1.bf16.xpose.msra.mxu0 0
    %978 = vmatprep.subr.bf16.mxu0 0
    %979 = vmatpush1.bf16.xpose.msra.mxu0 0
    %980 = vmatprep.subr.bf16.mxu0 0
    %981 = vmatpush1.bf16.xpose.msra.mxu0 0
    %982 = vmatprep.mubr.bf16.mxu0 0
    %983 = vmatmul.mubr.bf16.gmra.mrb[0].mxu0 %v927
    %v984 = vpop.f32.mrb[0].mxu0
    %v985 = vadd.f32 0.0, %v984
    %v986 = vpop.f32.mrb[0].mxu0
    %v987 = vpop.f32.mrb[0].mxu0
    %v988 = vadd.f32 0.0, %v987
    %v989 = vpop.f32.mrb[0].mxu0
    %990 = vmatprep.mubr.bf16.mxu0 0
    %991 = vmatmul.mubr.bf16.gmra.mrb[0].mxu0 %v930
    %v992 = vpop.f32.mrb[0].mxu0
    %v993 = vadd.f32 0.0, %v992
    %v994 = vpop.f32.mrb[0].mxu0
    %v995 = vpop.f32.mrb[0].mxu0
    %v996 = vadd.f32 0.0, %v995
    %v997 = vpop.f32.mrb[0].mxu0
    %998 = vmatprep.mubr.bf16.mxu0 0
    %999 = vmatmul.mubr.bf16.gmra.mrb[0].mxu0 %v933
    %v1000 = vpop.f32.mrb[0].mxu0
    %v1001 = vadd.f32 0.0, %v1000
    %v1002 = vpop.f32.mrb[0].mxu0
    %v1003 = vpop.f32.mrb[0].mxu0
    %v1004 = vadd.f32 0.0, %v1003
    %v1005 = vpop.f32.mrb[0].mxu0
    %1006 = vmatprep.mubr.bf16.mxu0 0
    %1007 = vmatmul.mubr.bf16.gmra.mrb[0].mxu0 %v936
    %v1008 = vpop.f32.mrb[0].mxu0
    %v1009 = vadd.f32 0.0, %v1008
    %v1010 = vpop.f32.mrb[0].mxu0
    %v1011 = vpop.f32.mrb[0].mxu0
    %v1012 = vadd.f32 0.0, %v1011
    %v1013 = vpop.f32.mrb[0].mxu0
    %1014 = vdwg.mxu0
    %v1015 = vsel %vm392, %v985, -inf
    %1016 = vmax.xlane.f32.xlu0 %v1015
    %v1017 = vpop.xlane.xlu0 %1016
    %v1018 = vsel %vm392, %v988, -inf
    %1019 = vmax.xlane.f32.xlu0 %v1018
    %v1020 = vpop.xlane.xlu0 %1019
    %v1021 = vsel %vm392, %v993, -inf
    %1022 = vmax.xlane.f32.xlu0 %v1021
    %v1023 = vpop.xlane.xlu0 %1022
    %v1024 = vsel %vm392, %v996, -inf
    %1025 = vmax.xlane.f32.xlu0 %v1024
    %v1026 = vpop.xlane.xlu0 %1025
    %v1027 = vsel %vm392, %v1001, -inf
    %1028 = vmax.xlane.f32.xlu0 %v1027
    %v1029 = vpop.xlane.xlu0 %1028
    %v1030 = vsel %vm392, %v1004, -inf
    %1031 = vmax.xlane.f32.xlu0 %v1030
    %v1032 = vpop.xlane.xlu0 %1031
    %v1033 = vsel %vm392, %v1009, -inf
    %1034 = vmax.xlane.f32.xlu0 %v1033
    %v1035 = vpop.xlane.xlu0 %1034
    %v1036 = vsel %vm392, %v1012, -inf
    %1037 = vmax.xlane.f32.xlu0 %v1036
    %v1038 = vpop.xlane.xlu0 %1037
    %v1039 = vsub.f32 %v985, %v1017
    %v1040 = vsub.f32 %v988, %v1020
    %v1041 = vsub.f32 %v993, %v1023
    %v1042 = vsub.f32 %v996, %v1026
    %v1043 = vsub.f32 %v1001, %v1029
    %v1044 = vsub.f32 %v1004, %v1032
    %v1045 = vsub.f32 %v1009, %v1035
    %v1046 = vsub.f32 %v1012, %v1038
    %v1047 = vmul.f32 %v1039, 1.442695
    %v1048 = vpow.pop %v1047
    %v1049 = vmul.f32 %v1040, 1.442695
    %v1050 = vpow.pop %v1049
    %v1051 = vmul.f32 %v1041, 1.442695
    %v1052 = vpow.pop %v1051
    %v1053 = vmul.f32 %v1042, 1.442695
    %v1054 = vpow.pop %v1053
    %v1055 = vmul.f32 %v1043, 1.442695
    %v1056 = vpow.pop %v1055
    %v1057 = vmul.f32 %v1044, 1.442695
    %v1058 = vpow.pop %v1057
    %v1059 = vmul.f32 %v1045, 1.442695
    %v1060 = vpow.pop %v1059
    %v1061 = vmul.f32 %v1046, 1.442695
    %v1062 = vpow.pop %v1061
    %v1063 = vsel %vm392, %v1048, 0.0
    %1064 = vadd.xlane.f32.xlu0 %v1063
    %v1065 = vpop.xlane.xlu0 %1064
    %v1066 = vsel %vm392, %v1050, 0.0
    %1067 = vadd.xlane.f32.xlu0 %v1066
    %v1068 = vpop.xlane.xlu0 %1067
    %v1069 = vsel %vm392, %v1052, 0.0
    %1070 = vadd.xlane.f32.xlu0 %v1069
    %v1071 = vpop.xlane.xlu0 %1070
    %v1072 = vsel %vm392, %v1054, 0.0
    %1073 = vadd.xlane.f32.xlu0 %v1072
    %v1074 = vpop.xlane.xlu0 %1073
    %v1075 = vsel %vm392, %v1056, 0.0
    %1076 = vadd.xlane.f32.xlu0 %v1075
    %v1077 = vpop.xlane.xlu0 %1076
    %v1078 = vsel %vm392, %v1058, 0.0
    %1079 = vadd.xlane.f32.xlu0 %v1078
    %v1080 = vpop.xlane.xlu0 %1079
    %v1081 = vsel %vm392, %v1060, 0.0
    %1082 = vadd.xlane.f32.xlu0 %v1081
    %v1083 = vpop.xlane.xlu0 %1082
    %v1084 = vsel %vm392, %v1062, 0.0
    %1085 = vadd.xlane.f32.xlu0 %v1084
    %v1086 = vpop.xlane.xlu0 %1085
    %v1087 = vrcp.pop %v1065
    %v1088 = vrcp.pop %v1068
    %v1089 = vrcp.pop %v1071
    %v1090 = vrcp.pop %v1074
    %v1091 = vrcp.pop %v1077
    %v1092 = vrcp.pop %v1080
    %v1093 = vrcp.pop %v1083
    %v1094 = vrcp.pop %v1086
    %v1095 = vmul.f32 %v1048, %v1087
    %v1096 = vmul.f32 %v1050, %v1088
    %v1097 = vmul.f32 %v1052, %v1089
    %v1098 = vmul.f32 %v1054, %v1090
    %v1099 = vmul.f32 %v1056, %v1091
    %v1100 = vmul.f32 %v1058, %v1092
    %v1101 = vmul.f32 %v1060, %v1093
    %v1102 = vmul.f32 %v1062, %v1094
    %s1103 = scalar_lea.vmem [#allocation10], 128
    %1104 = vst.msk [vmem:[%s1103] sm:$0xff] %vm392, %v1095
    %1105 = vst.msk [vmem:[%s1103 + $0x8] sm:$0xff] %vm392, %v1096
    %1106 = vst.msk [vmem:[%s1103 + $0x10] sm:$0xff] %vm392, %v1097
    %1107 = vst.msk [vmem:[%s1103 + $0x18] sm:$0xff] %vm392, %v1098
    %1108 = vst.msk [vmem:[%s1103 + $0x20] sm:$0xff] %vm392, %v1099
    %1109 = vst.msk [vmem:[%s1103 + $0x28] sm:$0xff] %vm392, %v1100
    %1110 = vst.msk [vmem:[%s1103 + $0x30] sm:$0xff] %vm392, %v1101
    %1111 = vst.msk [vmem:[%s1103 + $0x38] sm:$0xff] %vm392, %v1102
    %v1112 = vpack.c.bf16 %v1096, %v1095
    %v1113 = vpack.c.bf16 %v1098, %v1097
    %v1114 = vpack.c.bf16 %v1100, %v1099
    %v1115 = vpack.c.bf16 %v1102, %v1101
    %1116 = vrot.lane.b32.xlu0 %v282, 96
    %v1117 = vpop.permute.xlu0 %1116
    %1118 = vrot.lane.b32.xlu0 %v283, 96
    %v1119 = vpop.permute.xlu0 %1118
    %1120 = vrot.lane.b32.xlu0 %v284, 96
    %v1121 = vpop.permute.xlu0 %1120
    %1122 = vrot.lane.b32.xlu0 %v285, 96
    %v1123 = vpop.permute.xlu0 %1122
    %v1129 = vsel %vm392, %v1112, 0
    %v1132 = vsel %vm392, %v1113, 0
    %v1135 = vsel %vm392, %v1114, 0
    %v1138 = vsel %vm392, %v1115, 0
    %1140 = vmatprep.subr.bf16.mxu0 0
    %1141 = vmatpush1.bf16.msra.mxu0 %v1117
    %1142 = vmatprep.subr.bf16.mxu0 0
    %1143 = vmatpush1.bf16.msra.mxu0 %v1119
    %1144 = vmatprep.subr.bf16.mxu0 0
    %1145 = vmatpush1.bf16.msra.mxu0 %v1121
    %1146 = vmatprep.subr.bf16.mxu0 0
    %1147 = vmatpush1.bf16.msra.mxu0 %v1123
    %1148 = vmatprep.subr.bf16.mxu0 0
    %1149 = vmatpush1.bf16.msra.mxu0 0
    %1150 = vmatprep.subr.bf16.mxu0 0
    %1151 = vmatpush1.bf16.msra.mxu0 0
    %1152 = vmatprep.subr.bf16.mxu0 0
    %1153 = vmatpush1.bf16.msra.mxu0 0
    %1154 = vmatprep.subr.bf16.mxu0 0
    %1155 = vmatpush1.bf16.msra.mxu0 0
    %1156 = vmatprep.subr.bf16.mxu0 0
    %1157 = vmatpush1.bf16.msra.mxu0 0
    %1158 = vmatprep.subr.bf16.mxu0 0
    %1159 = vmatpush1.bf16.msra.mxu0 0
    %1160 = vmatprep.subr.bf16.mxu0 0
    %1161 = vmatpush1.bf16.msra.mxu0 0
    %1162 = vmatprep.subr.bf16.mxu0 0
    %1163 = vmatpush1.bf16.msra.mxu0 0
    %1164 = vmatprep.subr.bf16.mxu0 0
    %1165 = vmatpush1.bf16.msra.mxu0 0
    %1166 = vmatprep.subr.bf16.mxu0 0
    %1167 = vmatpush1.bf16.msra.mxu0 0
    %1168 = vmatprep.subr.bf16.mxu0 0
    %1169 = vmatpush1.bf16.msra.mxu0 0
    %1170 = vmatprep.subr.bf16.mxu0 0
    %1171 = vmatpush1.bf16.msra.mxu0 0
    %1172 = vmatprep.mubr.bf16.mxu0 0
    %1173 = vmatmul.mubr.bf16.gmra.mrb[0].mxu0 %v1129
    %v1174 = vpop.f32.mrb[0].mxu0
    %v1175 = vadd.f32 0.0, %v1174
    %v1176 = vpop.f32.mrb[0].mxu0
    %v1177 = vpop.f32.mrb[0].mxu0
    %v1178 = vadd.f32 0.0, %v1177
    %v1179 = vpop.f32.mrb[0].mxu0
    %1180 = vmatprep.mubr.bf16.mxu0 0
    %1181 = vmatmul.mubr.bf16.gmra.mrb[0].mxu0 %v1132
    %v1182 = vpop.f32.mrb[0].mxu0
    %v1183 = vadd.f32 0.0, %v1182
    %v1184 = vpop.f32.mrb[0].mxu0
    %v1185 = vpop.f32.mrb[0].mxu0
    %v1186 = vadd.f32 0.0, %v1185
    %v1187 = vpop.f32.mrb[0].mxu0
    %1188 = vmatprep.mubr.bf16.mxu0 0
    %1189 = vmatmul.mubr.bf16.gmra.mrb[0].mxu0 %v1135
    %v1190 = vpop.f32.mrb[0].mxu0
    %v1191 = vadd.f32 0.0, %v1190
    %v1192 = vpop.f32.mrb[0].mxu0
    %v1193 = vpop.f32.mrb[0].mxu0
    %v1194 = vadd.f32 0.0, %v1193
    %v1195 = vpop.f32.mrb[0].mxu0
    %1196 = vmatprep.mubr.bf16.mxu0 0
    %1197 = vmatmul.mubr.bf16.gmra.mrb[0].mxu0 %v1138
    %v1198 = vpop.f32.mrb[0].mxu0
    %v1199 = vadd.f32 0.0, %v1198
    %v1200 = vpop.f32.mrb[0].mxu0
    %v1201 = vpop.f32.mrb[0].mxu0
    %v1202 = vadd.f32 0.0, %v1201
    %v1203 = vpop.f32.mrb[0].mxu0
    %1204 = vdwg.mxu0
    %v1205 = vpack.c.bf16 %v1178, %v1175
    %v1206 = vpack.c.bf16 %v1186, %v1183
    %v1207 = vpack.c.bf16 %v1194, %v1191
    %v1208 = vpack.c.bf16 %v1202, %v1199
    %1213 = vrot.lane.b32.xlu0 %v1205, 8
    %v1214 = vpop.permute.xlu0 %1213
    %1215 = vrot.lane.b32.xlu0 %v1206, 8
    %v1216 = vpop.permute.xlu0 %1215
    %1217 = vrot.lane.b32.xlu0 %v1207, 8
    %v1218 = vpop.permute.xlu0 %1217
    %1219 = vrot.lane.b32.xlu0 %v1208, 8
    %v1220 = vpop.permute.xlu0 %1219
    %vm1225 = vcmask 97344
    %1226 = vst.msk [vmem:[#allocation2] sm:$0xff] %vm1225, %v1214
    %1227 = vst.msk [vmem:[#allocation2 + $0x8] sm:$0xff] %vm1225, %v1216
    %1228 = vst.msk [vmem:[#allocation2 + $0x10] sm:$0xff] %vm1225, %v1218
    %1229 = vst.msk [vmem:[#allocation2 + $0x18] sm:$0xff] %vm1225, %v1220
    %1230 = vrot.lane.b32.xlu0 %v282, 92
    %v1231 = vpop.permute.xlu0 %1230
    %1232 = vrot.lane.b32.xlu0 %v283, 92
    %v1233 = vpop.permute.xlu0 %1232
    %1234 = vrot.lane.b32.xlu0 %v284, 92
    %v1235 = vpop.permute.xlu0 %1234
    %1236 = vrot.lane.b32.xlu0 %v285, 92
    %v1237 = vpop.permute.xlu0 %1236
    %1238 = vrot.lane.b32.xlu0 %v282, 88
    %v1239 = vpop.permute.xlu0 %1238
    %1240 = vrot.lane.b32.xlu0 %v283, 88
    %v1241 = vpop.permute.xlu0 %1240
    %1242 = vrot.lane.b32.xlu0 %v284, 88
    %v1243 = vpop.permute.xlu0 %1242
    %1244 = vrot.lane.b32.xlu0 %v285, 88
    %v1245 = vpop.permute.xlu0 %1244
    %v1247 = vsel %vm302, %v1231, 0
    %v1250 = vsel %vm302, %v1233, 0
    %v1253 = vsel %vm302, %v1235, 0
    %v1256 = vsel %vm302, %v1237, 0
    %v1259 = vsel %vm302, %v1239, 0
    %v1262 = vsel %vm302, %v1241, 0
    %v1265 = vsel %vm302, %v1243, 0
    %v1268 = vsel %vm302, %v1245, 0
    %1270 = vmatprep.subr.bf16.mxu0 0
    %1271 = vmatpush1.bf16.xpose.msra.mxu0 %v1259
    %1272 = vmatprep.subr.bf16.mxu0 0
    %1273 = vmatpush1.bf16.xpose.msra.mxu0 %v1262
    %1274 = vmatprep.subr.bf16.mxu0 0
    %1275 = vmatpush1.bf16.xpose.msra.mxu0 %v1265
    %1276 = vmatprep.subr.bf16.mxu0 0
    %1277 = vmatpush1.bf16.xpose.msra.mxu0 %v1268
    %1278 = vmatprep.subr.bf16.mxu0 0
    %1279 = vmatpush1.bf16.xpose.msra.mxu0 0
    %1280 = vmatprep.subr.bf16.mxu0 0
    %1281 = vmatpush1.bf16.xpose.msra.mxu0 0
    %1282 = vmatprep.subr.bf16.mxu0 0
    %1283 = vmatpush1.bf16.xpose.msra.mxu0 0
    %1284 = vmatprep.subr.bf16.mxu0 0
    %1285 = vmatpush1.bf16.xpose.msra.mxu0 0
    %1286 = vmatprep.subr.bf16.mxu0 0
    %1287 = vmatpush1.bf16.xpose.msra.mxu0 0
    %1288 = vmatprep.subr.bf16.mxu0 0
    %1289 = vmatpush1.bf16.xpose.msra.mxu0 0
    %1290 = vmatprep.subr.bf16.mxu0 0
    %1291 = vmatpush1.bf16.xpose.msra.mxu0 0
    %1292 = vmatprep.subr.bf16.mxu0 0
    %1293 = vmatpush1.bf16.xpose.msra.mxu0 0
    %1294 = vmatprep.subr.bf16.mxu0 0
    %1295 = vmatpush1.bf16.xpose.msra.mxu0 0
    %1296 = vmatprep.subr.bf16.mxu0 0
    %1297 = vmatpush1.bf16.xpose.msra.mxu0 0
    %1298 = vmatprep.subr.bf16.mxu0 0
    %1299 = vmatpush1.bf16.xpose.msra.mxu0 0
    %1300 = vmatprep.subr.bf16.mxu0 0
    %1301 = vmatpush1.bf16.xpose.msra.mxu0 0
    %1302 = vmatprep.mubr.bf16.mxu0 0
    %1303 = vmatmul.mubr.bf16.gmra.mrb[0].mxu0 %v1247
    %v1304 = vpop.f32.mrb[0].mxu0
    %v1305 = vadd.f32 0.0, %v1304
    %v1306 = vpop.f32.mrb[0].mxu0
    %v1307 = vpop.f32.mrb[0].mxu0
    %v1308 = vadd.f32 0.0, %v1307
    %v1309 = vpop.f32.mrb[0].mxu0
    %1310 = vmatprep.mubr.bf16.mxu0 0
    %1311 = vmatmul.mubr.bf16.gmra.mrb[0].mxu0 %v1250
    %v1312 = vpop.f32.mrb[0].mxu0
    %v1313 = vadd.f32 0.0, %v1312
    %v1314 = vpop.f32.mrb[0].mxu0
    %v1315 = vpop.f32.mrb[0].mxu0
    %v1316 = vadd.f32 0.0, %v1315
    %v1317 = vpop.f32.mrb[0].mxu0
    %1318 = vmatprep.mubr.bf16.mxu0 0
    %1319 = vmatmul.mubr.bf16.gmra.mrb[0].mxu0 %v1253
    %v1320 = vpop.f32.mrb[0].mxu0
    %v1321 = vadd.f32 0.0, %v1320
    %v1322 = vpop.f32.mrb[0].mxu0
    %v1323 = vpop.f32.mrb[0].mxu0
    %v1324 = vadd.f32 0.0, %v1323
    %v1325 = vpop.f32.mrb[0].mxu0
    %1326 = vmatprep.mubr.bf16.mxu0 0
    %1327 = vmatmul.mubr.bf16.gmra.mrb[0].mxu0 %v1256
    %v1328 = vpop.f32.mrb[0].mxu0
    %v1329 = vadd.f32 0.0, %v1328
    %v1330 = vpop.f32.mrb[0].mxu0
    %v1331 = vpop.f32.mrb[0].mxu0
    %v1332 = vadd.f32 0.0, %v1331
    %v1333 = vpop.f32.mrb[0].mxu0
    %1334 = vdwg.mxu0
    %v1335 = vsel %vm392, %v1305, -inf
    %1336 = vmax.xlane.f32.xlu0 %v1335
    %v1337 = vpop.xlane.xlu0 %1336
    %v1338 = vsel %vm392, %v1308, -inf
    %1339 = vmax.xlane.f32.xlu0 %v1338
    %v1340 = vpop.xlane.xlu0 %1339
    %v1341 = vsel %vm392, %v1313, -inf
    %1342 = vmax.xlane.f32.xlu0 %v1341
    %v1343 = vpop.xlane.xlu0 %1342
    %v1344 = vsel %vm392, %v1316, -inf
    %1345 = vmax.xlane.f32.xlu0 %v1344
    %v1346 = vpop.xlane.xlu0 %1345
    %v1347 = vsel %vm392, %v1321, -inf
    %1348 = vmax.xlane.f32.xlu0 %v1347
    %v1349 = vpop.xlane.xlu0 %1348
    %v1350 = vsel %vm392, %v1324, -inf
    %1351 = vmax.xlane.f32.xlu0 %v1350
    %v1352 = vpop.xlane.xlu0 %1351
    %v1353 = vsel %vm392, %v1329, -inf
    %1354 = vmax.xlane.f32.xlu0 %v1353
    %v1355 = vpop.xlane.xlu0 %1354
    %v1356 = vsel %vm392, %v1332, -inf
    %1357 = vmax.xlane.f32.xlu0 %v1356
    %v1358 = vpop.xlane.xlu0 %1357
    %v1359 = vsub.f32 %v1305, %v1337
    %v1360 = vsub.f32 %v1308, %v1340
    %v1361 = vsub.f32 %v1313, %v1343
    %v1362 = vsub.f32 %v1316, %v1346
    %v1363 = vsub.f32 %v1321, %v1349
    %v1364 = vsub.f32 %v1324, %v1352
    %v1365 = vsub.f32 %v1329, %v1355
    %v1366 = vsub.f32 %v1332, %v1358
    %v1367 = vmul.f32 %v1359, 1.442695
    %v1368 = vpow.pop %v1367
    %v1369 = vmul.f32 %v1360, 1.442695
    %v1370 = vpow.pop %v1369
    %v1371 = vmul.f32 %v1361, 1.442695
    %v1372 = vpow.pop %v1371
    %v1373 = vmul.f32 %v1362, 1.442695
    %v1374 = vpow.pop %v1373
    %v1375 = vmul.f32 %v1363, 1.442695
    %v1376 = vpow.pop %v1375
    %v1377 = vmul.f32 %v1364, 1.442695
    %v1378 = vpow.pop %v1377
    %v1379 = vmul.f32 %v1365, 1.442695
    %v1380 = vpow.pop %v1379
    %v1381 = vmul.f32 %v1366, 1.442695
    %v1382 = vpow.pop %v1381
    %v1383 = vsel %vm392, %v1368, 0.0
    %1384 = vadd.xlane.f32.xlu0 %v1383
    %v1385 = vpop.xlane.xlu0 %1384
    %v1386 = vsel %vm392, %v1370, 0.0
    %1387 = vadd.xlane.f32.xlu0 %v1386
    %v1388 = vpop.xlane.xlu0 %1387
    %v1389 = vsel %vm392, %v1372, 0.0
    %1390 = vadd.xlane.f32.xlu0 %v1389
    %v1391 = vpop.xlane.xlu0 %1390
    %v1392 = vsel %vm392, %v1374, 0.0
    %1393 = vadd.xlane.f32.xlu0 %v1392
    %v1394 = vpop.xlane.xlu0 %1393
    %v1395 = vsel %vm392, %v1376, 0.0
    %1396 = vadd.xlane.f32.xlu0 %v1395
    %v1397 = vpop.xlane.xlu0 %1396
    %v1398 = vsel %vm392, %v1378, 0.0
    %1399 = vadd.xlane.f32.xlu0 %v1398
    %v1400 = vpop.xlane.xlu0 %1399
    %v1401 = vsel %vm392, %v1380, 0.0
    %1402 = vadd.xlane.f32.xlu0 %v1401
    %v1403 = vpop.xlane.xlu0 %1402
    %v1404 = vsel %vm392, %v1382, 0.0
    %1405 = vadd.xlane.f32.xlu0 %v1404
    %v1406 = vpop.xlane.xlu0 %1405
    %v1407 = vrcp.pop %v1385
    %v1408 = vrcp.pop %v1388
    %v1409 = vrcp.pop %v1391
    %v1410 = vrcp.pop %v1394
    %v1411 = vrcp.pop %v1397
    %v1412 = vrcp.pop %v1400
    %v1413 = vrcp.pop %v1403
    %v1414 = vrcp.pop %v1406
    %v1415 = vmul.f32 %v1368, %v1407
    %v1416 = vmul.f32 %v1370, %v1408
    %v1417 = vmul.f32 %v1372, %v1409
    %v1418 = vmul.f32 %v1374, %v1410
    %v1419 = vmul.f32 %v1376, %v1411
    %v1420 = vmul.f32 %v1378, %v1412
    %v1421 = vmul.f32 %v1380, %v1413
    %v1422 = vmul.f32 %v1382, %v1414
    %s1423 = scalar_lea.vmem [#allocation10], 192
    %1424 = vst.msk [vmem:[%s1423] sm:$0xff] %vm392, %v1415
    %1425 = vst.msk [vmem:[%s1423 + $0x8] sm:$0xff] %vm392, %v1416
    %1426 = vst.msk [vmem:[%s1423 + $0x10] sm:$0xff] %vm392, %v1417
    %1427 = vst.msk [vmem:[%s1423 + $0x18] sm:$0xff] %vm392, %v1418
    %1428 = vst.msk [vmem:[%s1423 + $0x20] sm:$0xff] %vm392, %v1419
    %1429 = vst.msk [vmem:[%s1423 + $0x28] sm:$0xff] %vm392, %v1420
    %1430 = vst.msk [vmem:[%s1423 + $0x30] sm:$0xff] %vm392, %v1421
    %1431 = vst.msk [vmem:[%s1423 + $0x38] sm:$0xff] %vm392, %v1422
    %v1432 = vpack.c.bf16 %v1416, %v1415
    %v1433 = vpack.c.bf16 %v1418, %v1417
    %v1434 = vpack.c.bf16 %v1420, %v1419
    %v1435 = vpack.c.bf16 %v1422, %v1421
    %1436 = vrot.lane.b32.xlu0 %v282, 84
    %v1437 = vpop.permute.xlu0 %1436
    %1438 = vrot.lane.b32.xlu0 %v283, 84
    %v1439 = vpop.permute.xlu0 %1438
    %1440 = vrot.lane.b32.xlu0 %v284, 84
    %v1441 = vpop.permute.xlu0 %1440
    %1442 = vrot.lane.b32.xlu0 %v285, 84
    %v1443 = vpop.permute.xlu0 %1442
    %v1449 = vsel %vm392, %v1432, 0
    %v1452 = vsel %vm392, %v1433, 0
    %v1455 = vsel %vm392, %v1434, 0
    %v1458 = vsel %vm392, %v1435, 0
    %1460 = vmatprep.subr.bf16.mxu0 0
    %1461 = vmatpush1.bf16.msra.mxu0 %v1437
    %1462 = vmatprep.subr.bf16.mxu0 0
    %1463 = vmatpush1.bf16.msra.mxu0 %v1439
    %1464 = vmatprep.subr.bf16.mxu0 0
    %1465 = vmatpush1.bf16.msra.mxu0 %v1441
    %1466 = vmatprep.subr.bf16.mxu0 0
    %1467 = vmatpush1.bf16.msra.mxu0 %v1443
    %1468 = vmatprep.subr.bf16.mxu0 0
    %1469 = vmatpush1.bf16.msra.mxu0 0
    %1470 = vmatprep.subr.bf16.mxu0 0
    %1471 = vmatpush1.bf16.msra.mxu0 0
    %1472 = vmatprep.subr.bf16.mxu0 0
    %1473 = vmatpush1.bf16.msra.mxu0 0
    %1474 = vmatprep.subr.bf16.mxu0 0
    %1475 = vmatpush1.bf16.msra.mxu0 0
    %1476 = vmatprep.subr.bf16.mxu0 0
    %1477 = vmatpush1.bf16.msra.mxu0 0
    %1478 = vmatprep.subr.bf16.mxu0 0
    %1479 = vmatpush1.bf16.msra.mxu0 0
    %1480 = vmatprep.subr.bf16.mxu0 0
    %1481 = vmatpush1.bf16.msra.mxu0 0
    %1482 = vmatprep.subr.bf16.mxu0 0
    %1483 = vmatpush1.bf16.msra.mxu0 0
    %1484 = vmatprep.subr.bf16.mxu0 0
    %1485 = vmatpush1.bf16.msra.mxu0 0
    %1486 = vmatprep.subr.bf16.mxu0 0
    %1487 = vmatpush1.bf16.msra.mxu0 0
    %1488 = vmatprep.subr.bf16.mxu0 0
    %1489 = vmatpush1.bf16.msra.mxu0 0
    %1490 = vmatprep.subr.bf16.mxu0 0
    %1491 = vmatpush1.bf16.msra.mxu0 0
    %1492 = vmatprep.mubr.bf16.mxu0 0
    %1493 = vmatmul.mubr.bf16.gmra.mrb[0].mxu0 %v1449
    %v1494 = vpop.f32.mrb[0].mxu0
    %v1495 = vadd.f32 0.0, %v1494
    %v1496 = vpop.f32.mrb[0].mxu0
    %v1497 = vpop.f32.mrb[0].mxu0
    %v1498 = vadd.f32 0.0, %v1497
    %v1499 = vpop.f32.mrb[0].mxu0
    %1500 = vmatprep.mubr.bf16.mxu0 0
    %1501 = vmatmul.mubr.bf16.gmra.mrb[0].mxu0 %v1452
    %v1502 = vpop.f32.mrb[0].mxu0
    %v1503 = vadd.f32 0.0, %v1502
    %v1504 = vpop.f32.mrb[0].mxu0
    %v1505 = vpop.f32.mrb[0].mxu0
    %v1506 = vadd.f32 0.0, %v1505
    %v1507 = vpop.f32.mrb[0].mxu0
    %1508 = vmatprep.mubr.bf16.mxu0 0
    %1509 = vmatmul.mubr.bf16.gmra.mrb[0].mxu0 %v1455
    %v1510 = vpop.f32.mrb[0].mxu0
    %v1511 = vadd.f32 0.0, %v1510
    %v1512 = vpop.f32.mrb[0].mxu0
    %v1513 = vpop.f32.mrb[0].mxu0
    %v1514 = vadd.f32 0.0, %v1513
    %v1515 = vpop.f32.mrb[0].mxu0
    %1516 = vmatprep.mubr.bf16.mxu0 0
    %1517 = vmatmul.mubr.bf16.gmra.mrb[0].mxu0 %v1458
    %v1518 = vpop.f32.mrb[0].mxu0
    %v1519 = vadd.f32 0.0, %v1518
    %v1520 = vpop.f32.mrb[0].mxu0
    %v1521 = vpop.f32.mrb[0].mxu0
    %v1522 = vadd.f32 0.0, %v1521
    %v1523 = vpop.f32.mrb[0].mxu0
    %1524 = vdwg.mxu0
    %v1525 = vpack.c.bf16 %v1498, %v1495
    %v1526 = vpack.c.bf16 %v1506, %v1503
    %v1527 = vpack.c.bf16 %v1514, %v1511
    %v1528 = vpack.c.bf16 %v1522, %v1519
    %1533 = vrot.lane.b32.xlu0 %v1525, 12
    %v1534 = vpop.permute.xlu0 %1533
    %1535 = vrot.lane.b32.xlu0 %v1526, 12
    %v1536 = vpop.permute.xlu0 %1535
    %1537 = vrot.lane.b32.xlu0 %v1527, 12
    %v1538 = vpop.permute.xlu0 %1537
    %1539 = vrot.lane.b32.xlu0 %v1528, 12
    %v1540 = vpop.permute.xlu0 %1539
    %vm1545 = vcmask 130144
    %1546 = vst.msk [vmem:[#allocation2] sm:$0xff] %vm1545, %v1534
    %1547 = vst.msk [vmem:[#allocation2 + $0x8] sm:$0xff] %vm1545, %v1536
    %1548 = vst.msk [vmem:[#allocation2 + $0x10] sm:$0xff] %vm1545, %v1538
    %1549 = vst.msk [vmem:[#allocation2 + $0x18] sm:$0xff] %vm1545, %v1540
    %1550 = vrot.lane.b32.xlu0 %v282, 80
    %v1551 = vpop.permute.xlu0 %1550
    %1552 = vrot.lane.b32.xlu0 %v283, 80
    %v1553 = vpop.permute.xlu0 %1552
    %1554 = vrot.lane.b32.xlu0 %v284, 80
    %v1555 = vpop.permute.xlu0 %1554
    %1556 = vrot.lane.b32.xlu0 %v285, 80
    %v1557 = vpop.permute.xlu0 %1556
    %1558 = vrot.lane.b32.xlu0 %v282, 76
    %v1559 = vpop.permute.xlu0 %1558
    %1560 = vrot.lane.b32.xlu0 %v283, 76
    %v1561 = vpop.permute.xlu0 %1560
    %1562 = vrot.lane.b32.xlu0 %v284, 76
    %v1563 = vpop.permute.xlu0 %1562
    %1564 = vrot.lane.b32.xlu0 %v285, 76
    %v1565 = vpop.permute.xlu0 %1564
    %v1567 = vsel %vm302, %v1551, 0
    %v1570 = vsel %vm302, %v1553, 0
    %v1573 = vsel %vm302, %v1555, 0
    %v1576 = vsel %vm302, %v1557, 0
    %v1579 = vsel %vm302, %v1559, 0
    %v1582 = vsel %vm302, %v1561, 0
    %v1585 = vsel %vm302, %v1563, 0
    %v1588 = vsel %vm302, %v1565, 0
    %1590 = vmatprep.subr.bf16.mxu0 0
    %1591 = vmatpush1.bf16.xpose.msra.mxu0 %v1579
    %1592 = vmatprep.subr.bf16.mxu0 0
    %1593 = vmatpush1.bf16.xpose.msra.mxu0 %v1582
    %1594 = vmatprep.subr.bf16.mxu0 0
    %1595 = vmatpush1.bf16.xpose.msra.mxu0 %v1585
    %1596 = vmatprep.subr.bf16.mxu0 0
    %1597 = vmatpush1.bf16.xpose.msra.mxu0 %v1588
    %1598 = vmatprep.subr.bf16.mxu0 0
    %1599 = vmatpush1.bf16.xpose.msra.mxu0 0
    %1600 = vmatprep.subr.bf16.mxu0 0
    %1601 = vmatpush1.bf16.xpose.msra.mxu0 0
    %1602 = vmatprep.subr.bf16.mxu0 0
    %1603 = vmatpush1.bf16.xpose.msra.mxu0 0
    %1604 = vmatprep.subr.bf16.mxu0 0
    %1605 = vmatpush1.bf16.xpose.msra.mxu0 0
    %1606 = vmatprep.subr.bf16.mxu0 0
    %1607 = vmatpush1.bf16.xpose.msra.mxu0 0
    %1608 = vmatprep.subr.bf16.mxu0 0
    %1609 = vmatpush1.bf16.xpose.msra.mxu0 0
    %1610 = vmatprep.subr.bf16.mxu0 0
    %1611 = vmatpush1.bf16.xpose.msra.mxu0 0
    %1612 = vmatprep.subr.bf16.mxu0 0
    %1613 = vmatpush1.bf16.xpose.msra.mxu0 0
    %1614 = vmatprep.subr.bf16.mxu0 0
    %1615 = vmatpush1.bf16.xpose.msra.mxu0 0
    %1616 = vmatprep.subr.bf16.mxu0 0
    %1617 = vmatpush1.bf16.xpose.msra.mxu0 0
    %1618 = vmatprep.subr.bf16.mxu0 0
    %1619 = vmatpush1.bf16.xpose.msra.mxu0 0
    %1620 = vmatprep.subr.bf16.mxu0 0
    %1621 = vmatpush1.bf16.xpose.msra.mxu0 0
    %1622 = vmatprep.mubr.bf16.mxu0 0
    %1623 = vmatmul.mubr.bf16.gmra.mrb[0].mxu0 %v1567
    %v1624 = vpop.f32.mrb[0].mxu0
    %v1625 = vadd.f32 0.0, %v1624
    %v1626 = vpop.f32.mrb[0].mxu0
    %v1627 = vpop.f32.mrb[0].mxu0
    %v1628 = vadd.f32 0.0, %v1627
    %v1629 = vpop.f32.mrb[0].mxu0
    %1630 = vmatprep.mubr.bf16.mxu0 0
    %1631 = vmatmul.mubr.bf16.gmra.mrb[0].mxu0 %v1570
    %v1632 = vpop.f32.mrb[0].mxu0
    %v1633 = vadd.f32 0.0, %v1632
    %v1634 = vpop.f32.mrb[0].mxu0
    %v1635 = vpop.f32.mrb[0].mxu0
    %v1636 = vadd.f32 0.0, %v1635
    %v1637 = vpop.f32.mrb[0].mxu0
    %1638 = vmatprep.mubr.bf16.mxu0 0
    %1639 = vmatmul.mubr.bf16.gmra.mrb[0].mxu0 %v1573
    %v1640 = vpop.f32.mrb[0].mxu0
    %v1641 = vadd.f32 0.0, %v1640
    %v1642 = vpop.f32.mrb[0].mxu0
    %v1643 = vpop.f32.mrb[0].mxu0
    %v1644 = vadd.f32 0.0, %v1643
    %v1645 = vpop.f32.mrb[0].mxu0
    %1646 = vmatprep.mubr.bf16.mxu0 0
    %1647 = vmatmul.mubr.bf16.gmra.mrb[0].mxu0 %v1576
    %v1648 = vpop.f32.mrb[0].mxu0
    %v1649 = vadd.f32 0.0, %v1648
    %v1650 = vpop.f32.mrb[0].mxu0
    %v1651 = vpop.f32.mrb[0].mxu0
    %v1652 = vadd.f32 0.0, %v1651
    %v1653 = vpop.f32.mrb[0].mxu0
    %1654 = vdwg.mxu0
    %v1655 = vsel %vm392, %v1625, -inf
    %1656 = vmax.xlane.f32.xlu0 %v1655
    %v1657 = vpop.xlane.xlu0 %1656
    %v1658 = vsel %vm392, %v1628, -inf
    %1659 = vmax.xlane.f32.xlu0 %v1658
    %v1660 = vpop.xlane.xlu0 %1659
    %v1661 = vsel %vm392, %v1633, -inf
    %1662 = vmax.xlane.f32.xlu0 %v1661
    %v1663 = vpop.xlane.xlu0 %1662
    %v1664 = vsel %vm392, %v1636, -inf
    %1665 = vmax.xlane.f32.xlu0 %v1664
    %v1666 = vpop.xlane.xlu0 %1665
    %v1667 = vsel %vm392, %v1641, -inf
    %1668 = vmax.xlane.f32.xlu0 %v1667
    %v1669 = vpop.xlane.xlu0 %1668
    %v1670 = vsel %vm392, %v1644, -inf
    %1671 = vmax.xlane.f32.xlu0 %v1670
    %v1672 = vpop.xlane.xlu0 %1671
    %v1673 = vsel %vm392, %v1649, -inf
    %1674 = vmax.xlane.f32.xlu0 %v1673
    %v1675 = vpop.xlane.xlu0 %1674
    %v1676 = vsel %vm392, %v1652, -inf
    %1677 = vmax.xlane.f32.xlu0 %v1676
    %v1678 = vpop.xlane.xlu0 %1677
    %v1679 = vsub.f32 %v1625, %v1657
    %v1680 = vsub.f32 %v1628, %v1660
    %v1681 = vsub.f32 %v1633, %v1663
    %v1682 = vsub.f32 %v1636, %v1666
    %v1683 = vsub.f32 %v1641, %v1669
    %v1684 = vsub.f32 %v1644, %v1672
    %v1685 = vsub.f32 %v1649, %v1675
    %v1686 = vsub.f32 %v1652, %v1678
    %v1687 = vmul.f32 %v1679, 1.442695
    %v1688 = vpow.pop %v1687
    %v1689 = vmul.f32 %v1680, 1.442695
    %v1690 = vpow.pop %v1689
    %v1691 = vmul.f32 %v1681, 1.442695
    %v1692 = vpow.pop %v1691
    %v1693 = vmul.f32 %v1682, 1.442695
    %v1694 = vpow.pop %v1693
    %v1695 = vmul.f32 %v1683, 1.442695
    %v1696 = vpow.pop %v1695
    %v1697 = vmul.f32 %v1684, 1.442695
    %v1698 = vpow.pop %v1697
    %v1699 = vmul.f32 %v1685, 1.442695
    %v1700 = vpow.pop %v1699
    %v1701 = vmul.f32 %v1686, 1.442695
    %v1702 = vpow.pop %v1701
    %v1703 = vsel %vm392, %v1688, 0.0
    %1704 = vadd.xlane.f32.xlu0 %v1703
    %v1705 = vpop.xlane.xlu0 %1704
    %v1706 = vsel %vm392, %v1690, 0.0
    %1707 = vadd.xlane.f32.xlu0 %v1706
    %v1708 = vpop.xlane.xlu0 %1707
    %v1709 = vsel %vm392, %v1692, 0.0
    %1710 = vadd.xlane.f32.xlu0 %v1709
    %v1711 = vpop.xlane.xlu0 %1710
    %v1712 = vsel %vm392, %v1694, 0.0
    %1713 = vadd.xlane.f32.xlu0 %v1712
    %v1714 = vpop.xlane.xlu0 %1713
    %v1715 = vsel %vm392, %v1696, 0.0
    %1716 = vadd.xlane.f32.xlu0 %v1715
    %v1717 = vpop.xlane.xlu0 %1716
    %v1718 = vsel %vm392, %v1698, 0.0
    %1719 = vadd.xlane.f32.xlu0 %v1718
    %v1720 = vpop.xlane.xlu0 %1719
    %v1721 = vsel %vm392, %v1700, 0.0
    %1722 = vadd.xlane.f32.xlu0 %v1721
    %v1723 = vpop.xlane.xlu0 %1722
    %v1724 = vsel %vm392, %v1702, 0.0
    %1725 = vadd.xlane.f32.xlu0 %v1724
    %v1726 = vpop.xlane.xlu0 %1725
    %v1727 = vrcp.pop %v1705
    %v1728 = vrcp.pop %v1708
    %v1729 = vrcp.pop %v1711
    %v1730 = vrcp.pop %v1714
    %v1731 = vrcp.pop %v1717
    %v1732 = vrcp.pop %v1720
    %v1733 = vrcp.pop %v1723
    %v1734 = vrcp.pop %v1726
    %v1735 = vmul.f32 %v1688, %v1727
    %v1736 = vmul.f32 %v1690, %v1728
    %v1737 = vmul.f32 %v1692, %v1729
    %v1738 = vmul.f32 %v1694, %v1730
    %v1739 = vmul.f32 %v1696, %v1731
    %v1740 = vmul.f32 %v1698, %v1732
    %v1741 = vmul.f32 %v1700, %v1733
    %v1742 = vmul.f32 %v1702, %v1734
    %s1743 = scalar_lea.vmem [#allocation10], 256
    %1744 = vst.msk [vmem:[%s1743] sm:$0xff] %vm392, %v1735
    %1745 = vst.msk [vmem:[%s1743 + $0x8] sm:$0xff] %vm392, %v1736
    %1746 = vst.msk [vmem:[%s1743 + $0x10] sm:$0xff] %vm392, %v1737
    %1747 = vst.msk [vmem:[%s1743 + $0x18] sm:$0xff] %vm392, %v1738
    %1748 = vst.msk [vmem:[%s1743 + $0x20] sm:$0xff] %vm392, %v1739
    %1749 = vst.msk [vmem:[%s1743 + $0x28] sm:$0xff] %vm392, %v1740
    %1750 = vst.msk [vmem:[%s1743 + $0x30] sm:$0xff] %vm392, %v1741
    %1751 = vst.msk [vmem:[%s1743 + $0x38] sm:$0xff] %vm392, %v1742
    %v1752 = vpack.c.bf16 %v1736, %v1735
    %v1753 = vpack.c.bf16 %v1738, %v1737
    %v1754 = vpack.c.bf16 %v1740, %v1739
    %v1755 = vpack.c.bf16 %v1742, %v1741
    %1756 = vrot.lane.b32.xlu0 %v282, 72
    %v1757 = vpop.permute.xlu0 %1756
    %1758 = vrot.lane.b32.xlu0 %v283, 72
    %v1759 = vpop.permute.xlu0 %1758
    %1760 = vrot.lane.b32.xlu0 %v284, 72
    %v1761 = vpop.permute.xlu0 %1760
    %1762 = vrot.lane.b32.xlu0 %v285, 72
    %v1763 = vpop.permute.xlu0 %1762
    %v1769 = vsel %vm392, %v1752, 0
    %v1772 = vsel %vm392, %v1753, 0
    %v1775 = vsel %vm392, %v1754, 0
    %v1778 = vsel %vm392, %v1755, 0
    %1780 = vmatprep.subr.bf16.mxu0 0
    %1781 = vmatpush1.bf16.msra.mxu0 %v1757
    %1782 = vmatprep.subr.bf16.mxu0 0
    %1783 = vmatpush1.bf16.msra.mxu0 %v1759
    %1784 = vmatprep.subr.bf16.mxu0 0
    %1785 = vmatpush1.bf16.msra.mxu0 %v1761
    %1786 = vmatprep.subr.bf16.mxu0 0
    %1787 = vmatpush1.bf16.msra.mxu0 %v1763
    %1788 = vmatprep.subr.bf16.mxu0 0
    %1789 = vmatpush1.bf16.msra.mxu0 0
    %1790 = vmatprep.subr.bf16.mxu0 0
    %1791 = vmatpush1.bf16.msra.mxu0 0
    %1792 = vmatprep.subr.bf16.mxu0 0
    %1793 = vmatpush1.bf16.msra.mxu0 0
    %1794 = vmatprep.subr.bf16.mxu0 0
    %1795 = vmatpush1.bf16.msra.mxu0 0
    %1796 = vmatprep.subr.bf16.mxu0 0
    %1797 = vmatpush1.bf16.msra.mxu0 0
    %1798 = vmatprep.subr.bf16.mxu0 0
    %1799 = vmatpush1.bf16.msra.mxu0 0
    %1800 = vmatprep.subr.bf16.mxu0 0
    %1801 = vmatpush1.bf16.msra.mxu0 0
    %1802 = vmatprep.subr.bf16.mxu0 0
    %1803 = vmatpush1.bf16.msra.mxu0 0
    %1804 = vmatprep.subr.bf16.mxu0 0
    %1805 = vmatpush1.bf16.msra.mxu0 0
    %1806 = vmatprep.subr.bf16.mxu0 0
    %1807 = vmatpush1.bf16.msra.mxu0 0
    %1808 = vmatprep.subr.bf16.mxu0 0
    %1809 = vmatpush1.bf16.msra.mxu0 0
    %1810 = vmatprep.subr.bf16.mxu0 0
    %1811 = vmatpush1.bf16.msra.mxu0 0
    %1812 = vmatprep.mubr.bf16.mxu0 0
    %1813 = vmatmul.mubr.bf16.gmra.mrb[0].mxu0 %v1769
    %v1814 = vpop.f32.mrb[0].mxu0
    %v1815 = vadd.f32 0.0, %v1814
    %v1816 = vpop.f32.mrb[0].mxu0
    %v1817 = vpop.f32.mrb[0].mxu0
    %v1818 = vadd.f32 0.0, %v1817
    %v1819 = vpop.f32.mrb[0].mxu0
    %1820 = vmatprep.mubr.bf16.mxu0 0
    %1821 = vmatmul.mubr.bf16.gmra.mrb[0].mxu0 %v1772
    %v1822 = vpop.f32.mrb[0].mxu0
    %v1823 = vadd.f32 0.0, %v1822
    %v1824 = vpop.f32.mrb[0].mxu0
    %v1825 = vpop.f32.mrb[0].mxu0
    %v1826 = vadd.f32 0.0, %v1825
    %v1827 = vpop.f32.mrb[0].mxu0
    %1828 = vmatprep.mubr.bf16.mxu0 0
    %1829 = vmatmul.mubr.bf16.gmra.mrb[0].mxu0 %v1775
    %v1830 = vpop.f32.mrb[0].mxu0
    %v1831 = vadd.f32 0.0, %v1830
    %v1832 = vpop.f32.mrb[0].mxu0
    %v1833 = vpop.f32.mrb[0].mxu0
    %v1834 = vadd.f32 0.0, %v1833
    %v1835 = vpop.f32.mrb[0].mxu0
    %1836 = vmatprep.mubr.bf16.mxu0 0
    %1837 = vmatmul.mubr.bf16.gmra.mrb[0].mxu0 %v1778
    %v1838 = vpop.f32.mrb[0].mxu0
    %v1839 = vadd.f32 0.0, %v1838
    %v1840 = vpop.f32.mrb[0].mxu0
    %v1841 = vpop.f32.mrb[0].mxu0
    %v1842 = vadd.f32 0.0, %v1841
    %v1843 = vpop.f32.mrb[0].mxu0
    %1844 = vdwg.mxu0
    %v1845 = vpack.c.bf16 %v1818, %v1815
    %v1846 = vpack.c.bf16 %v1826, %v1823
    %v1847 = vpack.c.bf16 %v1834, %v1831
    %v1848 = vpack.c.bf16 %v1842, %v1839
    %1853 = vrot.lane.b32.xlu0 %v1845, 16
    %v1854 = vpop.permute.xlu0 %1853
    %1855 = vrot.lane.b32.xlu0 %v1846, 16
    %v1856 = vpop.permute.xlu0 %1855
    %1857 = vrot.lane.b32.xlu0 %v1847, 16
    %v1858 = vpop.permute.xlu0 %1857
    %1859 = vrot.lane.b32.xlu0 %v1848, 16
    %v1860 = vpop.permute.xlu0 %1859
    %vm1865 = vcmask 162944
    %1866 = vst.msk [vmem:[#allocation2] sm:$0xff] %vm1865, %v1854
    %1867 = vst.msk [vmem:[#allocation2 + $0x8] sm:$0xff] %vm1865, %v1856
    %1868 = vst.msk [vmem:[#allocation2 + $0x10] sm:$0xff] %vm1865, %v1858
    %1869 = vst.msk [vmem:[#allocation2 + $0x18] sm:$0xff] %vm1865, %v1860
    %1870 = vrot.lane.b32.xlu0 %v282, 68
    %v1871 = vpop.permute.xlu0 %1870
    %1872 = vrot.lane.b32.xlu0 %v283, 68
    %v1873 = vpop.permute.xlu0 %1872
    %1874 = vrot.lane.b32.xlu0 %v284, 68
    %v1875 = vpop.permute.xlu0 %1874
    %1876 = vrot.lane.b32.xlu0 %v285, 68
    %v1877 = vpop.permute.xlu0 %1876
    %1878 = vrot.lane.b32.xlu0 %v282, 64
    %v1879 = vpop.permute.xlu0 %1878
    %1880 = vrot.lane.b32.xlu0 %v283, 64
    %v1881 = vpop.permute.xlu0 %1880
    %1882 = vrot.lane.b32.xlu0 %v284, 64
    %v1883 = vpop.permute.xlu0 %1882
    %1884 = vrot.lane.b32.xlu0 %v285, 64
    %v1885 = vpop.permute.xlu0 %1884
    %v1887 = vsel %vm302, %v1871, 0
    %v1890 = vsel %vm302, %v1873, 0
    %v1893 = vsel %vm302, %v1875, 0
    %v1896 = vsel %vm302, %v1877, 0
    %v1899 = vsel %vm302, %v1879, 0
    %v1902 = vsel %vm302, %v1881, 0
    %v1905 = vsel %vm302, %v1883, 0
    %v1908 = vsel %vm302, %v1885, 0
    %1910 = vmatprep.subr.bf16.mxu0 0
    %1911 = vmatpush1.bf16.xpose.msra.mxu0 %v1899
    %1912 = vmatprep.subr.bf16.mxu0 0
    %1913 = vmatpush1.bf16.xpose.msra.mxu0 %v1902
    %1914 = vmatprep.subr.bf16.mxu0 0
    %1915 = vmatpush1.bf16.xpose.msra.mxu0 %v1905
    %1916 = vmatprep.subr.bf16.mxu0 0
    %1917 = vmatpush1.bf16.xpose.msra.mxu0 %v1908
    %1918 = vmatprep.subr.bf16.mxu0 0
    %1919 = vmatpush1.bf16.xpose.msra.mxu0 0
    %1920 = vmatprep.subr.bf16.mxu0 0
    %1921 = vmatpush1.bf16.xpose.msra.mxu0 0
    %1922 = vmatprep.subr.bf16.mxu0 0
    %1923 = vmatpush1.bf16.xpose.msra.mxu0 0
    %1924 = vmatprep.subr.bf16.mxu0 0
    %1925 = vmatpush1.bf16.xpose.msra.mxu0 0
    %1926 = vmatprep.subr.bf16.mxu0 0
    %1927 = vmatpush1.bf16.xpose.msra.mxu0 0
    %1928 = vmatprep.subr.bf16.mxu0 0
    %1929 = vmatpush1.bf16.xpose.msra.mxu0 0
    %1930 = vmatprep.subr.bf16.mxu0 0
    %1931 = vmatpush1.bf16.xpose.msra.mxu0 0
    %1932 = vmatprep.subr.bf16.mxu0 0
    %1933 = vmatpush1.bf16.xpose.msra.mxu0 0
    %1934 = vmatprep.subr.bf16.mxu0 0
    %1935 = vmatpush1.bf16.xpose.msra.mxu0 0
    %1936 = vmatprep.subr.bf16.mxu0 0
    %1937 = vmatpush1.bf16.xpose.msra.mxu0 0
    %1938 = vmatprep.subr.bf16.mxu0 0
    %1939 = vmatpush1.bf16.xpose.msra.mxu0 0
    %1940 = vmatprep.subr.bf16.mxu0 0
    %1941 = vmatpush1.bf16.xpose.msra.mxu0 0
    %1942 = vmatprep.mubr.bf16.mxu0 0
    %1943 = vmatmul.mubr.bf16.gmra.mrb[0].mxu0 %v1887
    %v1944 = vpop.f32.mrb[0].mxu0
    %v1945 = vadd.f32 0.0, %v1944
    %v1946 = vpop.f32.mrb[0].mxu0
    %v1947 = vpop.f32.mrb[0].mxu0
    %v1948 = vadd.f32 0.0, %v1947
    %v1949 = vpop.f32.mrb[0].mxu0
    %1950 = vmatprep.mubr.bf16.mxu0 0
    %1951 = vmatmul.mubr.bf16.gmra.mrb[0].mxu0 %v1890
    %v1952 = vpop.f32.mrb[0].mxu0
    %v1953 = vadd.f32 0.0, %v1952
    %v1954 = vpop.f32.mrb[0].mxu0
    %v1955 = vpop.f32.mrb[0].mxu0
    %v1956 = vadd.f32 0.0, %v1955
    %v1957 = vpop.f32.mrb[0].mxu0
    %1958 = vmatprep.mubr.bf16.mxu0 0
    %1959 = vmatmul.mubr.bf16.gmra.mrb[0].mxu0 %v1893
    %v1960 = vpop.f32.mrb[0].mxu0
    %v1961 = vadd.f32 0.0, %v1960
    %v1962 = vpop.f32.mrb[0].mxu0
    %v1963 = vpop.f32.mrb[0].mxu0
    %v1964 = vadd.f32 0.0, %v1963
    %v1965 = vpop.f32.mrb[0].mxu0
    %1966 = vmatprep.mubr.bf16.mxu0 0
    %1967 = vmatmul.mubr.bf16.gmra.mrb[0].mxu0 %v1896
    %v1968 = vpop.f32.mrb[0].mxu0
    %v1969 = vadd.f32 0.0, %v1968
    %v1970 = vpop.f32.mrb[0].mxu0
    %v1971 = vpop.f32.mrb[0].mxu0
    %v1972 = vadd.f32 0.0, %v1971
    %v1973 = vpop.f32.mrb[0].mxu0
    %1974 = vdwg.mxu0
    %v1975 = vsel %vm392, %v1945, -inf
    %1976 = vmax.xlane.f32.xlu0 %v1975
    %v1977 = vpop.xlane.xlu0 %1976
    %v1978 = vsel %vm392, %v1948, -inf
    %1979 = vmax.xlane.f32.xlu0 %v1978
    %v1980 = vpop.xlane.xlu0 %1979
    %v1981 = vsel %vm392, %v1953, -inf
    %1982 = vmax.xlane.f32.xlu0 %v1981
    %v1983 = vpop.xlane.xlu0 %1982
    %v1984 = vsel %vm392, %v1956, -inf
    %1985 = vmax.xlane.f32.xlu0 %v1984
    %v1986 = vpop.xlane.xlu0 %1985
    %v1987 = vsel %vm392, %v1961, -inf
    %1988 = vmax.xlane.f32.xlu0 %v1987
    %v1989 = vpop.xlane.xlu0 %1988
    %v1990 = vsel %vm392, %v1964, -inf
    %1991 = vmax.xlane.f32.xlu0 %v1990
    %v1992 = vpop.xlane.xlu0 %1991
    %v1993 = vsel %vm392, %v1969, -inf
    %1994 = vmax.xlane.f32.xlu0 %v1993
    %v1995 = vpop.xlane.xlu0 %1994
    %v1996 = vsel %vm392, %v1972, -inf
    %1997 = vmax.xlane.f32.xlu0 %v1996
    %v1998 = vpop.xlane.xlu0 %1997
    %v1999 = vsub.f32 %v1945, %v1977
    %v2000 = vsub.f32 %v1948, %v1980
    %v2001 = vsub.f32 %v1953, %v1983
    %v2002 = vsub.f32 %v1956, %v1986
    %v2003 = vsub.f32 %v1961, %v1989
    %v2004 = vsub.f32 %v1964, %v1992
    %v2005 = vsub.f32 %v1969, %v1995
    %v2006 = vsub.f32 %v1972, %v1998
    %v2007 = vmul.f32 %v1999, 1.442695
    %v2008 = vpow.pop %v2007
    %v2009 = vmul.f32 %v2000, 1.442695
    %v2010 = vpow.pop %v2009
    %v2011 = vmul.f32 %v2001, 1.442695
    %v2012 = vpow.pop %v2011
    %v2013 = vmul.f32 %v2002, 1.442695
    %v2014 = vpow.pop %v2013
    %v2015 = vmul.f32 %v2003, 1.442695
    %v2016 = vpow.pop %v2015
    %v2017 = vmul.f32 %v2004, 1.442695
    %v2018 = vpow.pop %v2017
    %v2019 = vmul.f32 %v2005, 1.442695
    %v2020 = vpow.pop %v2019
    %v2021 = vmul.f32 %v2006, 1.442695
    %v2022 = vpow.pop %v2021
    %v2023 = vsel %vm392, %v2008, 0.0
    %2024 = vadd.xlane.f32.xlu0 %v2023
    %v2025 = vpop.xlane.xlu0 %2024
    %v2026 = vsel %vm392, %v2010, 0.0
    %2027 = vadd.xlane.f32.xlu0 %v2026
    %v2028 = vpop.xlane.xlu0 %2027
    %v2029 = vsel %vm392, %v2012, 0.0
    %2030 = vadd.xlane.f32.xlu0 %v2029
    %v2031 = vpop.xlane.xlu0 %2030
    %v2032 = vsel %vm392, %v2014, 0.0
    %2033 = vadd.xlane.f32.xlu0 %v2032
    %v2034 = vpop.xlane.xlu0 %2033
    %v2035 = vsel %vm392, %v2016, 0.0
    %2036 = vadd.xlane.f32.xlu0 %v2035
    %v2037 = vpop.xlane.xlu0 %2036
    %v2038 = vsel %vm392, %v2018, 0.0
    %2039 = vadd.xlane.f32.xlu0 %v2038
    %v2040 = vpop.xlane.xlu0 %2039
    %v2041 = vsel %vm392, %v2020, 0.0
    %2042 = vadd.xlane.f32.xlu0 %v2041
    %v2043 = vpop.xlane.xlu0 %2042
    %v2044 = vsel %vm392, %v2022, 0.0
    %2045 = vadd.xlane.f32.xlu0 %v2044
    %v2046 = vpop.xlane.xlu0 %2045
    %v2047 = vrcp.pop %v2025
    %v2048 = vrcp.pop %v2028
    %v2049 = vrcp.pop %v2031
    %v2050 = vrcp.pop %v2034
    %v2051 = vrcp.pop %v2037
    %v2052 = vrcp.pop %v2040
    %v2053 = vrcp.pop %v2043
    %v2054 = vrcp.pop %v2046
    %v2055 = vmul.f32 %v2008, %v2047
    %v2056 = vmul.f32 %v2010, %v2048
    %v2057 = vmul.f32 %v2012, %v2049
    %v2058 = vmul.f32 %v2014, %v2050
    %v2059 = vmul.f32 %v2016, %v2051
    %v2060 = vmul.f32 %v2018, %v2052
    %v2061 = vmul.f32 %v2020, %v2053
    %v2062 = vmul.f32 %v2022, %v2054
    %s2063 = scalar_lea.vmem [#allocation10], 320
    %2064 = vst.msk [vmem:[%s2063] sm:$0xff] %vm392, %v2055
    %2065 = vst.msk [vmem:[%s2063 + $0x8] sm:$0xff] %vm392, %v2056
    %2066 = vst.msk [vmem:[%s2063 + $0x10] sm:$0xff] %vm392, %v2057
    %2067 = vst.msk [vmem:[%s2063 + $0x18] sm:$0xff] %vm392, %v2058
    %2068 = vst.msk [vmem:[%s2063 + $0x20] sm:$0xff] %vm392, %v2059
    %2069 = vst.msk [vmem:[%s2063 + $0x28] sm:$0xff] %vm392, %v2060
    %2070 = vst.msk [vmem:[%s2063 + $0x30] sm:$0xff] %vm392, %v2061
    %2071 = vst.msk [vmem:[%s2063 + $0x38] sm:$0xff] %vm392, %v2062
    %v2072 = vpack.c.bf16 %v2056, %v2055
    %v2073 = vpack.c.bf16 %v2058, %v2057
    %v2074 = vpack.c.bf16 %v2060, %v2059
    %v2075 = vpack.c.bf16 %v2062, %v2061
    %2076 = vrot.lane.b32.xlu0 %v282, 60
    %v2077 = vpop.permute.xlu0 %2076
    %2078 = vrot.lane.b32.xlu0 %v283, 60
    %v2079 = vpop.permute.xlu0 %2078
    %2080 = vrot.lane.b32.xlu0 %v284, 60
    %v2081 = vpop.permute.xlu0 %2080
    %2082 = vrot.lane.b32.xlu0 %v285, 60
    %v2083 = vpop.permute.xlu0 %2082
    %v2089 = vsel %vm392, %v2072, 0
    %v2092 = vsel %vm392, %v2073, 0
    %v2095 = vsel %vm392, %v2074, 0
    %v2098 = vsel %vm392, %v2075, 0
    %2100 = vmatprep.subr.bf16.mxu0 0
    %2101 = vmatpush1.bf16.msra.mxu0 %v2077
    %2102 = vmatprep.subr.bf16.mxu0 0
    %2103 = vmatpush1.bf16.msra.mxu0 %v2079
    %2104 = vmatprep.subr.bf16.mxu0 0
    %2105 = vmatpush1.bf16.msra.mxu0 %v2081
    %2106 = vmatprep.subr.bf16.mxu0 0
    %2107 = vmatpush1.bf16.msra.mxu0 %v2083
    %2108 = vmatprep.subr.bf16.mxu0 0
    %2109 = vmatpush1.bf16.msra.mxu0 0
    %2110 = vmatprep.subr.bf16.mxu0 0
    %2111 = vmatpush1.bf16.msra.mxu0 0
    %2112 = vmatprep.subr.bf16.mxu0 0
    %2113 = vmatpush1.bf16.msra.mxu0 0
    %2114 = vmatprep.subr.bf16.mxu0 0
    %2115 = vmatpush1.bf16.msra.mxu0 0
    %2116 = vmatprep.subr.bf16.mxu0 0
    %2117 = vmatpush1.bf16.msra.mxu0 0
    %2118 = vmatprep.subr.bf16.mxu0 0
    %2119 = vmatpush1.bf16.msra.mxu0 0
    %2120 = vmatprep.subr.bf16.mxu0 0
    %2121 = vmatpush1.bf16.msra.mxu0 0
    %2122 = vmatprep.subr.bf16.mxu0 0
    %2123 = vmatpush1.bf16.msra.mxu0 0
    %2124 = vmatprep.subr.bf16.mxu0 0
    %2125 = vmatpush1.bf16.msra.mxu0 0
    %2126 = vmatprep.subr.bf16.mxu0 0
    %2127 = vmatpush1.bf16.msra.mxu0 0
    %2128 = vmatprep.subr.bf16.mxu0 0
    %2129 = vmatpush1.bf16.msra.mxu0 0
    %2130 = vmatprep.subr.bf16.mxu0 0
    %2131 = vmatpush1.bf16.msra.mxu0 0
    %2132 = vmatprep.mubr.bf16.mxu0 0
    %2133 = vmatmul.mubr.bf16.gmra.mrb[0].mxu0 %v2089
    %v2134 = vpop.f32.mrb[0].mxu0
    %v2135 = vadd.f32 0.0, %v2134
    %v2136 = vpop.f32.mrb[0].mxu0
    %v2137 = vpop.f32.mrb[0].mxu0
    %v2138 = vadd.f32 0.0, %v2137
    %v2139 = vpop.f32.mrb[0].mxu0
    %2140 = vmatprep.mubr.bf16.mxu0 0
    %2141 = vmatmul.mubr.bf16.gmra.mrb[0].mxu0 %v2092
    %v2142 = vpop.f32.mrb[0].mxu0
    %v2143 = vadd.f32 0.0, %v2142
    %v2144 = vpop.f32.mrb[0].mxu0
    %v2145 = vpop.f32.mrb[0].mxu0
    %v2146 = vadd.f32 0.0, %v2145
    %v2147 = vpop.f32.mrb[0].mxu0
    %2148 = vmatprep.mubr.bf16.mxu0 0
    %2149 = vmatmul.mubr.bf16.gmra.mrb[0].mxu0 %v2095
    %v2150 = vpop.f32.mrb[0].mxu0
    %v2151 = vadd.f32 0.0, %v2150
    %v2152 = vpop.f32.mrb[0].mxu0
    %v2153 = vpop.f32.mrb[0].mxu0
    %v2154 = vadd.f32 0.0, %v2153
    %v2155 = vpop.f32.mrb[0].mxu0
    %2156 = vmatprep.mubr.bf16.mxu0 0
    %2157 = vmatmul.mubr.bf16.gmra.mrb[0].mxu0 %v2098
    %v2158 = vpop.f32.mrb[0].mxu0
    %v2159 = vadd.f32 0.0, %v2158
    %v2160 = vpop.f32.mrb[0].mxu0
    %v2161 = vpop.f32.mrb[0].mxu0
    %v2162 = vadd.f32 0.0, %v2161
    %v2163 = vpop.f32.mrb[0].mxu0
    %2164 = vdwg.mxu0
    %v2165 = vpack.c.bf16 %v2138, %v2135
    %v2166 = vpack.c.bf16 %v2146, %v2143
    %v2167 = vpack.c.bf16 %v2154, %v2151
    %v2168 = vpack.c.bf16 %v2162, %v2159
    %2173 = vrot.lane.b32.xlu0 %v2165, 20
    %v2174 = vpop.permute.xlu0 %2173
    %2175 = vrot.lane.b32.xlu0 %v2166, 20
    %v2176 = vpop.permute.xlu0 %2175
    %2177 = vrot.lane.b32.xlu0 %v2167, 20
    %v2178 = vpop.permute.xlu0 %2177
    %2179 = vrot.lane.b32.xlu0 %v2168, 20
    %v2180 = vpop.permute.xlu0 %2179
    %vm2185 = vcmask 195744
    %2186 = vst.msk [vmem:[#allocation2] sm:$0xff] %vm2185, %v2174
    %2187 = vst.msk [vmem:[#allocation2 + $0x8] sm:$0xff] %vm2185, %v2176
    %2188 = vst.msk [vmem:[#allocation2 + $0x10] sm:$0xff] %vm2185, %v2178
    %2189 = vst.msk [vmem:[#allocation2 + $0x18] sm:$0xff] %vm2185, %v2180
    %2190 = vrot.lane.b32.xlu0 %v282, 56
    %v2191 = vpop.permute.xlu0 %2190
    %2192 = vrot.lane.b32.xlu0 %v283, 56
    %v2193 = vpop.permute.xlu0 %2192
    %2194 = vrot.lane.b32.xlu0 %v284, 56
    %v2195 = vpop.permute.xlu0 %2194
    %2196 = vrot.lane.b32.xlu0 %v285, 56
    %v2197 = vpop.permute.xlu0 %2196
    %2198 = vrot.lane.b32.xlu0 %v282, 52
    %v2199 = vpop.permute.xlu0 %2198
    %2200 = vrot.lane.b32.xlu0 %v283, 52
    %v2201 = vpop.permute.xlu0 %2200
    %2202 = vrot.lane.b32.xlu0 %v284, 52
    %v2203 = vpop.permute.xlu0 %2202
    %2204 = vrot.lane.b32.xlu0 %v285, 52
    %v2205 = vpop.permute.xlu0 %2204
    %v2207 = vsel %vm302, %v2191, 0
    %v2210 = vsel %vm302, %v2193, 0
    %v2213 = vsel %vm302, %v2195, 0
    %v2216 = vsel %vm302, %v2197, 0
    %v2219 = vsel %vm302, %v2199, 0
    %v2222 = vsel %vm302, %v2201, 0
    %v2225 = vsel %vm302, %v2203, 0
    %v2228 = vsel %vm302, %v2205, 0
    %2230 = vmatprep.subr.bf16.mxu0 0
    %2231 = vmatpush1.bf16.xpose.msra.mxu0 %v2219
    %2232 = vmatprep.subr.bf16.mxu0 0
    %2233 = vmatpush1.bf16.xpose.msra.mxu0 %v2222
    %2234 = vmatprep.subr.bf16.mxu0 0
    %2235 = vmatpush1.bf16.xpose.msra.mxu0 %v2225
    %2236 = vmatprep.subr.bf16.mxu0 0
    %2237 = vmatpush1.bf16.xpose.msra.mxu0 %v2228
    %2238 = vmatprep.subr.bf16.mxu0 0
    %2239 = vmatpush1.bf16.xpose.msra.mxu0 0
    %2240 = vmatprep.subr.bf16.mxu0 0
    %2241 = vmatpush1.bf16.xpose.msra.mxu0 0
    %2242 = vmatprep.subr.bf16.mxu0 0
    %2243 = vmatpush1.bf16.xpose.msra.mxu0 0
    %2244 = vmatprep.subr.bf16.mxu0 0
    %2245 = vmatpush1.bf16.xpose.msra.mxu0 0
    %2246 = vmatprep.subr.bf16.mxu0 0
    %2247 = vmatpush1.bf16.xpose.msra.mxu0 0
    %2248 = vmatprep.subr.bf16.mxu0 0
    %2249 = vmatpush1.bf16.xpose.msra.mxu0 0
    %2250 = vmatprep.subr.bf16.mxu0 0
    %2251 = vmatpush1.bf16.xpose.msra.mxu0 0
    %2252 = vmatprep.subr.bf16.mxu0 0
    %2253 = vmatpush1.bf16.xpose.msra.mxu0 0
    %2254 = vmatprep.subr.bf16.mxu0 0
    %2255 = vmatpush1.bf16.xpose.msra.mxu0 0
    %2256 = vmatprep.subr.bf16.mxu0 0
    %2257 = vmatpush1.bf16.xpose.msra.mxu0 0
    %2258 = vmatprep.subr.bf16.mxu0 0
    %2259 = vmatpush1.bf16.xpose.msra.mxu0 0
    %2260 = vmatprep.subr.bf16.mxu0 0
    %2261 = vmatpush1.bf16.xpose.msra.mxu0 0
    %2262 = vmatprep.mubr.bf16.mxu0 0
    %2263 = vmatmul.mubr.bf16.gmra.mrb[0].mxu0 %v2207
    %v2264 = vpop.f32.mrb[0].mxu0
    %v2265 = vadd.f32 0.0, %v2264
    %v2266 = vpop.f32.mrb[0].mxu0
    %v2267 = vpop.f32.mrb[0].mxu0
    %v2268 = vadd.f32 0.0, %v2267
    %v2269 = vpop.f32.mrb[0].mxu0
    %2270 = vmatprep.mubr.bf16.mxu0 0
    %2271 = vmatmul.mubr.bf16.gmra.mrb[0].mxu0 %v2210
    %v2272 = vpop.f32.mrb[0].mxu0
    %v2273 = vadd.f32 0.0, %v2272
    %v2274 = vpop.f32.mrb[0].mxu0
    %v2275 = vpop.f32.mrb[0].mxu0
    %v2276 = vadd.f32 0.0, %v2275
    %v2277 = vpop.f32.mrb[0].mxu0
    %2278 = vmatprep.mubr.bf16.mxu0 0
    %2279 = vmatmul.mubr.bf16.gmra.mrb[0].mxu0 %v2213
    %v2280 = vpop.f32.mrb[0].mxu0
    %v2281 = vadd.f32 0.0, %v2280
    %v2282 = vpop.f32.mrb[0].mxu0
    %v2283 = vpop.f32.mrb[0].mxu0
    %v2284 = vadd.f32 0.0, %v2283
    %v2285 = vpop.f32.mrb[0].mxu0
    %2286 = vmatprep.mubr.bf16.mxu0 0
    %2287 = vmatmul.mubr.bf16.gmra.mrb[0].mxu0 %v2216
    %v2288 = vpop.f32.mrb[0].mxu0
    %v2289 = vadd.f32 0.0, %v2288
    %v2290 = vpop.f32.mrb[0].mxu0
    %v2291 = vpop.f32.mrb[0].mxu0
    %v2292 = vadd.f32 0.0, %v2291
    %v2293 = vpop.f32.mrb[0].mxu0
    %2294 = vdwg.mxu0
    %v2295 = vsel %vm392, %v2265, -inf
    %2296 = vmax.xlane.f32.xlu0 %v2295
    %v2297 = vpop.xlane.xlu0 %2296
    %v2298 = vsel %vm392, %v2268, -inf
    %2299 = vmax.xlane.f32.xlu0 %v2298
    %v2300 = vpop.xlane.xlu0 %2299
    %v2301 = vsel %vm392, %v2273, -inf
    %2302 = vmax.xlane.f32.xlu0 %v2301
    %v2303 = vpop.xlane.xlu0 %2302
    %v2304 = vsel %vm392, %v2276, -inf
    %2305 = vmax.xlane.f32.xlu0 %v2304
    %v2306 = vpop.xlane.xlu0 %2305
    %v2307 = vsel %vm392, %v2281, -inf
    %2308 = vmax.xlane.f32.xlu0 %v2307
    %v2309 = vpop.xlane.xlu0 %2308
    %v2310 = vsel %vm392, %v2284, -inf
    %2311 = vmax.xlane.f32.xlu0 %v2310
    %v2312 = vpop.xlane.xlu0 %2311
    %v2313 = vsel %vm392, %v2289, -inf
    %2314 = vmax.xlane.f32.xlu0 %v2313
    %v2315 = vpop.xlane.xlu0 %2314
    %v2316 = vsel %vm392, %v2292, -inf
    %2317 = vmax.xlane.f32.xlu0 %v2316
    %v2318 = vpop.xlane.xlu0 %2317
    %v2319 = vsub.f32 %v2265, %v2297
    %v2320 = vsub.f32 %v2268, %v2300
    %v2321 = vsub.f32 %v2273, %v2303
    %v2322 = vsub.f32 %v2276, %v2306
    %v2323 = vsub.f32 %v2281, %v2309
    %v2324 = vsub.f32 %v2284, %v2312
    %v2325 = vsub.f32 %v2289, %v2315
    %v2326 = vsub.f32 %v2292, %v2318
    %v2327 = vmul.f32 %v2319, 1.442695
    %v2328 = vpow.pop %v2327
    %v2329 = vmul.f32 %v2320, 1.442695
    %v2330 = vpow.pop %v2329
    %v2331 = vmul.f32 %v2321, 1.442695
    %v2332 = vpow.pop %v2331
    %v2333 = vmul.f32 %v2322, 1.442695
    %v2334 = vpow.pop %v2333
    %v2335 = vmul.f32 %v2323, 1.442695
    %v2336 = vpow.pop %v2335
    %v2337 = vmul.f32 %v2324, 1.442695
    %v2338 = vpow.pop %v2337
    %v2339 = vmul.f32 %v2325, 1.442695
    %v2340 = vpow.pop %v2339
    %v2341 = vmul.f32 %v2326, 1.442695
    %v2342 = vpow.pop %v2341
    %v2343 = vsel %vm392, %v2328, 0.0
    %2344 = vadd.xlane.f32.xlu0 %v2343
    %v2345 = vpop.xlane.xlu0 %2344
    %v2346 = vsel %vm392, %v2330, 0.0
    %2347 = vadd.xlane.f32.xlu0 %v2346
    %v2348 = vpop.xlane.xlu0 %2347
    %v2349 = vsel %vm392, %v2332, 0.0
    %2350 = vadd.xlane.f32.xlu0 %v2349
    %v2351 = vpop.xlane.xlu0 %2350
    %v2352 = vsel %vm392, %v2334, 0.0
    %2353 = vadd.xlane.f32.xlu0 %v2352
    %v2354 = vpop.xlane.xlu0 %2353
    %v2355 = vsel %vm392, %v2336, 0.0
    %2356 = vadd.xlane.f32.xlu0 %v2355
    %v2357 = vpop.xlane.xlu0 %2356
    %v2358 = vsel %vm392, %v2338, 0.0
    %2359 = vadd.xlane.f32.xlu0 %v2358
    %v2360 = vpop.xlane.xlu0 %2359
    %v2361 = vsel %vm392, %v2340, 0.0
    %2362 = vadd.xlane.f32.xlu0 %v2361
    %v2363 = vpop.xlane.xlu0 %2362
    %v2364 = vsel %vm392, %v2342, 0.0
    %2365 = vadd.xlane.f32.xlu0 %v2364
    %v2366 = vpop.xlane.xlu0 %2365
    %v2367 = vrcp.pop %v2345
    %v2368 = vrcp.pop %v2348
    %v2369 = vrcp.pop %v2351
    %v2370 = vrcp.pop %v2354
    %v2371 = vrcp.pop %v2357
    %v2372 = vrcp.pop %v2360
    %v2373 = vrcp.pop %v2363
    %v2374 = vrcp.pop %v2366
    %v2375 = vmul.f32 %v2328, %v2367
    %v2376 = vmul.f32 %v2330, %v2368
    %v2377 = vmul.f32 %v2332, %v2369
    %v2378 = vmul.f32 %v2334, %v2370
    %v2379 = vmul.f32 %v2336, %v2371
    %v2380 = vmul.f32 %v2338, %v2372
    %v2381 = vmul.f32 %v2340, %v2373
    %v2382 = vmul.f32 %v2342, %v2374
    %s2383 = scalar_lea.vmem [#allocation10], 384
    %2384 = vst.msk [vmem:[%s2383] sm:$0xff] %vm392, %v2375
    %2385 = vst.msk [vmem:[%s2383 + $0x8] sm:$0xff] %vm392, %v2376
    %2386 = vst.msk [vmem:[%s2383 + $0x10] sm:$0xff] %vm392, %v2377
    %2387 = vst.msk [vmem:[%s2383 + $0x18] sm:$0xff] %vm392, %v2378
    %2388 = vst.msk [vmem:[%s2383 + $0x20] sm:$0xff] %vm392, %v2379
    %2389 = vst.msk [vmem:[%s2383 + $0x28] sm:$0xff] %vm392, %v2380
    %2390 = vst.msk [vmem:[%s2383 + $0x30] sm:$0xff] %vm392, %v2381
    %2391 = vst.msk [vmem:[%s2383 + $0x38] sm:$0xff] %vm392, %v2382
    %v2392 = vpack.c.bf16 %v2376, %v2375
    %v2393 = vpack.c.bf16 %v2378, %v2377
    %v2394 = vpack.c.bf16 %v2380, %v2379
    %v2395 = vpack.c.bf16 %v2382, %v2381
    %2396 = vrot.lane.b32.xlu0 %v282, 48
    %v2397 = vpop.permute.xlu0 %2396
    %2398 = vrot.lane.b32.xlu0 %v283, 48
    %v2399 = vpop.permute.xlu0 %2398
    %2400 = vrot.lane.b32.xlu0 %v284, 48
    %v2401 = vpop.permute.xlu0 %2400
    %2402 = vrot.lane.b32.xlu0 %v285, 48
    %v2403 = vpop.permute.xlu0 %2402
    %v2409 = vsel %vm392, %v2392, 0
    %v2412 = vsel %vm392, %v2393, 0
    %v2415 = vsel %vm392, %v2394, 0
    %v2418 = vsel %vm392, %v2395, 0
    %2420 = vmatprep.subr.bf16.mxu0 0
    %2421 = vmatpush1.bf16.msra.mxu0 %v2397
    %2422 = vmatprep.subr.bf16.mxu0 0
    %2423 = vmatpush1.bf16.msra.mxu0 %v2399
    %2424 = vmatprep.subr.bf16.mxu0 0
    %2425 = vmatpush1.bf16.msra.mxu0 %v2401
    %2426 = vmatprep.subr.bf16.mxu0 0
    %2427 = vmatpush1.bf16.msra.mxu0 %v2403
    %2428 = vmatprep.subr.bf16.mxu0 0
    %2429 = vmatpush1.bf16.msra.mxu0 0
    %2430 = vmatprep.subr.bf16.mxu0 0
    %2431 = vmatpush1.bf16.msra.mxu0 0
    %2432 = vmatprep.subr.bf16.mxu0 0
    %2433 = vmatpush1.bf16.msra.mxu0 0
    %2434 = vmatprep.subr.bf16.mxu0 0
    %2435 = vmatpush1.bf16.msra.mxu0 0
    %2436 = vmatprep.subr.bf16.mxu0 0
    %2437 = vmatpush1.bf16.msra.mxu0 0
    %2438 = vmatprep.subr.bf16.mxu0 0
    %2439 = vmatpush1.bf16.msra.mxu0 0
    %2440 = vmatprep.subr.bf16.mxu0 0
    %2441 = vmatpush1.bf16.msra.mxu0 0
    %2442 = vmatprep.subr.bf16.mxu0 0
    %2443 = vmatpush1.bf16.msra.mxu0 0
    %2444 = vmatprep.subr.bf16.mxu0 0
    %2445 = vmatpush1.bf16.msra.mxu0 0
    %2446 = vmatprep.subr.bf16.mxu0 0
    %2447 = vmatpush1.bf16.msra.mxu0 0
    %2448 = vmatprep.subr.bf16.mxu0 0
    %2449 = vmatpush1.bf16.msra.mxu0 0
    %2450 = vmatprep.subr.bf16.mxu0 0
    %2451 = vmatpush1.bf16.msra.mxu0 0
    %2452 = vmatprep.mubr.bf16.mxu0 0
    %2453 = vmatmul.mubr.bf16.gmra.mrb[0].mxu0 %v2409
    %v2454 = vpop.f32.mrb[0].mxu0
    %v2455 = vadd.f32 0.0, %v2454
    %v2456 = vpop.f32.mrb[0].mxu0
    %v2457 = vpop.f32.mrb[0].mxu0
    %v2458 = vadd.f32 0.0, %v2457
    %v2459 = vpop.f32.mrb[0].mxu0
    %2460 = vmatprep.mubr.bf16.mxu0 0
    %2461 = vmatmul.mubr.bf16.gmra.mrb[0].mxu0 %v2412
    %v2462 = vpop.f32.mrb[0].mxu0
    %v2463 = vadd.f32 0.0, %v2462
    %v2464 = vpop.f32.mrb[0].mxu0
    %v2465 = vpop.f32.mrb[0].mxu0
    %v2466 = vadd.f32 0.0, %v2465
    %v2467 = vpop.f32.mrb[0].mxu0
    %2468 = vmatprep.mubr.bf16.mxu0 0
    %2469 = vmatmul.mubr.bf16.gmra.mrb[0].mxu0 %v2415
    %v2470 = vpop.f32.mrb[0].mxu0
    %v2471 = vadd.f32 0.0, %v2470
    %v2472 = vpop.f32.mrb[0].mxu0
    %v2473 = vpop.f32.mrb[0].mxu0
    %v2474 = vadd.f32 0.0, %v2473
    %v2475 = vpop.f32.mrb[0].mxu0
    %2476 = vmatprep.mubr.bf16.mxu0 0
    %2477 = vmatmul.mubr.bf16.gmra.mrb[0].mxu0 %v2418
    %v2478 = vpop.f32.mrb[0].mxu0
    %v2479 = vadd.f32 0.0, %v2478
    %v2480 = vpop.f32.mrb[0].mxu0
    %v2481 = vpop.f32.mrb[0].mxu0
    %v2482 = vadd.f32 0.0, %v2481
    %v2483 = vpop.f32.mrb[0].mxu0
    %2484 = vdwg.mxu0
    %v2485 = vpack.c.bf16 %v2458, %v2455
    %v2486 = vpack.c.bf16 %v2466, %v2463
    %v2487 = vpack.c.bf16 %v2474, %v2471
    %v2488 = vpack.c.bf16 %v2482, %v2479
    %2493 = vrot.lane.b32.xlu0 %v2485, 24
    %v2494 = vpop.permute.xlu0 %2493
    %2495 = vrot.lane.b32.xlu0 %v2486, 24
    %v2496 = vpop.permute.xlu0 %2495
    %2497 = vrot.lane.b32.xlu0 %v2487, 24
    %v2498 = vpop.permute.xlu0 %2497
    %2499 = vrot.lane.b32.xlu0 %v2488, 24
    %v2500 = vpop.permute.xlu0 %2499
    %vm2505 = vcmask 228544
    %2506 = vst.msk [vmem:[#allocation2] sm:$0xff] %vm2505, %v2494
    %2507 = vst.msk [vmem:[#allocation2 + $0x8] sm:$0xff] %vm2505, %v2496
    %2508 = vst.msk [vmem:[#allocation2 + $0x10] sm:$0xff] %vm2505, %v2498
    %2509 = vst.msk [vmem:[#allocation2 + $0x18] sm:$0xff] %vm2505, %v2500
    %2510 = vrot.lane.b32.xlu0 %v282, 44
    %v2511 = vpop.permute.xlu0 %2510
    %2512 = vrot.lane.b32.xlu0 %v283, 44
    %v2513 = vpop.permute.xlu0 %2512
    %2514 = vrot.lane.b32.xlu0 %v284, 44
    %v2515 = vpop.permute.xlu0 %2514
    %2516 = vrot.lane.b32.xlu0 %v285, 44
    %v2517 = vpop.permute.xlu0 %2516
    %2518 = vrot.lane.b32.xlu0 %v282, 40
    %v2519 = vpop.permute.xlu0 %2518
    %2520 = vrot.lane.b32.xlu0 %v283, 40
    %v2521 = vpop.permute.xlu0 %2520
    %2522 = vrot.lane.b32.xlu0 %v284, 40
    %v2523 = vpop.permute.xlu0 %2522
    %2524 = vrot.lane.b32.xlu0 %v285, 40
    %v2525 = vpop.permute.xlu0 %2524
    %v2527 = vsel %vm302, %v2511, 0
    %v2530 = vsel %vm302, %v2513, 0
    %v2533 = vsel %vm302, %v2515, 0
    %v2536 = vsel %vm302, %v2517, 0
    %v2539 = vsel %vm302, %v2519, 0
    %v2542 = vsel %vm302, %v2521, 0
    %v2545 = vsel %vm302, %v2523, 0
    %v2548 = vsel %vm302, %v2525, 0
    %2550 = vmatprep.subr.bf16.mxu0 0
    %2551 = vmatpush1.bf16.xpose.msra.mxu0 %v2539
    %2552 = vmatprep.subr.bf16.mxu0 0
    %2553 = vmatpush1.bf16.xpose.msra.mxu0 %v2542
    %2554 = vmatprep.subr.bf16.mxu0 0
    %2555 = vmatpush1.bf16.xpose.msra.mxu0 %v2545
    %2556 = vmatprep.subr.bf16.mxu0 0
    %2557 = vmatpush1.bf16.xpose.msra.mxu0 %v2548
    %2558 = vmatprep.subr.bf16.mxu0 0
    %2559 = vmatpush1.bf16.xpose.msra.mxu0 0
    %2560 = vmatprep.subr.bf16.mxu0 0
    %2561 = vmatpush1.bf16.xpose.msra.mxu0 0
    %2562 = vmatprep.subr.bf16.mxu0 0
    %2563 = vmatpush1.bf16.xpose.msra.mxu0 0
    %2564 = vmatprep.subr.bf16.mxu0 0
    %2565 = vmatpush1.bf16.xpose.msra.mxu0 0
    %2566 = vmatprep.subr.bf16.mxu0 0
    %2567 = vmatpush1.bf16.xpose.msra.mxu0 0
    %2568 = vmatprep.subr.bf16.mxu0 0
    %2569 = vmatpush1.bf16.xpose.msra.mxu0 0
    %2570 = vmatprep.subr.bf16.mxu0 0
    %2571 = vmatpush1.bf16.xpose.msra.mxu0 0
    %2572 = vmatprep.subr.bf16.mxu0 0
    %2573 = vmatpush1.bf16.xpose.msra.mxu0 0
    %2574 = vmatprep.subr.bf16.mxu0 0
    %2575 = vmatpush1.bf16.xpose.msra.mxu0 0
    %2576 = vmatprep.subr.bf16.mxu0 0
    %2577 = vmatpush1.bf16.xpose.msra.mxu0 0
    %2578 = vmatprep.subr.bf16.mxu0 0
    %2579 = vmatpush1.bf16.xpose.msra.mxu0 0
    %2580 = vmatprep.subr.bf16.mxu0 0
    %2581 = vmatpush1.bf16.xpose.msra.mxu0 0
    %2582 = vmatprep.mubr.bf16.mxu0 0
    %2583 = vmatmul.mubr.bf16.gmra.mrb[0].mxu0 %v2527
    %v2584 = vpop.f32.mrb[0].mxu0
    %v2585 = vadd.f32 0.0, %v2584
    %v2586 = vpop.f32.mrb[0].mxu0
    %v2587 = vpop.f32.mrb[0].mxu0
    %v2588 = vadd.f32 0.0, %v2587
    %v2589 = vpop.f32.mrb[0].mxu0
    %2590 = vmatprep.mubr.bf16.mxu0 0
    %2591 = vmatmul.mubr.bf16.gmra.mrb[0].mxu0 %v2530
    %v2592 = vpop.f32.mrb[0].mxu0
    %v2593 = vadd.f32 0.0, %v2592
    %v2594 = vpop.f32.mrb[0].mxu0
    %v2595 = vpop.f32.mrb[0].mxu0
    %v2596 = vadd.f32 0.0, %v2595
    %v2597 = vpop.f32.mrb[0].mxu0
    %2598 = vmatprep.mubr.bf16.mxu0 0
    %2599 = vmatmul.mubr.bf16.gmra.mrb[0].mxu0 %v2533
    %v2600 = vpop.f32.mrb[0].mxu0
    %v2601 = vadd.f32 0.0, %v2600
    %v2602 = vpop.f32.mrb[0].mxu0
    %v2603 = vpop.f32.mrb[0].mxu0
    %v2604 = vadd.f32 0.0, %v2603
    %v2605 = vpop.f32.mrb[0].mxu0
    %2606 = vmatprep.mubr.bf16.mxu0 0
    %2607 = vmatmul.mubr.bf16.gmra.mrb[0].mxu0 %v2536
    %v2608 = vpop.f32.mrb[0].mxu0
    %v2609 = vadd.f32 0.0, %v2608
    %v2610 = vpop.f32.mrb[0].mxu0
    %v2611 = vpop.f32.mrb[0].mxu0
    %v2612 = vadd.f32 0.0, %v2611
    %v2613 = vpop.f32.mrb[0].mxu0
    %2614 = vdwg.mxu0
    %v2615 = vsel %vm392, %v2585, -inf
    %2616 = vmax.xlane.f32.xlu0 %v2615
    %v2617 = vpop.xlane.xlu0 %2616
    %v2618 = vsel %vm392, %v2588, -inf
    %2619 = vmax.xlane.f32.xlu0 %v2618
    %v2620 = vpop.xlane.xlu0 %2619
    %v2621 = vsel %vm392, %v2593, -inf
    %2622 = vmax.xlane.f32.xlu0 %v2621
    %v2623 = vpop.xlane.xlu0 %2622
    %v2624 = vsel %vm392, %v2596, -inf
    %2625 = vmax.xlane.f32.xlu0 %v2624
    %v2626 = vpop.xlane.xlu0 %2625
    %v2627 = vsel %vm392, %v2601, -inf
    %2628 = vmax.xlane.f32.xlu0 %v2627
    %v2629 = vpop.xlane.xlu0 %2628
    %v2630 = vsel %vm392, %v2604, -inf
    %2631 = vmax.xlane.f32.xlu0 %v2630
    %v2632 = vpop.xlane.xlu0 %2631
    %v2633 = vsel %vm392, %v2609, -inf
    %2634 = vmax.xlane.f32.xlu0 %v2633
    %v2635 = vpop.xlane.xlu0 %2634
    %v2636 = vsel %vm392, %v2612, -inf
    %2637 = vmax.xlane.f32.xlu0 %v2636
    %v2638 = vpop.xlane.xlu0 %2637
    %v2639 = vsub.f32 %v2585, %v2617
    %v2640 = vsub.f32 %v2588, %v2620
    %v2641 = vsub.f32 %v2593, %v2623
    %v2642 = vsub.f32 %v2596, %v2626
    %v2643 = vsub.f32 %v2601, %v2629
    %v2644 = vsub.f32 %v2604, %v2632
    %v2645 = vsub.f32 %v2609, %v2635
    %v2646 = vsub.f32 %v2612, %v2638
    %v2647 = vmul.f32 %v2639, 1.442695
    %v2648 = vpow.pop %v2647
    %v2649 = vmul.f32 %v2640, 1.442695
    %v2650 = vpow.pop %v2649
    %v2651 = vmul.f32 %v2641, 1.442695
    %v2652 = vpow.pop %v2651
    %v2653 = vmul.f32 %v2642, 1.442695
    %v2654 = vpow.pop %v2653
    %v2655 = vmul.f32 %v2643, 1.442695
    %v2656 = vpow.pop %v2655
    %v2657 = vmul.f32 %v2644, 1.442695
    %v2658 = vpow.pop %v2657
    %v2659 = vmul.f32 %v2645, 1.442695
    %v2660 = vpow.pop %v2659
    %v2661 = vmul.f32 %v2646, 1.442695
    %v2662 = vpow.pop %v2661
    %v2663 = vsel %vm392, %v2648, 0.0
    %2664 = vadd.xlane.f32.xlu0 %v2663
    %v2665 = vpop.xlane.xlu0 %2664
    %v2666 = vsel %vm392, %v2650, 0.0
    %2667 = vadd.xlane.f32.xlu0 %v2666
    %v2668 = vpop.xlane.xlu0 %2667
    %v2669 = vsel %vm392, %v2652, 0.0
    %2670 = vadd.xlane.f32.xlu0 %v2669
    %v2671 = vpop.xlane.xlu0 %2670
    %v2672 = vsel %vm392, %v2654, 0.0
    %2673 = vadd.xlane.f32.xlu0 %v2672
    %v2674 = vpop.xlane.xlu0 %2673
    %v2675 = vsel %vm392, %v2656, 0.0
    %2676 = vadd.xlane.f32.xlu0 %v2675
    %v2677 = vpop.xlane.xlu0 %2676
    %v2678 = vsel %vm392, %v2658, 0.0
    %2679 = vadd.xlane.f32.xlu0 %v2678
    %v2680 = vpop.xlane.xlu0 %2679
    %v2681 = vsel %vm392, %v2660, 0.0
    %2682 = vadd.xlane.f32.xlu0 %v2681
    %v2683 = vpop.xlane.xlu0 %2682
    %v2684 = vsel %vm392, %v2662, 0.0
    %2685 = vadd.xlane.f32.xlu0 %v2684
    %v2686 = vpop.xlane.xlu0 %2685
    %v2687 = vrcp.pop %v2665
    %v2688 = vrcp.pop %v2668
    %v2689 = vrcp.pop %v2671
    %v2690 = vrcp.pop %v2674
    %v2691 = vrcp.pop %v2677
    %v2692 = vrcp.pop %v2680
    %v2693 = vrcp.pop %v2683
    %v2694 = vrcp.pop %v2686
    %v2695 = vmul.f32 %v2648, %v2687
    %v2696 = vmul.f32 %v2650, %v2688
    %v2697 = vmul.f32 %v2652, %v2689
    %v2698 = vmul.f32 %v2654, %v2690
    %v2699 = vmul.f32 %v2656, %v2691
    %v2700 = vmul.f32 %v2658, %v2692
    %v2701 = vmul.f32 %v2660, %v2693
    %v2702 = vmul.f32 %v2662, %v2694
    %s2703 = scalar_lea.vmem [#allocation10], 448
    %2704 = vst.msk [vmem:[%s2703] sm:$0xff] %vm392, %v2695
    %2705 = vst.msk [vmem:[%s2703 + $0x8] sm:$0xff] %vm392, %v2696
    %2706 = vst.msk [vmem:[%s2703 + $0x10] sm:$0xff] %vm392, %v2697
    %2707 = vst.msk [vmem:[%s2703 + $0x18] sm:$0xff] %vm392, %v2698
    %2708 = vst.msk [vmem:[%s2703 + $0x20] sm:$0xff] %vm392, %v2699
    %2709 = vst.msk [vmem:[%s2703 + $0x28] sm:$0xff] %vm392, %v2700
    %2710 = vst.msk [vmem:[%s2703 + $0x30] sm:$0xff] %vm392, %v2701
    %2711 = vst.msk [vmem:[%s2703 + $0x38] sm:$0xff] %vm392, %v2702
    %v2712 = vpack.c.bf16 %v2696, %v2695
    %v2713 = vpack.c.bf16 %v2698, %v2697
    %v2714 = vpack.c.bf16 %v2700, %v2699
    %v2715 = vpack.c.bf16 %v2702, %v2701
    %2716 = vrot.lane.b32.xlu0 %v282, 36
    %v2717 = vpop.permute.xlu0 %2716
    %2718 = vrot.lane.b32.xlu0 %v283, 36
    %v2719 = vpop.permute.xlu0 %2718
    %2720 = vrot.lane.b32.xlu0 %v284, 36
    %v2721 = vpop.permute.xlu0 %2720
    %2722 = vrot.lane.b32.xlu0 %v285, 36
    %v2723 = vpop.permute.xlu0 %2722
    %v2729 = vsel %vm392, %v2712, 0
    %v2732 = vsel %vm392, %v2713, 0
    %v2735 = vsel %vm392, %v2714, 0
    %v2738 = vsel %vm392, %v2715, 0
    %2740 = vmatprep.subr.bf16.mxu0 0
    %2741 = vmatpush1.bf16.msra.mxu0 %v2717
    %2742 = vmatprep.subr.bf16.mxu0 0
    %2743 = vmatpush1.bf16.msra.mxu0 %v2719
    %2744 = vmatprep.subr.bf16.mxu0 0
    %2745 = vmatpush1.bf16.msra.mxu0 %v2721
    %2746 = vmatprep.subr.bf16.mxu0 0
    %2747 = vmatpush1.bf16.msra.mxu0 %v2723
    %2748 = vmatprep.subr.bf16.mxu0 0
    %2749 = vmatpush1.bf16.msra.mxu0 0
    %2750 = vmatprep.subr.bf16.mxu0 0
    %2751 = vmatpush1.bf16.msra.mxu0 0
    %2752 = vmatprep.subr.bf16.mxu0 0
    %2753 = vmatpush1.bf16.msra.mxu0 0
    %2754 = vmatprep.subr.bf16.mxu0 0
    %2755 = vmatpush1.bf16.msra.mxu0 0
    %2756 = vmatprep.subr.bf16.mxu0 0
    %2757 = vmatpush1.bf16.msra.mxu0 0
    %2758 = vmatprep.subr.bf16.mxu0 0
    %2759 = vmatpush1.bf16.msra.mxu0 0
    %2760 = vmatprep.subr.bf16.mxu0 0
    %2761 = vmatpush1.bf16.msra.mxu0 0
    %2762 = vmatprep.subr.bf16.mxu0 0
    %2763 = vmatpush1.bf16.msra.mxu0 0
    %2764 = vmatprep.subr.bf16.mxu0 0
    %2765 = vmatpush1.bf16.msra.mxu0 0
    %2766 = vmatprep.subr.bf16.mxu0 0
    %2767 = vmatpush1.bf16.msra.mxu0 0
    %2768 = vmatprep.subr.bf16.mxu0 0
    %2769 = vmatpush1.bf16.msra.mxu0 0
    %2770 = vmatprep.subr.bf16.mxu0 0
    %2771 = vmatpush1.bf16.msra.mxu0 0
    %2772 = vmatprep.mubr.bf16.mxu0 0
    %2773 = vmatmul.mubr.bf16.gmra.mrb[0].mxu0 %v2729
    %v2774 = vpop.f32.mrb[0].mxu0
    %v2775 = vadd.f32 0.0, %v2774
    %v2776 = vpop.f32.mrb[0].mxu0
    %v2777 = vpop.f32.mrb[0].mxu0
    %v2778 = vadd.f32 0.0, %v2777
    %v2779 = vpop.f32.mrb[0].mxu0
    %2780 = vmatprep.mubr.bf16.mxu0 0
    %2781 = vmatmul.mubr.bf16.gmra.mrb[0].mxu0 %v2732
    %v2782 = vpop.f32.mrb[0].mxu0
    %v2783 = vadd.f32 0.0, %v2782
    %v2784 = vpop.f32.mrb[0].mxu0
    %v2785 = vpop.f32.mrb[0].mxu0
    %v2786 = vadd.f32 0.0, %v2785
    %v2787 = vpop.f32.mrb[0].mxu0
    %2788 = vmatprep.mubr.bf16.mxu0 0
    %2789 = vmatmul.mubr.bf16.gmra.mrb[0].mxu0 %v2735
    %v2790 = vpop.f32.mrb[0].mxu0
    %v2791 = vadd.f32 0.0, %v2790
    %v2792 = vpop.f32.mrb[0].mxu0
    %v2793 = vpop.f32.mrb[0].mxu0
    %v2794 = vadd.f32 0.0, %v2793
    %v2795 = vpop.f32.mrb[0].mxu0
    %2796 = vmatprep.mubr.bf16.mxu0 0
    %2797 = vmatmul.mubr.bf16.gmra.mrb[0].mxu0 %v2738
    %v2798 = vpop.f32.mrb[0].mxu0
    %v2799 = vadd.f32 0.0, %v2798
    %v2800 = vpop.f32.mrb[0].mxu0
    %v2801 = vpop.f32.mrb[0].mxu0
    %v2802 = vadd.f32 0.0, %v2801
    %v2803 = vpop.f32.mrb[0].mxu0
    %2804 = vdwg.mxu0
    %v2805 = vpack.c.bf16 %v2778, %v2775
    %v2806 = vpack.c.bf16 %v2786, %v2783
    %v2807 = vpack.c.bf16 %v2794, %v2791
    %v2808 = vpack.c.bf16 %v2802, %v2799
    %2813 = vrot.lane.b32.xlu0 %v2805, 28
    %v2814 = vpop.permute.xlu0 %2813
    %2815 = vrot.lane.b32.xlu0 %v2806, 28
    %v2816 = vpop.permute.xlu0 %2815
    %2817 = vrot.lane.b32.xlu0 %v2807, 28
    %v2818 = vpop.permute.xlu0 %2817
    %2819 = vrot.lane.b32.xlu0 %v2808, 28
    %v2820 = vpop.permute.xlu0 %2819
    %vm2825 = vcmask 261344
    %2826 = vst.msk [vmem:[#allocation2] sm:$0xff] %vm2825, %v2814
    %2827 = vst.msk [vmem:[#allocation2 + $0x8] sm:$0xff] %vm2825, %v2816
    %2828 = vst.msk [vmem:[#allocation2 + $0x10] sm:$0xff] %vm2825, %v2818
    %2829 = vst.msk [vmem:[#allocation2 + $0x18] sm:$0xff] %vm2825, %v2820
    %2834 = vrot.lane.b32.xlu0 %v286, 124
    %v2835 = vpop.permute.xlu0 %2834
    %2836 = vrot.lane.b32.xlu0 %v287, 124
    %v2837 = vpop.permute.xlu0 %2836
    %2838 = vrot.lane.b32.xlu0 %v288, 124
    %v2839 = vpop.permute.xlu0 %2838
    %2840 = vrot.lane.b32.xlu0 %v289, 124
    %v2841 = vpop.permute.xlu0 %2840
    %v2843 = vsel %vm302, %v286, 0
    %v2846 = vsel %vm302, %v287, 0
    %v2849 = vsel %vm302, %v288, 0
    %v2852 = vsel %vm302, %v289, 0
    %v2855 = vsel %vm302, %v2835, 0
    %v2858 = vsel %vm302, %v2837, 0
    %v2861 = vsel %vm302, %v2839, 0
    %v2864 = vsel %vm302, %v2841, 0
    %2866 = vmatprep.subr.bf16.mxu0 0
    %2867 = vmatpush1.bf16.xpose.msra.mxu0 %v2855
    %2868 = vmatprep.subr.bf16.mxu0 0
    %2869 = vmatpush1.bf16.xpose.msra.mxu0 %v2858
    %2870 = vmatprep.subr.bf16.mxu0 0
    %2871 = vmatpush1.bf16.xpose.msra.mxu0 %v2861
    %2872 = vmatprep.subr.bf16.mxu0 0
    %2873 = vmatpush1.bf16.xpose.msra.mxu0 %v2864
    %2874 = vmatprep.subr.bf16.mxu0 0
    %2875 = vmatpush1.bf16.xpose.msra.mxu0 0
    %2876 = vmatprep.subr.bf16.mxu0 0
    %2877 = vmatpush1.bf16.xpose.msra.mxu0 0
    %2878 = vmatprep.subr.bf16.mxu0 0
    %2879 = vmatpush1.bf16.xpose.msra.mxu0 0
    %2880 = vmatprep.subr.bf16.mxu0 0
    %2881 = vmatpush1.bf16.xpose.msra.mxu0 0
    %2882 = vmatprep.subr.bf16.mxu0 0
    %2883 = vmatpush1.bf16.xpose.msra.mxu0 0
    %2884 = vmatprep.subr.bf16.mxu0 0
    %2885 = vmatpush1.bf16.xpose.msra.mxu0 0
    %2886 = vmatprep.subr.bf16.mxu0 0
    %2887 = vmatpush1.bf16.xpose.msra.mxu0 0
    %2888 = vmatprep.subr.bf16.mxu0 0
    %2889 = vmatpush1.bf16.xpose.msra.mxu0 0
    %2890 = vmatprep.subr.bf16.mxu0 0
    %2891 = vmatpush1.bf16.xpose.msra.mxu0 0
    %2892 = vmatprep.subr.bf16.mxu0 0
    %2893 = vmatpush1.bf16.xpose.msra.mxu0 0
    %2894 = vmatprep.subr.bf16.mxu0 0
    %2895 = vmatpush1.bf16.xpose.msra.mxu0 0
    %2896 = vmatprep.subr.bf16.mxu0 0
    %2897 = vmatpush1.bf16.xpose.msra.mxu0 0
    %2898 = vmatprep.mubr.bf16.mxu0 0
    %2899 = vmatmul.mubr.bf16.gmra.mrb[0].mxu0 %v2843
    %v2900 = vpop.f32.mrb[0].mxu0
    %v2901 = vadd.f32 0.0, %v2900
    %v2902 = vpop.f32.mrb[0].mxu0
    %v2903 = vpop.f32.mrb[0].mxu0
    %v2904 = vadd.f32 0.0, %v2903
    %v2905 = vpop.f32.mrb[0].mxu0
    %2906 = vmatprep.mubr.bf16.mxu0 0
    %2907 = vmatmul.mubr.bf16.gmra.mrb[0].mxu0 %v2846
    %v2908 = vpop.f32.mrb[0].mxu0
    %v2909 = vadd.f32 0.0, %v2908
    %v2910 = vpop.f32.mrb[0].mxu0
    %v2911 = vpop.f32.mrb[0].mxu0
    %v2912 = vadd.f32 0.0, %v2911
    %v2913 = vpop.f32.mrb[0].mxu0
    %2914 = vmatprep.mubr.bf16.mxu0 0
    %2915 = vmatmul.mubr.bf16.gmra.mrb[0].mxu0 %v2849
    %v2916 = vpop.f32.mrb[0].mxu0
    %v2917 = vadd.f32 0.0, %v2916
    %v2918 = vpop.f32.mrb[0].mxu0
    %v2919 = vpop.f32.mrb[0].mxu0
    %v2920 = vadd.f32 0.0, %v2919
    %v2921 = vpop.f32.mrb[0].mxu0
    %2922 = vmatprep.mubr.bf16.mxu0 0
    %2923 = vmatmul.mubr.bf16.gmra.mrb[0].mxu0 %v2852
    %v2924 = vpop.f32.mrb[0].mxu0
    %v2925 = vadd.f32 0.0, %v2924
    %v2926 = vpop.f32.mrb[0].mxu0
    %v2927 = vpop.f32.mrb[0].mxu0
    %v2928 = vadd.f32 0.0, %v2927
    %v2929 = vpop.f32.mrb[0].mxu0
    %2930 = vdwg.mxu0
    %v2931 = vsel %vm392, %v2901, -inf
    %2932 = vmax.xlane.f32.xlu0 %v2931
    %v2933 = vpop.xlane.xlu0 %2932
    %v2934 = vsel %vm392, %v2904, -inf
    %2935 = vmax.xlane.f32.xlu0 %v2934
    %v2936 = vpop.xlane.xlu0 %2935
    %v2937 = vsel %vm392, %v2909, -inf
    %2938 = vmax.xlane.f32.xlu0 %v2937
    %v2939 = vpop.xlane.xlu0 %2938
    %v2940 = vsel %vm392, %v2912, -inf
    %2941 = vmax.xlane.f32.xlu0 %v2940
    %v2942 = vpop.xlane.xlu0 %2941
    %v2943 = vsel %vm392, %v2917, -inf
    %2944 = vmax.xlane.f32.xlu0 %v2943
    %v2945 = vpop.xlane.xlu0 %2944
    %v2946 = vsel %vm392, %v2920, -inf
    %2947 = vmax.xlane.f32.xlu0 %v2946
    %v2948 = vpop.xlane.xlu0 %2947
    %v2949 = vsel %vm392, %v2925, -inf
    %2950 = vmax.xlane.f32.xlu0 %v2949
    %v2951 = vpop.xlane.xlu0 %2950
    %v2952 = vsel %vm392, %v2928, -inf
    %2953 = vmax.xlane.f32.xlu0 %v2952
    %v2954 = vpop.xlane.xlu0 %2953
    %v2955 = vsub.f32 %v2901, %v2933
    %v2956 = vsub.f32 %v2904, %v2936
    %v2957 = vsub.f32 %v2909, %v2939
    %v2958 = vsub.f32 %v2912, %v2942
    %v2959 = vsub.f32 %v2917, %v2945
    %v2960 = vsub.f32 %v2920, %v2948
    %v2961 = vsub.f32 %v2925, %v2951
    %v2962 = vsub.f32 %v2928, %v2954
    %v2963 = vmul.f32 %v2955, 1.442695
    %v2964 = vpow.pop %v2963
    %v2965 = vmul.f32 %v2956, 1.442695
    %v2966 = vpow.pop %v2965
    %v2967 = vmul.f32 %v2957, 1.442695
    %v2968 = vpow.pop %v2967
    %v2969 = vmul.f32 %v2958, 1.442695
    %v2970 = vpow.pop %v2969
    %v2971 = vmul.f32 %v2959, 1.442695
    %v2972 = vpow.pop %v2971
    %v2973 = vmul.f32 %v2960, 1.442695
    %v2974 = vpow.pop %v2973
    %v2975 = vmul.f32 %v2961, 1.442695
    %v2976 = vpow.pop %v2975
    %v2977 = vmul.f32 %v2962, 1.442695
    %v2978 = vpow.pop %v2977
    %v2979 = vsel %vm392, %v2964, 0.0
    %2980 = vadd.xlane.f32.xlu0 %v2979
    %v2981 = vpop.xlane.xlu0 %2980
    %v2982 = vsel %vm392, %v2966, 0.0
    %2983 = vadd.xlane.f32.xlu0 %v2982
    %v2984 = vpop.xlane.xlu0 %2983
    %v2985 = vsel %vm392, %v2968, 0.0
    %2986 = vadd.xlane.f32.xlu0 %v2985
    %v2987 = vpop.xlane.xlu0 %2986
    %v2988 = vsel %vm392, %v2970, 0.0
    %2989 = vadd.xlane.f32.xlu0 %v2988
    %v2990 = vpop.xlane.xlu0 %2989
    %v2991 = vsel %vm392, %v2972, 0.0
    %2992 = vadd.xlane.f32.xlu0 %v2991
    %v2993 = vpop.xlane.xlu0 %2992
    %v2994 = vsel %vm392, %v2974, 0.0
    %2995 = vadd.xlane.f32.xlu0 %v2994
    %v2996 = vpop.xlane.xlu0 %2995
    %v2997 = vsel %vm392, %v2976, 0.0
    %2998 = vadd.xlane.f32.xlu0 %v2997
    %v2999 = vpop.xlane.xlu0 %2998
    %v3000 = vsel %vm392, %v2978, 0.0
    %3001 = vadd.xlane.f32.xlu0 %v3000
    %v3002 = vpop.xlane.xlu0 %3001
    %v3003 = vrcp.pop %v2981
    %v3004 = vrcp.pop %v2984
    %v3005 = vrcp.pop %v2987
    %v3006 = vrcp.pop %v2990
    %v3007 = vrcp.pop %v2993
    %v3008 = vrcp.pop %v2996
    %v3009 = vrcp.pop %v2999
    %v3010 = vrcp.pop %v3002
    %v3011 = vmul.f32 %v2964, %v3003
    %v3012 = vmul.f32 %v2966, %v3004
    %v3013 = vmul.f32 %v2968, %v3005
    %v3014 = vmul.f32 %v2970, %v3006
    %v3015 = vmul.f32 %v2972, %v3007
    %v3016 = vmul.f32 %v2974, %v3008
    %v3017 = vmul.f32 %v2976, %v3009
    %v3018 = vmul.f32 %v2978, %v3010
    %s3019 = scalar_lea.vmem [#allocation10], 512
    %3020 = vst.msk [vmem:[%s3019] sm:$0xff] %vm392, %v3011
    %3021 = vst.msk [vmem:[%s3019 + $0x8] sm:$0xff] %vm392, %v3012
    %3022 = vst.msk [vmem:[%s3019 + $0x10] sm:$0xff] %vm392, %v3013
    %3023 = vst.msk [vmem:[%s3019 + $0x18] sm:$0xff] %vm392, %v3014
    %3024 = vst.msk [vmem:[%s3019 + $0x20] sm:$0xff] %vm392, %v3015
    %3025 = vst.msk [vmem:[%s3019 + $0x28] sm:$0xff] %vm392, %v3016
    %3026 = vst.msk [vmem:[%s3019 + $0x30] sm:$0xff] %vm392, %v3017
    %3027 = vst.msk [vmem:[%s3019 + $0x38] sm:$0xff] %vm392, %v3018
    %v3028 = vpack.c.bf16 %v3012, %v3011
    %v3029 = vpack.c.bf16 %v3014, %v3013
    %v3030 = vpack.c.bf16 %v3016, %v3015
    %v3031 = vpack.c.bf16 %v3018, %v3017
    %3032 = vrot.lane.b32.xlu0 %v286, 120
    %v3033 = vpop.permute.xlu0 %3032
    %3034 = vrot.lane.b32.xlu0 %v287, 120
    %v3035 = vpop.permute.xlu0 %3034
    %3036 = vrot.lane.b32.xlu0 %v288, 120
    %v3037 = vpop.permute.xlu0 %3036
    %3038 = vrot.lane.b32.xlu0 %v289, 120
    %v3039 = vpop.permute.xlu0 %3038
    %v3045 = vsel %vm392, %v3028, 0
    %v3048 = vsel %vm392, %v3029, 0
    %v3051 = vsel %vm392, %v3030, 0
    %v3054 = vsel %vm392, %v3031, 0
    %3056 = vmatprep.subr.bf16.mxu0 0
    %3057 = vmatpush1.bf16.msra.mxu0 %v3033
    %3058 = vmatprep.subr.bf16.mxu0 0
    %3059 = vmatpush1.bf16.msra.mxu0 %v3035
    %3060 = vmatprep.subr.bf16.mxu0 0
    %3061 = vmatpush1.bf16.msra.mxu0 %v3037
    %3062 = vmatprep.subr.bf16.mxu0 0
    %3063 = vmatpush1.bf16.msra.mxu0 %v3039
    %3064 = vmatprep.subr.bf16.mxu0 0
    %3065 = vmatpush1.bf16.msra.mxu0 0
    %3066 = vmatprep.subr.bf16.mxu0 0
    %3067 = vmatpush1.bf16.msra.mxu0 0
    %3068 = vmatprep.subr.bf16.mxu0 0
    %3069 = vmatpush1.bf16.msra.mxu0 0
    %3070 = vmatprep.subr.bf16.mxu0 0
    %3071 = vmatpush1.bf16.msra.mxu0 0
    %3072 = vmatprep.subr.bf16.mxu0 0
    %3073 = vmatpush1.bf16.msra.mxu0 0
    %3074 = vmatprep.subr.bf16.mxu0 0
    %3075 = vmatpush1.bf16.msra.mxu0 0
    %3076 = vmatprep.subr.bf16.mxu0 0
    %3077 = vmatpush1.bf16.msra.mxu0 0
    %3078 = vmatprep.subr.bf16.mxu0 0
    %3079 = vmatpush1.bf16.msra.mxu0 0
    %3080 = vmatprep.subr.bf16.mxu0 0
    %3081 = vmatpush1.bf16.msra.mxu0 0
    %3082 = vmatprep.subr.bf16.mxu0 0
    %3083 = vmatpush1.bf16.msra.mxu0 0
    %3084 = vmatprep.subr.bf16.mxu0 0
    %3085 = vmatpush1.bf16.msra.mxu0 0
    %3086 = vmatprep.subr.bf16.mxu0 0
    %3087 = vmatpush1.bf16.msra.mxu0 0
    %3088 = vmatprep.mubr.bf16.mxu0 0
    %3089 = vmatmul.mubr.bf16.gmra.mrb[0].mxu0 %v3045
    %v3090 = vpop.f32.mrb[0].mxu0
    %v3091 = vadd.f32 0.0, %v3090
    %v3092 = vpop.f32.mrb[0].mxu0
    %v3093 = vpop.f32.mrb[0].mxu0
    %v3094 = vadd.f32 0.0, %v3093
    %v3095 = vpop.f32.mrb[0].mxu0
    %3096 = vmatprep.mubr.bf16.mxu0 0
    %3097 = vmatmul.mubr.bf16.gmra.mrb[0].mxu0 %v3048
    %v3098 = vpop.f32.mrb[0].mxu0
    %v3099 = vadd.f32 0.0, %v3098
    %v3100 = vpop.f32.mrb[0].mxu0
    %v3101 = vpop.f32.mrb[0].mxu0
    %v3102 = vadd.f32 0.0, %v3101
    %v3103 = vpop.f32.mrb[0].mxu0
    %3104 = vmatprep.mubr.bf16.mxu0 0
    %3105 = vmatmul.mubr.bf16.gmra.mrb[0].mxu0 %v3051
    %v3106 = vpop.f32.mrb[0].mxu0
    %v3107 = vadd.f32 0.0, %v3106
    %v3108 = vpop.f32.mrb[0].mxu0
    %v3109 = vpop.f32.mrb[0].mxu0
    %v3110 = vadd.f32 0.0, %v3109
    %v3111 = vpop.f32.mrb[0].mxu0
    %3112 = vmatprep.mubr.bf16.mxu0 0
    %3113 = vmatmul.mubr.bf16.gmra.mrb[0].mxu0 %v3054
    %v3114 = vpop.f32.mrb[0].mxu0
    %v3115 = vadd.f32 0.0, %v3114
    %v3116 = vpop.f32.mrb[0].mxu0
    %v3117 = vpop.f32.mrb[0].mxu0
    %v3118 = vadd.f32 0.0, %v3117
    %v3119 = vpop.f32.mrb[0].mxu0
    %3120 = vdwg.mxu0
    %v3121 = vpack.c.bf16 %v3094, %v3091
    %v3122 = vpack.c.bf16 %v3102, %v3099
    %v3123 = vpack.c.bf16 %v3110, %v3107
    %v3124 = vpack.c.bf16 %v3118, %v3115
    %3125 = vst.msk [vmem:[#allocation2 + $0x20] sm:$0xff] %vm302, %v3121
    %3126 = vst.msk [vmem:[#allocation2 + $0x28] sm:$0xff] %vm302, %v3122
    %3127 = vst.msk [vmem:[#allocation2 + $0x30] sm:$0xff] %vm302, %v3123
    %3128 = vst.msk [vmem:[#allocation2 + $0x38] sm:$0xff] %vm302, %v3124
    %3129 = vrot.lane.b32.xlu0 %v286, 116
    %v3130 = vpop.permute.xlu0 %3129
    %3131 = vrot.lane.b32.xlu0 %v287, 116
    %v3132 = vpop.permute.xlu0 %3131
    %3133 = vrot.lane.b32.xlu0 %v288, 116
    %v3134 = vpop.permute.xlu0 %3133
    %3135 = vrot.lane.b32.xlu0 %v289, 116
    %v3136 = vpop.permute.xlu0 %3135
    %3137 = vrot.lane.b32.xlu0 %v286, 112
    %v3138 = vpop.permute.xlu0 %3137
    %3139 = vrot.lane.b32.xlu0 %v287, 112
    %v3140 = vpop.permute.xlu0 %3139
    %3141 = vrot.lane.b32.xlu0 %v288, 112
    %v3142 = vpop.permute.xlu0 %3141
    %3143 = vrot.lane.b32.xlu0 %v289, 112
    %v3144 = vpop.permute.xlu0 %3143
    %v3146 = vsel %vm302, %v3130, 0
    %v3149 = vsel %vm302, %v3132, 0
    %v3152 = vsel %vm302, %v3134, 0
    %v3155 = vsel %vm302, %v3136, 0
    %v3158 = vsel %vm302, %v3138, 0
    %v3161 = vsel %vm302, %v3140, 0
    %v3164 = vsel %vm302, %v3142, 0
    %v3167 = vsel %vm302, %v3144, 0
    %3169 = vmatprep.subr.bf16.mxu0 0
    %3170 = vmatpush1.bf16.xpose.msra.mxu0 %v3158
    %3171 = vmatprep.subr.bf16.mxu0 0
    %3172 = vmatpush1.bf16.xpose.msra.mxu0 %v3161
    %3173 = vmatprep.subr.bf16.mxu0 0
    %3174 = vmatpush1.bf16.xpose.msra.mxu0 %v3164
    %3175 = vmatprep.subr.bf16.mxu0 0
    %3176 = vmatpush1.bf16.xpose.msra.mxu0 %v3167
    %3177 = vmatprep.subr.bf16.mxu0 0
    %3178 = vmatpush1.bf16.xpose.msra.mxu0 0
    %3179 = vmatprep.subr.bf16.mxu0 0
    %3180 = vmatpush1.bf16.xpose.msra.mxu0 0
    %3181 = vmatprep.subr.bf16.mxu0 0
    %3182 = vmatpush1.bf16.xpose.msra.mxu0 0
    %3183 = vmatprep.subr.bf16.mxu0 0
    %3184 = vmatpush1.bf16.xpose.msra.mxu0 0
    %3185 = vmatprep.subr.bf16.mxu0 0
    %3186 = vmatpush1.bf16.xpose.msra.mxu0 0
    %3187 = vmatprep.subr.bf16.mxu0 0
    %3188 = vmatpush1.bf16.xpose.msra.mxu0 0
    %3189 = vmatprep.subr.bf16.mxu0 0
    %3190 = vmatpush1.bf16.xpose.msra.mxu0 0
    %3191 = vmatprep.subr.bf16.mxu0 0
    %3192 = vmatpush1.bf16.xpose.msra.mxu0 0
    %3193 = vmatprep.subr.bf16.mxu0 0
    %3194 = vmatpush1.bf16.xpose.msra.mxu0 0
    %3195 = vmatprep.subr.bf16.mxu0 0
    %3196 = vmatpush1.bf16.xpose.msra.mxu0 0
    %3197 = vmatprep.subr.bf16.mxu0 0
    %3198 = vmatpush1.bf16.xpose.msra.mxu0 0
    %3199 = vmatprep.subr.bf16.mxu0 0
    %3200 = vmatpush1.bf16.xpose.msra.mxu0 0
    %3201 = vmatprep.mubr.bf16.mxu0 0
    %3202 = vmatmul.mubr.bf16.gmra.mrb[0].mxu0 %v3146
    %v3203 = vpop.f32.mrb[0].mxu0
    %v3204 = vadd.f32 0.0, %v3203
    %v3205 = vpop.f32.mrb[0].mxu0
    %v3206 = vpop.f32.mrb[0].mxu0
    %v3207 = vadd.f32 0.0, %v3206
    %v3208 = vpop.f32.mrb[0].mxu0
    %3209 = vmatprep.mubr.bf16.mxu0 0
    %3210 = vmatmul.mubr.bf16.gmra.mrb[0].mxu0 %v3149
    %v3211 = vpop.f32.mrb[0].mxu0
    %v3212 = vadd.f32 0.0, %v3211
    %v3213 = vpop.f32.mrb[0].mxu0
    %v3214 = vpop.f32.mrb[0].mxu0
    %v3215 = vadd.f32 0.0, %v3214
    %v3216 = vpop.f32.mrb[0].mxu0
    %3217 = vmatprep.mubr.bf16.mxu0 0
    %3218 = vmatmul.mubr.bf16.gmra.mrb[0].mxu0 %v3152
    %v3219 = vpop.f32.mrb[0].mxu0
    %v3220 = vadd.f32 0.0, %v3219
    %v3221 = vpop.f32.mrb[0].mxu0
    %v3222 = vpop.f32.mrb[0].mxu0
    %v3223 = vadd.f32 0.0, %v3222
    %v3224 = vpop.f32.mrb[0].mxu0
    %3225 = vmatprep.mubr.bf16.mxu0 0
    %3226 = vmatmul.mubr.bf16.gmra.mrb[0].mxu0 %v3155
    %v3227 = vpop.f32.mrb[0].mxu0
    %v3228 = vadd.f32 0.0, %v3227
    %v3229 = vpop.f32.mrb[0].mxu0
    %v3230 = vpop.f32.mrb[0].mxu0
    %v3231 = vadd.f32 0.0, %v3230
    %v3232 = vpop.f32.mrb[0].mxu0
    %3233 = vdwg.mxu0
    %v3234 = vsel %vm392, %v3204, -inf
    %3235 = vmax.xlane.f32.xlu0 %v3234
    %v3236 = vpop.xlane.xlu0 %3235
    %v3237 = vsel %vm392, %v3207, -inf
    %3238 = vmax.xlane.f32.xlu0 %v3237
    %v3239 = vpop.xlane.xlu0 %3238
    %v3240 = vsel %vm392, %v3212, -inf
    %3241 = vmax.xlane.f32.xlu0 %v3240
    %v3242 = vpop.xlane.xlu0 %3241
    %v3243 = vsel %vm392, %v3215, -inf
    %3244 = vmax.xlane.f32.xlu0 %v3243
    %v3245 = vpop.xlane.xlu0 %3244
    %v3246 = vsel %vm392, %v3220, -inf
    %3247 = vmax.xlane.f32.xlu0 %v3246
    %v3248 = vpop.xlane.xlu0 %3247
    %v3249 = vsel %vm392, %v3223, -inf
    %3250 = vmax.xlane.f32.xlu0 %v3249
    %v3251 = vpop.xlane.xlu0 %3250
    %v3252 = vsel %vm392, %v3228, -inf
    %3253 = vmax.xlane.f32.xlu0 %v3252
    %v3254 = vpop.xlane.xlu0 %3253
    %v3255 = vsel %vm392, %v3231, -inf
    %3256 = vmax.xlane.f32.xlu0 %v3255
    %v3257 = vpop.xlane.xlu0 %3256
    %v3258 = vsub.f32 %v3204, %v3236
    %v3259 = vsub.f32 %v3207, %v3239
    %v3260 = vsub.f32 %v3212, %v3242
    %v3261 = vsub.f32 %v3215, %v3245
    %v3262 = vsub.f32 %v3220, %v3248
    %v3263 = vsub.f32 %v3223, %v3251
    %v3264 = vsub.f32 %v3228, %v3254
    %v3265 = vsub.f32 %v3231, %v3257
    %v3266 = vmul.f32 %v3258, 1.442695
    %v3267 = vpow.pop %v3266
    %v3268 = vmul.f32 %v3259, 1.442695
    %v3269 = vpow.pop %v3268
    %v3270 = vmul.f32 %v3260, 1.442695
    %v3271 = vpow.pop %v3270
    %v3272 = vmul.f32 %v3261, 1.442695
    %v3273 = vpow.pop %v3272
    %v3274 = vmul.f32 %v3262, 1.442695
    %v3275 = vpow.pop %v3274
    %v3276 = vmul.f32 %v3263, 1.442695
    %v3277 = vpow.pop %v3276
    %v3278 = vmul.f32 %v3264, 1.442695
    %v3279 = vpow.pop %v3278
    %v3280 = vmul.f32 %v3265, 1.442695
    %v3281 = vpow.pop %v3280
    %v3282 = vsel %vm392, %v3267, 0.0
    %3283 = vadd.xlane.f32.xlu0 %v3282
    %v3284 = vpop.xlane.xlu0 %3283
    %v3285 = vsel %vm392, %v3269, 0.0
    %3286 = vadd.xlane.f32.xlu0 %v3285
    %v3287 = vpop.xlane.xlu0 %3286
    %v3288 = vsel %vm392, %v3271, 0.0
    %3289 = vadd.xlane.f32.xlu0 %v3288
    %v3290 = vpop.xlane.xlu0 %3289
    %v3291 = vsel %vm392, %v3273, 0.0
    %3292 = vadd.xlane.f32.xlu0 %v3291
    %v3293 = vpop.xlane.xlu0 %3292
    %v3294 = vsel %vm392, %v3275, 0.0
    %3295 = vadd.xlane.f32.xlu0 %v3294
    %v3296 = vpop.xlane.xlu0 %3295
    %v3297 = vsel %vm392, %v3277, 0.0
    %3298 = vadd.xlane.f32.xlu0 %v3297
    %v3299 = vpop.xlane.xlu0 %3298
    %v3300 = vsel %vm392, %v3279, 0.0
    %3301 = vadd.xlane.f32.xlu0 %v3300
    %v3302 = vpop.xlane.xlu0 %3301
    %v3303 = vsel %vm392, %v3281, 0.0
    %3304 = vadd.xlane.f32.xlu0 %v3303
    %v3305 = vpop.xlane.xlu0 %3304
    %v3306 = vrcp.pop %v3284
    %v3307 = vrcp.pop %v3287
    %v3308 = vrcp.pop %v3290
    %v3309 = vrcp.pop %v3293
    %v3310 = vrcp.pop %v3296
    %v3311 = vrcp.pop %v3299
    %v3312 = vrcp.pop %v3302
    %v3313 = vrcp.pop %v3305
    %v3314 = vmul.f32 %v3267, %v3306
    %v3315 = vmul.f32 %v3269, %v3307
    %v3316 = vmul.f32 %v3271, %v3308
    %v3317 = vmul.f32 %v3273, %v3309
    %v3318 = vmul.f32 %v3275, %v3310
    %v3319 = vmul.f32 %v3277, %v3311
    %v3320 = vmul.f32 %v3279, %v3312
    %v3321 = vmul.f32 %v3281, %v3313
    %s3322 = scalar_lea.vmem [#allocation10], 576
    %3323 = vst.msk [vmem:[%s3322] sm:$0xff] %vm392, %v3314
    %3324 = vst.msk [vmem:[%s3322 + $0x8] sm:$0xff] %vm392, %v3315
    %3325 = vst.msk [vmem:[%s3322 + $0x10] sm:$0xff] %vm392, %v3316
    %3326 = vst.msk [vmem:[%s3322 + $0x18] sm:$0xff] %vm392, %v3317
    %3327 = vst.msk [vmem:[%s3322 + $0x20] sm:$0xff] %vm392, %v3318
    %3328 = vst.msk [vmem:[%s3322 + $0x28] sm:$0xff] %vm392, %v3319
    %3329 = vst.msk [vmem:[%s3322 + $0x30] sm:$0xff] %vm392, %v3320
    %3330 = vst.msk [vmem:[%s3322 + $0x38] sm:$0xff] %vm392, %v3321
    %v3331 = vpack.c.bf16 %v3315, %v3314
    %v3332 = vpack.c.bf16 %v3317, %v3316
    %v3333 = vpack.c.bf16 %v3319, %v3318
    %v3334 = vpack.c.bf16 %v3321, %v3320
    %3335 = vrot.lane.b32.xlu0 %v286, 108
    %v3336 = vpop.permute.xlu0 %3335
    %3337 = vrot.lane.b32.xlu0 %v287, 108
    %v3338 = vpop.permute.xlu0 %3337
    %3339 = vrot.lane.b32.xlu0 %v288, 108
    %v3340 = vpop.permute.xlu0 %3339
    %3341 = vrot.lane.b32.xlu0 %v289, 108
    %v3342 = vpop.permute.xlu0 %3341
    %v3348 = vsel %vm392, %v3331, 0
    %v3351 = vsel %vm392, %v3332, 0
    %v3354 = vsel %vm392, %v3333, 0
    %v3357 = vsel %vm392, %v3334, 0
    %3359 = vmatprep.subr.bf16.mxu0 0
    %3360 = vmatpush1.bf16.msra.mxu0 %v3336
    %3361 = vmatprep.subr.bf16.mxu0 0
    %3362 = vmatpush1.bf16.msra.mxu0 %v3338
    %3363 = vmatprep.subr.bf16.mxu0 0
    %3364 = vmatpush1.bf16.msra.mxu0 %v3340
    %3365 = vmatprep.subr.bf16.mxu0 0
    %3366 = vmatpush1.bf16.msra.mxu0 %v3342
    %3367 = vmatprep.subr.bf16.mxu0 0
    %3368 = vmatpush1.bf16.msra.mxu0 0
    %3369 = vmatprep.subr.bf16.mxu0 0
    %3370 = vmatpush1.bf16.msra.mxu0 0
    %3371 = vmatprep.subr.bf16.mxu0 0
    %3372 = vmatpush1.bf16.msra.mxu0 0
    %3373 = vmatprep.subr.bf16.mxu0 0
    %3374 = vmatpush1.bf16.msra.mxu0 0
    %3375 = vmatprep.subr.bf16.mxu0 0
    %3376 = vmatpush1.bf16.msra.mxu0 0
    %3377 = vmatprep.subr.bf16.mxu0 0
    %3378 = vmatpush1.bf16.msra.mxu0 0
    %3379 = vmatprep.subr.bf16.mxu0 0
    %3380 = vmatpush1.bf16.msra.mxu0 0
    %3381 = vmatprep.subr.bf16.mxu0 0
    %3382 = vmatpush1.bf16.msra.mxu0 0
    %3383 = vmatprep.subr.bf16.mxu0 0
    %3384 = vmatpush1.bf16.msra.mxu0 0
    %3385 = vmatprep.subr.bf16.mxu0 0
    %3386 = vmatpush1.bf16.msra.mxu0 0
    %3387 = vmatprep.subr.bf16.mxu0 0
    %3388 = vmatpush1.bf16.msra.mxu0 0
    %3389 = vmatprep.subr.bf16.mxu0 0
    %3390 = vmatpush1.bf16.msra.mxu0 0
    %3391 = vmatprep.mubr.bf16.mxu0 0
    %3392 = vmatmul.mubr.bf16.gmra.mrb[0].mxu0 %v3348
    %v3393 = vpop.f32.mrb[0].mxu0
    %v3394 = vadd.f32 0.0, %v3393
    %v3395 = vpop.f32.mrb[0].mxu0
    %v3396 = vpop.f32.mrb[0].mxu0
    %v3397 = vadd.f32 0.0, %v3396
    %v3398 = vpop.f32.mrb[0].mxu0
    %3399 = vmatprep.mubr.bf16.mxu0 0
    %3400 = vmatmul.mubr.bf16.gmra.mrb[0].mxu0 %v3351
    %v3401 = vpop.f32.mrb[0].mxu0
    %v3402 = vadd.f32 0.0, %v3401
    %v3403 = vpop.f32.mrb[0].mxu0
    %v3404 = vpop.f32.mrb[0].mxu0
    %v3405 = vadd.f32 0.0, %v3404
    %v3406 = vpop.f32.mrb[0].mxu0
    %3407 = vmatprep.mubr.bf16.mxu0 0
    %3408 = vmatmul.mubr.bf16.gmra.mrb[0].mxu0 %v3354
    %v3409 = vpop.f32.mrb[0].mxu0
    %v3410 = vadd.f32 0.0, %v3409
    %v3411 = vpop.f32.mrb[0].mxu0
    %v3412 = vpop.f32.mrb[0].mxu0
    %v3413 = vadd.f32 0.0, %v3412
    %v3414 = vpop.f32.mrb[0].mxu0
    %3415 = vmatprep.mubr.bf16.mxu0 0
    %3416 = vmatmul.mubr.bf16.gmra.mrb[0].mxu0 %v3357
    %v3417 = vpop.f32.mrb[0].mxu0
    %v3418 = vadd.f32 0.0, %v3417
    %v3419 = vpop.f32.mrb[0].mxu0
    %v3420 = vpop.f32.mrb[0].mxu0
    %v3421 = vadd.f32 0.0, %v3420
    %v3422 = vpop.f32.mrb[0].mxu0
    %3423 = vdwg.mxu0
    %v3424 = vpack.c.bf16 %v3397, %v3394
    %v3425 = vpack.c.bf16 %v3405, %v3402
    %v3426 = vpack.c.bf16 %v3413, %v3410
    %v3427 = vpack.c.bf16 %v3421, %v3418
    %3432 = vrot.lane.b32.xlu0 %v3424, 4
    %v3433 = vpop.permute.xlu0 %3432
    %3434 = vrot.lane.b32.xlu0 %v3425, 4
    %v3435 = vpop.permute.xlu0 %3434
    %3436 = vrot.lane.b32.xlu0 %v3426, 4
    %v3437 = vpop.permute.xlu0 %3436
    %3438 = vrot.lane.b32.xlu0 %v3427, 4
    %v3439 = vpop.permute.xlu0 %3438
    %3444 = vst.msk [vmem:[#allocation2 + $0x20] sm:$0xff] %vm905, %v3433
    %3445 = vst.msk [vmem:[#allocation2 + $0x28] sm:$0xff] %vm905, %v3435
    %3446 = vst.msk [vmem:[#allocation2 + $0x30] sm:$0xff] %vm905, %v3437
    %3447 = vst.msk [vmem:[#allocation2 + $0x38] sm:$0xff] %vm905, %v3439
    %3448 = vrot.lane.b32.xlu0 %v286, 104
    %v3449 = vpop.permute.xlu0 %3448
    %3450 = vrot.lane.b32.xlu0 %v287, 104
    %v3451 = vpop.permute.xlu0 %3450
    %3452 = vrot.lane.b32.xlu0 %v288, 104
    %v3453 = vpop.permute.xlu0 %3452
    %3454 = vrot.lane.b32.xlu0 %v289, 104
    %v3455 = vpop.permute.xlu0 %3454
    %3456 = vrot.lane.b32.xlu0 %v286, 100
    %v3457 = vpop.permute.xlu0 %3456
    %3458 = vrot.lane.b32.xlu0 %v287, 100
    %v3459 = vpop.permute.xlu0 %3458
    %3460 = vrot.lane.b32.xlu0 %v288, 100
    %v3461 = vpop.permute.xlu0 %3460
    %3462 = vrot.lane.b32.xlu0 %v289, 100
    %v3463 = vpop.permute.xlu0 %3462
    %v3465 = vsel %vm302, %v3449, 0
    %v3468 = vsel %vm302, %v3451, 0
    %v3471 = vsel %vm302, %v3453, 0
    %v3474 = vsel %vm302, %v3455, 0
    %v3477 = vsel %vm302, %v3457, 0
    %v3480 = vsel %vm302, %v3459, 0
    %v3483 = vsel %vm302, %v3461, 0
    %v3486 = vsel %vm302, %v3463, 0
    %3488 = vmatprep.subr.bf16.mxu0 0
    %3489 = vmatpush1.bf16.xpose.msra.mxu0 %v3477
    %3490 = vmatprep.subr.bf16.mxu0 0
    %3491 = vmatpush1.bf16.xpose.msra.mxu0 %v3480
    %3492 = vmatprep.subr.bf16.mxu0 0
    %3493 = vmatpush1.bf16.xpose.msra.mxu0 %v3483
    %3494 = vmatprep.subr.bf16.mxu0 0
    %3495 = vmatpush1.bf16.xpose.msra.mxu0 %v3486
    %3496 = vmatprep.subr.bf16.mxu0 0
    %3497 = vmatpush1.bf16.xpose.msra.mxu0 0
    %3498 = vmatprep.subr.bf16.mxu0 0
    %3499 = vmatpush1.bf16.xpose.msra.mxu0 0
    %3500 = vmatprep.subr.bf16.mxu0 0
    %3501 = vmatpush1.bf16.xpose.msra.mxu0 0
    %3502 = vmatprep.subr.bf16.mxu0 0
    %3503 = vmatpush1.bf16.xpose.msra.mxu0 0
    %3504 = vmatprep.subr.bf16.mxu0 0
    %3505 = vmatpush1.bf16.xpose.msra.mxu0 0
    %3506 = vmatprep.subr.bf16.mxu0 0
    %3507 = vmatpush1.bf16.xpose.msra.mxu0 0
    %3508 = vmatprep.subr.bf16.mxu0 0
    %3509 = vmatpush1.bf16.xpose.msra.mxu0 0
    %3510 = vmatprep.subr.bf16.mxu0 0
    %3511 = vmatpush1.bf16.xpose.msra.mxu0 0
    %3512 = vmatprep.subr.bf16.mxu0 0
    %3513 = vmatpush1.bf16.xpose.msra.mxu0 0
    %3514 = vmatprep.subr.bf16.mxu0 0
    %3515 = vmatpush1.bf16.xpose.msra.mxu0 0
    %3516 = vmatprep.subr.bf16.mxu0 0
    %3517 = vmatpush1.bf16.xpose.msra.mxu0 0
    %3518 = vmatprep.subr.bf16.mxu0 0
    %3519 = vmatpush1.bf16.xpose.msra.mxu0 0
    %3520 = vmatprep.mubr.bf16.mxu0 0
    %3521 = vmatmul.mubr.bf16.gmra.mrb[0].mxu0 %v3465
    %v3522 = vpop.f32.mrb[0].mxu0
    %v3523 = vadd.f32 0.0, %v3522
    %v3524 = vpop.f32.mrb[0].mxu0
    %v3525 = vpop.f32.mrb[0].mxu0
    %v3526 = vadd.f32 0.0, %v3525
    %v3527 = vpop.f32.mrb[0].mxu0
    %3528 = vmatprep.mubr.bf16.mxu0 0
    %3529 = vmatmul.mubr.bf16.gmra.mrb[0].mxu0 %v3468
    %v3530 = vpop.f32.mrb[0].mxu0
    %v3531 = vadd.f32 0.0, %v3530
    %v3532 = vpop.f32.mrb[0].mxu0
    %v3533 = vpop.f32.mrb[0].mxu0
    %v3534 = vadd.f32 0.0, %v3533
    %v3535 = vpop.f32.mrb[0].mxu0
    %3536 = vmatprep.mubr.bf16.mxu0 0
    %3537 = vmatmul.mubr.bf16.gmra.mrb[0].mxu0 %v3471
    %v3538 = vpop.f32.mrb[0].mxu0
    %v3539 = vadd.f32 0.0, %v3538
    %v3540 = vpop.f32.mrb[0].mxu0
    %v3541 = vpop.f32.mrb[0].mxu0
    %v3542 = vadd.f32 0.0, %v3541
    %v3543 = vpop.f32.mrb[0].mxu0
    %3544 = vmatprep.mubr.bf16.mxu0 0
    %3545 = vmatmul.mubr.bf16.gmra.mrb[0].mxu0 %v3474
    %v3546 = vpop.f32.mrb[0].mxu0
    %v3547 = vadd.f32 0.0, %v3546
    %v3548 = vpop.f32.mrb[0].mxu0
    %v3549 = vpop.f32.mrb[0].mxu0
    %v3550 = vadd.f32 0.0, %v3549
    %v3551 = vpop.f32.mrb[0].mxu0
    %3552 = vdwg.mxu0
    %v3553 = vsel %vm392, %v3523, -inf
    %3554 = vmax.xlane.f32.xlu0 %v3553
    %v3555 = vpop.xlane.xlu0 %3554
    %v3556 = vsel %vm392, %v3526, -inf
    %3557 = vmax.xlane.f32.xlu0 %v3556
    %v3558 = vpop.xlane.xlu0 %3557
    %v3559 = vsel %vm392, %v3531, -inf
    %3560 = vmax.xlane.f32.xlu0 %v3559
    %v3561 = vpop.xlane.xlu0 %3560
    %v3562 = vsel %vm392, %v3534, -inf
    %3563 = vmax.xlane.f32.xlu0 %v3562
    %v3564 = vpop.xlane.xlu0 %3563
    %v3565 = vsel %vm392, %v3539, -inf
    %3566 = vmax.xlane.f32.xlu0 %v3565
    %v3567 = vpop.xlane.xlu0 %3566
    %v3568 = vsel %vm392, %v3542, -inf
    %3569 = vmax.xlane.f32.xlu0 %v3568
    %v3570 = vpop.xlane.xlu0 %3569
    %v3571 = vsel %vm392, %v3547, -inf
    %3572 = vmax.xlane.f32.xlu0 %v3571
    %v3573 = vpop.xlane.xlu0 %3572
    %v3574 = vsel %vm392, %v3550, -inf
    %3575 = vmax.xlane.f32.xlu0 %v3574
    %v3576 = vpop.xlane.xlu0 %3575
    %v3577 = vsub.f32 %v3523, %v3555
    %v3578 = vsub.f32 %v3526, %v3558
    %v3579 = vsub.f32 %v3531, %v3561
    %v3580 = vsub.f32 %v3534, %v3564
    %v3581 = vsub.f32 %v3539, %v3567
    %v3582 = vsub.f32 %v3542, %v3570
    %v3583 = vsub.f32 %v3547, %v3573
    %v3584 = vsub.f32 %v3550, %v3576
    %v3585 = vmul.f32 %v3577, 1.442695
    %v3586 = vpow.pop %v3585
    %v3587 = vmul.f32 %v3578, 1.442695
    %v3588 = vpow.pop %v3587
    %v3589 = vmul.f32 %v3579, 1.442695
    %v3590 = vpow.pop %v3589
    %v3591 = vmul.f32 %v3580, 1.442695
    %v3592 = vpow.pop %v3591
    %v3593 = vmul.f32 %v3581, 1.442695
    %v3594 = vpow.pop %v3593
    %v3595 = vmul.f32 %v3582, 1.442695
    %v3596 = vpow.pop %v3595
    %v3597 = vmul.f32 %v3583, 1.442695
    %v3598 = vpow.pop %v3597
    %v3599 = vmul.f32 %v3584, 1.442695
    %v3600 = vpow.pop %v3599
    %v3601 = vsel %vm392, %v3586, 0.0
    %3602 = vadd.xlane.f32.xlu0 %v3601
    %v3603 = vpop.xlane.xlu0 %3602
    %v3604 = vsel %vm392, %v3588, 0.0
    %3605 = vadd.xlane.f32.xlu0 %v3604
    %v3606 = vpop.xlane.xlu0 %3605
    %v3607 = vsel %vm392, %v3590, 0.0
    %3608 = vadd.xlane.f32.xlu0 %v3607
    %v3609 = vpop.xlane.xlu0 %3608
    %v3610 = vsel %vm392, %v3592, 0.0
    %3611 = vadd.xlane.f32.xlu0 %v3610
    %v3612 = vpop.xlane.xlu0 %3611
    %v3613 = vsel %vm392, %v3594, 0.0
    %3614 = vadd.xlane.f32.xlu0 %v3613
    %v3615 = vpop.xlane.xlu0 %3614
    %v3616 = vsel %vm392, %v3596, 0.0
    %3617 = vadd.xlane.f32.xlu0 %v3616
    %v3618 = vpop.xlane.xlu0 %3617
    %v3619 = vsel %vm392, %v3598, 0.0
    %3620 = vadd.xlane.f32.xlu0 %v3619
    %v3621 = vpop.xlane.xlu0 %3620
    %v3622 = vsel %vm392, %v3600, 0.0
    %3623 = vadd.xlane.f32.xlu0 %v3622
    %v3624 = vpop.xlane.xlu0 %3623
    %v3625 = vrcp.pop %v3603
    %v3626 = vrcp.pop %v3606
    %v3627 = vrcp.pop %v3609
    %v3628 = vrcp.pop %v3612
    %v3629 = vrcp.pop %v3615
    %v3630 = vrcp.pop %v3618
    %v3631 = vrcp.pop %v3621
    %v3632 = vrcp.pop %v3624
    %v3633 = vmul.f32 %v3586, %v3625
    %v3634 = vmul.f32 %v3588, %v3626
    %v3635 = vmul.f32 %v3590, %v3627
    %v3636 = vmul.f32 %v3592, %v3628
    %v3637 = vmul.f32 %v3594, %v3629
    %v3638 = vmul.f32 %v3596, %v3630
    %v3639 = vmul.f32 %v3598, %v3631
    %v3640 = vmul.f32 %v3600, %v3632
    %s3641 = scalar_lea.vmem [#allocation10], 640
    %3642 = vst.msk [vmem:[%s3641] sm:$0xff] %vm392, %v3633
    %3643 = vst.msk [vmem:[%s3641 + $0x8] sm:$0xff] %vm392, %v3634
    %3644 = vst.msk [vmem:[%s3641 + $0x10] sm:$0xff] %vm392, %v3635
    %3645 = vst.msk [vmem:[%s3641 + $0x18] sm:$0xff] %vm392, %v3636
    %3646 = vst.msk [vmem:[%s3641 + $0x20] sm:$0xff] %vm392, %v3637
    %3647 = vst.msk [vmem:[%s3641 + $0x28] sm:$0xff] %vm392, %v3638
    %3648 = vst.msk [vmem:[%s3641 + $0x30] sm:$0xff] %vm392, %v3639
    %3649 = vst.msk [vmem:[%s3641 + $0x38] sm:$0xff] %vm392, %v3640
    %v3650 = vpack.c.bf16 %v3634, %v3633
    %v3651 = vpack.c.bf16 %v3636, %v3635
    %v3652 = vpack.c.bf16 %v3638, %v3637
    %v3653 = vpack.c.bf16 %v3640, %v3639
    %3654 = vrot.lane.b32.xlu0 %v286, 96
    %v3655 = vpop.permute.xlu0 %3654
    %3656 = vrot.lane.b32.xlu0 %v287, 96
    %v3657 = vpop.permute.xlu0 %3656
    %3658 = vrot.lane.b32.xlu0 %v288, 96
    %v3659 = vpop.permute.xlu0 %3658
    %3660 = vrot.lane.b32.xlu0 %v289, 96
    %v3661 = vpop.permute.xlu0 %3660
    %v3667 = vsel %vm392, %v3650, 0
    %v3670 = vsel %vm392, %v3651, 0
    %v3673 = vsel %vm392, %v3652, 0
    %v3676 = vsel %vm392, %v3653, 0
    %3678 = vmatprep.subr.bf16.mxu0 0
    %3679 = vmatpush1.bf16.msra.mxu0 %v3655
    %3680 = vmatprep.subr.bf16.mxu0 0
    %3681 = vmatpush1.bf16.msra.mxu0 %v3657
    %3682 = vmatprep.subr.bf16.mxu0 0
    %3683 = vmatpush1.bf16.msra.mxu0 %v3659
    %3684 = vmatprep.subr.bf16.mxu0 0
    %3685 = vmatpush1.bf16.msra.mxu0 %v3661
    %3686 = vmatprep.subr.bf16.mxu0 0
    %3687 = vmatpush1.bf16.msra.mxu0 0
    %3688 = vmatprep.subr.bf16.mxu0 0
    %3689 = vmatpush1.bf16.msra.mxu0 0
    %3690 = vmatprep.subr.bf16.mxu0 0
    %3691 = vmatpush1.bf16.msra.mxu0 0
    %3692 = vmatprep.subr.bf16.mxu0 0
    %3693 = vmatpush1.bf16.msra.mxu0 0
    %3694 = vmatprep.subr.bf16.mxu0 0
    %3695 = vmatpush1.bf16.msra.mxu0 0
    %3696 = vmatprep.subr.bf16.mxu0 0
    %3697 = vmatpush1.bf16.msra.mxu0 0
    %3698 = vmatprep.subr.bf16.mxu0 0
    %3699 = vmatpush1.bf16.msra.mxu0 0
    %3700 = vmatprep.subr.bf16.mxu0 0
    %3701 = vmatpush1.bf16.msra.mxu0 0
    %3702 = vmatprep.subr.bf16.mxu0 0
    %3703 = vmatpush1.bf16.msra.mxu0 0
    %3704 = vmatprep.subr.bf16.mxu0 0
    %3705 = vmatpush1.bf16.msra.mxu0 0
    %3706 = vmatprep.subr.bf16.mxu0 0
    %3707 = vmatpush1.bf16.msra.mxu0 0
    %3708 = vmatprep.subr.bf16.mxu0 0
    %3709 = vmatpush1.bf16.msra.mxu0 0
    %3710 = vmatprep.mubr.bf16.mxu0 0
    %3711 = vmatmul.mubr.bf16.gmra.mrb[0].mxu0 %v3667
    %v3712 = vpop.f32.mrb[0].mxu0
    %v3713 = vadd.f32 0.0, %v3712
    %v3714 = vpop.f32.mrb[0].mxu0
    %v3715 = vpop.f32.mrb[0].mxu0
    %v3716 = vadd.f32 0.0, %v3715
    %v3717 = vpop.f32.mrb[0].mxu0
    %3718 = vmatprep.mubr.bf16.mxu0 0
    %3719 = vmatmul.mubr.bf16.gmra.mrb[0].mxu0 %v3670
    %v3720 = vpop.f32.mrb[0].mxu0
    %v3721 = vadd.f32 0.0, %v3720
    %v3722 = vpop.f32.mrb[0].mxu0
    %v3723 = vpop.f32.mrb[0].mxu0
    %v3724 = vadd.f32 0.0, %v3723
    %v3725 = vpop.f32.mrb[0].mxu0
    %3726 = vmatprep.mubr.bf16.mxu0 0
    %3727 = vmatmul.mubr.bf16.gmra.mrb[0].mxu0 %v3673
    %v3728 = vpop.f32.mrb[0].mxu0
    %v3729 = vadd.f32 0.0, %v3728
    %v3730 = vpop.f32.mrb[0].mxu0
    %v3731 = vpop.f32.mrb[0].mxu0
    %v3732 = vadd.f32 0.0, %v3731
    %v3733 = vpop.f32.mrb[0].mxu0
    %3734 = vmatprep.mubr.bf16.mxu0 0
    %3735 = vmatmul.mubr.bf16.gmra.mrb[0].mxu0 %v3676
    %v3736 = vpop.f32.mrb[0].mxu0
    %v3737 = vadd.f32 0.0, %v3736
    %v3738 = vpop.f32.mrb[0].mxu0
    %v3739 = vpop.f32.mrb[0].mxu0
    %v3740 = vadd.f32 0.0, %v3739
    %v3741 = vpop.f32.mrb[0].mxu0
    %3742 = vdwg.mxu0
    %v3743 = vpack.c.bf16 %v3716, %v3713
    %v3744 = vpack.c.bf16 %v3724, %v3721
    %v3745 = vpack.c.bf16 %v3732, %v3729
    %v3746 = vpack.c.bf16 %v3740, %v3737
    %3751 = vrot.lane.b32.xlu0 %v3743, 8
    %v3752 = vpop.permute.xlu0 %3751
    %3753 = vrot.lane.b32.xlu0 %v3744, 8
    %v3754 = vpop.permute.xlu0 %3753
    %3755 = vrot.lane.b32.xlu0 %v3745, 8
    %v3756 = vpop.permute.xlu0 %3755
    %3757 = vrot.lane.b32.xlu0 %v3746, 8
    %v3758 = vpop.permute.xlu0 %3757
    %3763 = vst.msk [vmem:[#allocation2 + $0x20] sm:$0xff] %vm1225, %v3752
    %3764 = vst.msk [vmem:[#allocation2 + $0x28] sm:$0xff] %vm1225, %v3754
    %3765 = vst.msk [vmem:[#allocation2 + $0x30] sm:$0xff] %vm1225, %v3756
    %3766 = vst.msk [vmem:[#allocation2 + $0x38] sm:$0xff] %vm1225, %v3758
    %3767 = vrot.lane.b32.xlu0 %v286, 92
    %v3768 = vpop.permute.xlu0 %3767
    %3769 = vrot.lane.b32.xlu0 %v287, 92
    %v3770 = vpop.permute.xlu0 %3769
    %3771 = vrot.lane.b32.xlu0 %v288, 92
    %v3772 = vpop.permute.xlu0 %3771
    %3773 = vrot.lane.b32.xlu0 %v289, 92
    %v3774 = vpop.permute.xlu0 %3773
    %3775 = vrot.lane.b32.xlu0 %v286, 88
    %v3776 = vpop.permute.xlu0 %3775
    %3777 = vrot.lane.b32.xlu0 %v287, 88
    %v3778 = vpop.permute.xlu0 %3777
    %3779 = vrot.lane.b32.xlu0 %v288, 88
    %v3780 = vpop.permute.xlu0 %3779
    %3781 = vrot.lane.b32.xlu0 %v289, 88
    %v3782 = vpop.permute.xlu0 %3781
    %v3784 = vsel %vm302, %v3768, 0
    %v3787 = vsel %vm302, %v3770, 0
    %v3790 = vsel %vm302, %v3772, 0
    %v3793 = vsel %vm302, %v3774, 0
    %v3796 = vsel %vm302, %v3776, 0
    %v3799 = vsel %vm302, %v3778, 0
    %v3802 = vsel %vm302, %v3780, 0
    %v3805 = vsel %vm302, %v3782, 0
    %3807 = vmatprep.subr.bf16.mxu0 0
    %3808 = vmatpush1.bf16.xpose.msra.mxu0 %v3796
    %3809 = vmatprep.subr.bf16.mxu0 0
    %3810 = vmatpush1.bf16.xpose.msra.mxu0 %v3799
    %3811 = vmatprep.subr.bf16.mxu0 0
    %3812 = vmatpush1.bf16.xpose.msra.mxu0 %v3802
    %3813 = vmatprep.subr.bf16.mxu0 0
    %3814 = vmatpush1.bf16.xpose.msra.mxu0 %v3805
    %3815 = vmatprep.subr.bf16.mxu0 0
    %3816 = vmatpush1.bf16.xpose.msra.mxu0 0
    %3817 = vmatprep.subr.bf16.mxu0 0
    %3818 = vmatpush1.bf16.xpose.msra.mxu0 0
    %3819 = vmatprep.subr.bf16.mxu0 0
    %3820 = vmatpush1.bf16.xpose.msra.mxu0 0
    %3821 = vmatprep.subr.bf16.mxu0 0
    %3822 = vmatpush1.bf16.xpose.msra.mxu0 0
    %3823 = vmatprep.subr.bf16.mxu0 0
    %3824 = vmatpush1.bf16.xpose.msra.mxu0 0
    %3825 = vmatprep.subr.bf16.mxu0 0
    %3826 = vmatpush1.bf16.xpose.msra.mxu0 0
    %3827 = vmatprep.subr.bf16.mxu0 0
    %3828 = vmatpush1.bf16.xpose.msra.mxu0 0
    %3829 = vmatprep.subr.bf16.mxu0 0
    %3830 = vmatpush1.bf16.xpose.msra.mxu0 0
    %3831 = vmatprep.subr.bf16.mxu0 0
    %3832 = vmatpush1.bf16.xpose.msra.mxu0 0
    %3833 = vmatprep.subr.bf16.mxu0 0
    %3834 = vmatpush1.bf16.xpose.msra.mxu0 0
    %3835 = vmatprep.subr.bf16.mxu0 0
    %3836 = vmatpush1.bf16.xpose.msra.mxu0 0
    %3837 = vmatprep.subr.bf16.mxu0 0
    %3838 = vmatpush1.bf16.xpose.msra.mxu0 0
    %3839 = vmatprep.mubr.bf16.mxu0 0
    %3840 = vmatmul.mubr.bf16.gmra.mrb[0].mxu0 %v3784
    %v3841 = vpop.f32.mrb[0].mxu0
    %v3842 = vadd.f32 0.0, %v3841
    %v3843 = vpop.f32.mrb[0].mxu0
    %v3844 = vpop.f32.mrb[0].mxu0
    %v3845 = vadd.f32 0.0, %v3844
    %v3846 = vpop.f32.mrb[0].mxu0
    %3847 = vmatprep.mubr.bf16.mxu0 0
    %3848 = vmatmul.mubr.bf16.gmra.mrb[0].mxu0 %v3787
    %v3849 = vpop.f32.mrb[0].mxu0
    %v3850 = vadd.f32 0.0, %v3849
    %v3851 = vpop.f32.mrb[0].mxu0
    %v3852 = vpop.f32.mrb[0].mxu0
    %v3853 = vadd.f32 0.0, %v3852
    %v3854 = vpop.f32.mrb[0].mxu0
    %3855 = vmatprep.mubr.bf16.mxu0 0
    %3856 = vmatmul.mubr.bf16.gmra.mrb[0].mxu0 %v3790
    %v3857 = vpop.f32.mrb[0].mxu0
    %v3858 = vadd.f32 0.0, %v3857
    %v3859 = vpop.f32.mrb[0].mxu0
    %v3860 = vpop.f32.mrb[0].mxu0
    %v3861 = vadd.f32 0.0, %v3860
    %v3862 = vpop.f32.mrb[0].mxu0
    %3863 = vmatprep.mubr.bf16.mxu0 0
    %3864 = vmatmul.mubr.bf16.gmra.mrb[0].mxu0 %v3793
    %v3865 = vpop.f32.mrb[0].mxu0
    %v3866 = vadd.f32 0.0, %v3865
    %v3867 = vpop.f32.mrb[0].mxu0
    %v3868 = vpop.f32.mrb[0].mxu0
    %v3869 = vadd.f32 0.0, %v3868
    %v3870 = vpop.f32.mrb[0].mxu0
    %3871 = vdwg.mxu0
    %v3872 = vsel %vm392, %v3842, -inf
    %3873 = vmax.xlane.f32.xlu0 %v3872
    %v3874 = vpop.xlane.xlu0 %3873
    %v3875 = vsel %vm392, %v3845, -inf
    %3876 = vmax.xlane.f32.xlu0 %v3875
    %v3877 = vpop.xlane.xlu0 %3876
    %v3878 = vsel %vm392, %v3850, -inf
    %3879 = vmax.xlane.f32.xlu0 %v3878
    %v3880 = vpop.xlane.xlu0 %3879
    %v3881 = vsel %vm392, %v3853, -inf
    %3882 = vmax.xlane.f32.xlu0 %v3881
    %v3883 = vpop.xlane.xlu0 %3882
    %v3884 = vsel %vm392, %v3858, -inf
    %3885 = vmax.xlane.f32.xlu0 %v3884
    %v3886 = vpop.xlane.xlu0 %3885
    %v3887 = vsel %vm392, %v3861, -inf
    %3888 = vmax.xlane.f32.xlu0 %v3887
    %v3889 = vpop.xlane.xlu0 %3888
    %v3890 = vsel %vm392, %v3866, -inf
    %3891 = vmax.xlane.f32.xlu0 %v3890
    %v3892 = vpop.xlane.xlu0 %3891
    %v3893 = vsel %vm392, %v3869, -inf
    %3894 = vmax.xlane.f32.xlu0 %v3893
    %v3895 = vpop.xlane.xlu0 %3894
    %v3896 = vsub.f32 %v3842, %v3874
    %v3897 = vsub.f32 %v3845, %v3877
    %v3898 = vsub.f32 %v3850, %v3880
    %v3899 = vsub.f32 %v3853, %v3883
    %v3900 = vsub.f32 %v3858, %v3886
    %v3901 = vsub.f32 %v3861, %v3889
    %v3902 = vsub.f32 %v3866, %v3892
    %v3903 = vsub.f32 %v3869, %v3895
    %v3904 = vmul.f32 %v3896, 1.442695
    %v3905 = vpow.pop %v3904
    %v3906 = vmul.f32 %v3897, 1.442695
    %v3907 = vpow.pop %v3906
    %v3908 = vmul.f32 %v3898, 1.442695
    %v3909 = vpow.pop %v3908
    %v3910 = vmul.f32 %v3899, 1.442695
    %v3911 = vpow.pop %v3910
    %v3912 = vmul.f32 %v3900, 1.442695
    %v3913 = vpow.pop %v3912
    %v3914 = vmul.f32 %v3901, 1.442695
    %v3915 = vpow.pop %v3914
    %v3916 = vmul.f32 %v3902, 1.442695
    %v3917 = vpow.pop %v3916
    %v3918 = vmul.f32 %v3903, 1.442695
    %v3919 = vpow.pop %v3918
    %v3920 = vsel %vm392, %v3905, 0.0
    %3921 = vadd.xlane.f32.xlu0 %v3920
    %v3922 = vpop.xlane.xlu0 %3921
    %v3923 = vsel %vm392, %v3907, 0.0
    %3924 = vadd.xlane.f32.xlu0 %v3923
    %v3925 = vpop.xlane.xlu0 %3924
    %v3926 = vsel %vm392, %v3909, 0.0
    %3927 = vadd.xlane.f32.xlu0 %v3926
    %v3928 = vpop.xlane.xlu0 %3927
    %v3929 = vsel %vm392, %v3911, 0.0
    %3930 = vadd.xlane.f32.xlu0 %v3929
    %v3931 = vpop.xlane.xlu0 %3930
    %v3932 = vsel %vm392, %v3913, 0.0
    %3933 = vadd.xlane.f32.xlu0 %v3932
    %v3934 = vpop.xlane.xlu0 %3933
    %v3935 = vsel %vm392, %v3915, 0.0
    %3936 = vadd.xlane.f32.xlu0 %v3935
    %v3937 = vpop.xlane.xlu0 %3936
    %v3938 = vsel %vm392, %v3917, 0.0
    %3939 = vadd.xlane.f32.xlu0 %v3938
    %v3940 = vpop.xlane.xlu0 %3939
    %v3941 = vsel %vm392, %v3919, 0.0
    %3942 = vadd.xlane.f32.xlu0 %v3941
    %v3943 = vpop.xlane.xlu0 %3942
    %v3944 = vrcp.pop %v3922
    %v3945 = vrcp.pop %v3925
    %v3946 = vrcp.pop %v3928
    %v3947 = vrcp.pop %v3931
    %v3948 = vrcp.pop %v3934
    %v3949 = vrcp.pop %v3937
    %v3950 = vrcp.pop %v3940
    %v3951 = vrcp.pop %v3943
    %v3952 = vmul.f32 %v3905, %v3944
    %v3953 = vmul.f32 %v3907, %v3945
    %v3954 = vmul.f32 %v3909, %v3946
    %v3955 = vmul.f32 %v3911, %v3947
    %v3956 = vmul.f32 %v3913, %v3948
    %v3957 = vmul.f32 %v3915, %v3949
    %v3958 = vmul.f32 %v3917, %v3950
    %v3959 = vmul.f32 %v3919, %v3951
    %s3960 = scalar_lea.vmem [#allocation10], 704
    %3961 = vst.msk [vmem:[%s3960] sm:$0xff] %vm392, %v3952
    %3962 = vst.msk [vmem:[%s3960 + $0x8] sm:$0xff] %vm392, %v3953
    %3963 = vst.msk [vmem:[%s3960 + $0x10] sm:$0xff] %vm392, %v3954
    %3964 = vst.msk [vmem:[%s3960 + $0x18] sm:$0xff] %vm392, %v3955
    %3965 = vst.msk [vmem:[%s3960 + $0x20] sm:$0xff] %vm392, %v3956
    %3966 = vst.msk [vmem:[%s3960 + $0x28] sm:$0xff] %vm392, %v3957
    %3967 = vst.msk [vmem:[%s3960 + $0x30] sm:$0xff] %vm392, %v3958
    %3968 = vst.msk [vmem:[%s3960 + $0x38] sm:$0xff] %vm392, %v3959
    %v3969 = vpack.c.bf16 %v3953, %v3952
    %v3970 = vpack.c.bf16 %v3955, %v3954
    %v3971 = vpack.c.bf16 %v3957, %v3956
    %v3972 = vpack.c.bf16 %v3959, %v3958
    %3973 = vrot.lane.b32.xlu0 %v286, 84
    %v3974 = vpop.permute.xlu0 %3973
    %3975 = vrot.lane.b32.xlu0 %v287, 84
    %v3976 = vpop.permute.xlu0 %3975
    %3977 = vrot.lane.b32.xlu0 %v288, 84
    %v3978 = vpop.permute.xlu0 %3977
    %3979 = vrot.lane.b32.xlu0 %v289, 84
    %v3980 = vpop.permute.xlu0 %3979
    %v3986 = vsel %vm392, %v3969, 0
    %v3989 = vsel %vm392, %v3970, 0
    %v3992 = vsel %vm392, %v3971, 0
    %v3995 = vsel %vm392, %v3972, 0
    %3997 = vmatprep.subr.bf16.mxu0 0
    %3998 = vmatpush1.bf16.msra.mxu0 %v3974
    %3999 = vmatprep.subr.bf16.mxu0 0
    %4000 = vmatpush1.bf16.msra.mxu0 %v3976
    %4001 = vmatprep.subr.bf16.mxu0 0
    %4002 = vmatpush1.bf16.msra.mxu0 %v3978
    %4003 = vmatprep.subr.bf16.mxu0 0
    %4004 = vmatpush1.bf16.msra.mxu0 %v3980
    %4005 = vmatprep.subr.bf16.mxu0 0
    %4006 = vmatpush1.bf16.msra.mxu0 0
    %4007 = vmatprep.subr.bf16.mxu0 0
    %4008 = vmatpush1.bf16.msra.mxu0 0
    %4009 = vmatprep.subr.bf16.mxu0 0
    %4010 = vmatpush1.bf16.msra.mxu0 0
    %4011 = vmatprep.subr.bf16.mxu0 0
    %4012 = vmatpush1.bf16.msra.mxu0 0
    %4013 = vmatprep.subr.bf16.mxu0 0
    %4014 = vmatpush1.bf16.msra.mxu0 0
    %4015 = vmatprep.subr.bf16.mxu0 0
    %4016 = vmatpush1.bf16.msra.mxu0 0
    %4017 = vmatprep.subr.bf16.mxu0 0
    %4018 = vmatpush1.bf16.msra.mxu0 0
    %4019 = vmatprep.subr.bf16.mxu0 0
    %4020 = vmatpush1.bf16.msra.mxu0 0
    %4021 = vmatprep.subr.bf16.mxu0 0
    %4022 = vmatpush1.bf16.msra.mxu0 0
    %4023 = vmatprep.subr.bf16.mxu0 0
    %4024 = vmatpush1.bf16.msra.mxu0 0
    %4025 = vmatprep.subr.bf16.mxu0 0
    %4026 = vmatpush1.bf16.msra.mxu0 0
    %4027 = vmatprep.subr.bf16.mxu0 0
    %4028 = vmatpush1.bf16.msra.mxu0 0
    %4029 = vmatprep.mubr.bf16.mxu0 0
    %4030 = vmatmul.mubr.bf16.gmra.mrb[0].mxu0 %v3986
    %v4031 = vpop.f32.mrb[0].mxu0
    %v4032 = vadd.f32 0.0, %v4031
    %v4033 = vpop.f32.mrb[0].mxu0
    %v4034 = vpop.f32.mrb[0].mxu0
    %v4035 = vadd.f32 0.0, %v4034
    %v4036 = vpop.f32.mrb[0].mxu0
    %4037 = vmatprep.mubr.bf16.mxu0 0
    %4038 = vmatmul.mubr.bf16.gmra.mrb[0].mxu0 %v3989
    %v4039 = vpop.f32.mrb[0].mxu0
    %v4040 = vadd.f32 0.0, %v4039
    %v4041 = vpop.f32.mrb[0].mxu0
    %v4042 = vpop.f32.mrb[0].mxu0
    %v4043 = vadd.f32 0.0, %v4042
    %v4044 = vpop.f32.mrb[0].mxu0
    %4045 = vmatprep.mubr.bf16.mxu0 0
    %4046 = vmatmul.mubr.bf16.gmra.mrb[0].mxu0 %v3992
    %v4047 = vpop.f32.mrb[0].mxu0
    %v4048 = vadd.f32 0.0, %v4047
    %v4049 = vpop.f32.mrb[0].mxu0
    %v4050 = vpop.f32.mrb[0].mxu0
    %v4051 = vadd.f32 0.0, %v4050
    %v4052 = vpop.f32.mrb[0].mxu0
    %4053 = vmatprep.mubr.bf16.mxu0 0
    %4054 = vmatmul.mubr.bf16.gmra.mrb[0].mxu0 %v3995
    %v4055 = vpop.f32.mrb[0].mxu0
    %v4056 = vadd.f32 0.0, %v4055
    %v4057 = vpop.f32.mrb[0].mxu0
    %v4058 = vpop.f32.mrb[0].mxu0
    %v4059 = vadd.f32 0.0, %v4058
    %v4060 = vpop.f32.mrb[0].mxu0
    %4061 = vdwg.mxu0
    %v4062 = vpack.c.bf16 %v4035, %v4032
    %v4063 = vpack.c.bf16 %v4043, %v4040
    %v4064 = vpack.c.bf16 %v4051, %v4048
    %v4065 = vpack.c.bf16 %v4059, %v4056
    %4070 = vrot.lane.b32.xlu0 %v4062, 12
    %v4071 = vpop.permute.xlu0 %4070
    %4072 = vrot.lane.b32.xlu0 %v4063, 12
    %v4073 = vpop.permute.xlu0 %4072
    %4074 = vrot.lane.b32.xlu0 %v4064, 12
    %v4075 = vpop.permute.xlu0 %4074
    %4076 = vrot.lane.b32.xlu0 %v4065, 12
    %v4077 = vpop.permute.xlu0 %4076
    %4082 = vst.msk [vmem:[#allocation2 + $0x20] sm:$0xff] %vm1545, %v4071
    %4083 = vst.msk [vmem:[#allocation2 + $0x28] sm:$0xff] %vm1545, %v4073
    %4084 = vst.msk [vmem:[#allocation2 + $0x30] sm:$0xff] %vm1545, %v4075
    %4085 = vst.msk [vmem:[#allocation2 + $0x38] sm:$0xff] %vm1545, %v4077
    %4086 = vrot.lane.b32.xlu0 %v286, 80
    %v4087 = vpop.permute.xlu0 %4086
    %4088 = vrot.lane.b32.xlu0 %v287, 80
    %v4089 = vpop.permute.xlu0 %4088
    %4090 = vrot.lane.b32.xlu0 %v288, 80
    %v4091 = vpop.permute.xlu0 %4090
    %4092 = vrot.lane.b32.xlu0 %v289, 80
    %v4093 = vpop.permute.xlu0 %4092
    %4094 = vrot.lane.b32.xlu0 %v286, 76
    %v4095 = vpop.permute.xlu0 %4094
    %4096 = vrot.lane.b32.xlu0 %v287, 76
    %v4097 = vpop.permute.xlu0 %4096
    %4098 = vrot.lane.b32.xlu0 %v288, 76
    %v4099 = vpop.permute.xlu0 %4098
    %4100 = vrot.lane.b32.xlu0 %v289, 76
    %v4101 = vpop.permute.xlu0 %4100
    %v4103 = vsel %vm302, %v4087, 0
    %v4106 = vsel %vm302, %v4089, 0
    %v4109 = vsel %vm302, %v4091, 0
    %v4112 = vsel %vm302, %v4093, 0
    %v4115 = vsel %vm302, %v4095, 0
    %v4118 = vsel %vm302, %v4097, 0
    %v4121 = vsel %vm302, %v4099, 0
    %v4124 = vsel %vm302, %v4101, 0
    %4126 = vmatprep.subr.bf16.mxu0 0
    %4127 = vmatpush1.bf16.xpose.msra.mxu0 %v4115
    %4128 = vmatprep.subr.bf16.mxu0 0
    %4129 = vmatpush1.bf16.xpose.msra.mxu0 %v4118
    %4130 = vmatprep.subr.bf16.mxu0 0
    %4131 = vmatpush1.bf16.xpose.msra.mxu0 %v4121
    %4132 = vmatprep.subr.bf16.mxu0 0
    %4133 = vmatpush1.bf16.xpose.msra.mxu0 %v4124
    %4134 = vmatprep.subr.bf16.mxu0 0
    %4135 = vmatpush1.bf16.xpose.msra.mxu0 0
    %4136 = vmatprep.subr.bf16.mxu0 0
    %4137 = vmatpush1.bf16.xpose.msra.mxu0 0
    %4138 = vmatprep.subr.bf16.mxu0 0
    %4139 = vmatpush1.bf16.xpose.msra.mxu0 0
    %4140 = vmatprep.subr.bf16.mxu0 0
    %4141 = vmatpush1.bf16.xpose.msra.mxu0 0
    %4142 = vmatprep.subr.bf16.mxu0 0
    %4143 = vmatpush1.bf16.xpose.msra.mxu0 0
    %4144 = vmatprep.subr.bf16.mxu0 0
    %4145 = vmatpush1.bf16.xpose.msra.mxu0 0
    %4146 = vmatprep.subr.bf16.mxu0 0
    %4147 = vmatpush1.bf16.xpose.msra.mxu0 0
    %4148 = vmatprep.subr.bf16.mxu0 0
    %4149 = vmatpush1.bf16.xpose.msra.mxu0 0
    %4150 = vmatprep.subr.bf16.mxu0 0
    %4151 = vmatpush1.bf16.xpose.msra.mxu0 0
    %4152 = vmatprep.subr.bf16.mxu0 0
    %4153 = vmatpush1.bf16.xpose.msra.mxu0 0
    %4154 = vmatprep.subr.bf16.mxu0 0
    %4155 = vmatpush1.bf16.xpose.msra.mxu0 0
    %4156 = vmatprep.subr.bf16.mxu0 0
    %4157 = vmatpush1.bf16.xpose.msra.mxu0 0
    %4158 = vmatprep.mubr.bf16.mxu0 0
    %4159 = vmatmul.mubr.bf16.gmra.mrb[0].mxu0 %v4103
    %v4160 = vpop.f32.mrb[0].mxu0
    %v4161 = vadd.f32 0.0, %v4160
    %v4162 = vpop.f32.mrb[0].mxu0
    %v4163 = vpop.f32.mrb[0].mxu0
    %v4164 = vadd.f32 0.0, %v4163
    %v4165 = vpop.f32.mrb[0].mxu0
    %4166 = vmatprep.mubr.bf16.mxu0 0
    %4167 = vmatmul.mubr.bf16.gmra.mrb[0].mxu0 %v4106
    %v4168 = vpop.f32.mrb[0].mxu0
    %v4169 = vadd.f32 0.0, %v4168
    %v4170 = vpop.f32.mrb[0].mxu0
    %v4171 = vpop.f32.mrb[0].mxu0
    %v4172 = vadd.f32 0.0, %v4171
    %v4173 = vpop.f32.mrb[0].mxu0
    %4174 = vmatprep.mubr.bf16.mxu0 0
    %4175 = vmatmul.mubr.bf16.gmra.mrb[0].mxu0 %v4109
    %v4176 = vpop.f32.mrb[0].mxu0
    %v4177 = vadd.f32 0.0, %v4176
    %v4178 = vpop.f32.mrb[0].mxu0
    %v4179 = vpop.f32.mrb[0].mxu0
    %v4180 = vadd.f32 0.0, %v4179
    %v4181 = vpop.f32.mrb[0].mxu0
    %4182 = vmatprep.mubr.bf16.mxu0 0
    %4183 = vmatmul.mubr.bf16.gmra.mrb[0].mxu0 %v4112
    %v4184 = vpop.f32.mrb[0].mxu0
    %v4185 = vadd.f32 0.0, %v4184
    %v4186 = vpop.f32.mrb[0].mxu0
    %v4187 = vpop.f32.mrb[0].mxu0
    %v4188 = vadd.f32 0.0, %v4187
    %v4189 = vpop.f32.mrb[0].mxu0
    %4190 = vdwg.mxu0
    %v4191 = vsel %vm392, %v4161, -inf
    %4192 = vmax.xlane.f32.xlu0 %v4191
    %v4193 = vpop.xlane.xlu0 %4192
    %v4194 = vsel %vm392, %v4164, -inf
    %4195 = vmax.xlane.f32.xlu0 %v4194
    %v4196 = vpop.xlane.xlu0 %4195
    %v4197 = vsel %vm392, %v4169, -inf
    %4198 = vmax.xlane.f32.xlu0 %v4197
    %v4199 = vpop.xlane.xlu0 %4198
    %v4200 = vsel %vm392, %v4172, -inf
    %4201 = vmax.xlane.f32.xlu0 %v4200
    %v4202 = vpop.xlane.xlu0 %4201
    %v4203 = vsel %vm392, %v4177, -inf
    %4204 = vmax.xlane.f32.xlu0 %v4203
    %v4205 = vpop.xlane.xlu0 %4204
    %v4206 = vsel %vm392, %v4180, -inf
    %4207 = vmax.xlane.f32.xlu0 %v4206
    %v4208 = vpop.xlane.xlu0 %4207
    %v4209 = vsel %vm392, %v4185, -inf
    %4210 = vmax.xlane.f32.xlu0 %v4209
    %v4211 = vpop.xlane.xlu0 %4210
    %v4212 = vsel %vm392, %v4188, -inf
    %4213 = vmax.xlane.f32.xlu0 %v4212
    %v4214 = vpop.xlane.xlu0 %4213
    %v4215 = vsub.f32 %v4161, %v4193
    %v4216 = vsub.f32 %v4164, %v4196
    %v4217 = vsub.f32 %v4169, %v4199
    %v4218 = vsub.f32 %v4172, %v4202
    %v4219 = vsub.f32 %v4177, %v4205
    %v4220 = vsub.f32 %v4180, %v4208
    %v4221 = vsub.f32 %v4185, %v4211
    %v4222 = vsub.f32 %v4188, %v4214
    %v4223 = vmul.f32 %v4215, 1.442695
    %v4224 = vpow.pop %v4223
    %v4225 = vmul.f32 %v4216, 1.442695
    %v4226 = vpow.pop %v4225
    %v4227 = vmul.f32 %v4217, 1.442695
    %v4228 = vpow.pop %v4227
    %v4229 = vmul.f32 %v4218, 1.442695
    %v4230 = vpow.pop %v4229
    %v4231 = vmul.f32 %v4219, 1.442695
    %v4232 = vpow.pop %v4231
    %v4233 = vmul.f32 %v4220, 1.442695
    %v4234 = vpow.pop %v4233
    %v4235 = vmul.f32 %v4221, 1.442695
    %v4236 = vpow.pop %v4235
    %v4237 = vmul.f32 %v4222, 1.442695
    %v4238 = vpow.pop %v4237
    %v4239 = vsel %vm392, %v4224, 0.0
    %4240 = vadd.xlane.f32.xlu0 %v4239
    %v4241 = vpop.xlane.xlu0 %4240
    %v4242 = vsel %vm392, %v4226, 0.0
    %4243 = vadd.xlane.f32.xlu0 %v4242
    %v4244 = vpop.xlane.xlu0 %4243
    %v4245 = vsel %vm392, %v4228, 0.0
    %4246 = vadd.xlane.f32.xlu0 %v4245
    %v4247 = vpop.xlane.xlu0 %4246
    %v4248 = vsel %vm392, %v4230, 0.0
    %4249 = vadd.xlane.f32.xlu0 %v4248
    %v4250 = vpop.xlane.xlu0 %4249
    %v4251 = vsel %vm392, %v4232, 0.0
    %4252 = vadd.xlane.f32.xlu0 %v4251
    %v4253 = vpop.xlane.xlu0 %4252
    %v4254 = vsel %vm392, %v4234, 0.0
    %4255 = vadd.xlane.f32.xlu0 %v4254
    %v4256 = vpop.xlane.xlu0 %4255
    %v4257 = vsel %vm392, %v4236, 0.0
    %4258 = vadd.xlane.f32.xlu0 %v4257
    %v4259 = vpop.xlane.xlu0 %4258
    %v4260 = vsel %vm392, %v4238, 0.0
    %4261 = vadd.xlane.f32.xlu0 %v4260
    %v4262 = vpop.xlane.xlu0 %4261
    %v4263 = vrcp.pop %v4241
    %v4264 = vrcp.pop %v4244
    %v4265 = vrcp.pop %v4247
    %v4266 = vrcp.pop %v4250
    %v4267 = vrcp.pop %v4253
    %v4268 = vrcp.pop %v4256
    %v4269 = vrcp.pop %v4259
    %v4270 = vrcp.pop %v4262
    %v4271 = vmul.f32 %v4224, %v4263
    %v4272 = vmul.f32 %v4226, %v4264
    %v4273 = vmul.f32 %v4228, %v4265
    %v4274 = vmul.f32 %v4230, %v4266
    %v4275 = vmul.f32 %v4232, %v4267
    %v4276 = vmul.f32 %v4234, %v4268
    %v4277 = vmul.f32 %v4236, %v4269
    %v4278 = vmul.f32 %v4238, %v4270
    %s4279 = scalar_lea.vmem [#allocation10], 768
    %4280 = vst.msk [vmem:[%s4279] sm:$0xff] %vm392, %v4271
    %4281 = vst.msk [vmem:[%s4279 + $0x8] sm:$0xff] %vm392, %v4272
    %4282 = vst.msk [vmem:[%s4279 + $0x10] sm:$0xff] %vm392, %v4273
    %4283 = vst.msk [vmem:[%s4279 + $0x18] sm:$0xff] %vm392, %v4274
    %4284 = vst.msk [vmem:[%s4279 + $0x20] sm:$0xff] %vm392, %v4275
    %4285 = vst.msk [vmem:[%s4279 + $0x28] sm:$0xff] %vm392, %v4276
    %4286 = vst.msk [vmem:[%s4279 + $0x30] sm:$0xff] %vm392, %v4277
    %4287 = vst.msk [vmem:[%s4279 + $0x38] sm:$0xff] %vm392, %v4278
    %v4288 = vpack.c.bf16 %v4272, %v4271
    %v4289 = vpack.c.bf16 %v4274, %v4273
    %v4290 = vpack.c.bf16 %v4276, %v4275
    %v4291 = vpack.c.bf16 %v4278, %v4277
    %4292 = vrot.lane.b32.xlu0 %v286, 72
    %v4293 = vpop.permute.xlu0 %4292
    %4294 = vrot.lane.b32.xlu0 %v287, 72
    %v4295 = vpop.permute.xlu0 %4294
    %4296 = vrot.lane.b32.xlu0 %v288, 72
    %v4297 = vpop.permute.xlu0 %4296
    %4298 = vrot.lane.b32.xlu0 %v289, 72
    %v4299 = vpop.permute.xlu0 %4298
    %v4305 = vsel %vm392, %v4288, 0
    %v4308 = vsel %vm392, %v4289, 0
    %v4311 = vsel %vm392, %v4290, 0
    %v4314 = vsel %vm392, %v4291, 0
    %4316 = vmatprep.subr.bf16.mxu0 0
    %4317 = vmatpush1.bf16.msra.mxu0 %v4293
    %4318 = vmatprep.subr.bf16.mxu0 0
    %4319 = vmatpush1.bf16.msra.mxu0 %v4295
    %4320 = vmatprep.subr.bf16.mxu0 0
    %4321 = vmatpush1.bf16.msra.mxu0 %v4297
    %4322 = vmatprep.subr.bf16.mxu0 0
    %4323 = vmatpush1.bf16.msra.mxu0 %v4299
    %4324 = vmatprep.subr.bf16.mxu0 0
    %4325 = vmatpush1.bf16.msra.mxu0 0
    %4326 = vmatprep.subr.bf16.mxu0 0
    %4327 = vmatpush1.bf16.msra.mxu0 0
    %4328 = vmatprep.subr.bf16.mxu0 0
    %4329 = vmatpush1.bf16.msra.mxu0 0
    %4330 = vmatprep.subr.bf16.mxu0 0
    %4331 = vmatpush1.bf16.msra.mxu0 0
    %4332 = vmatprep.subr.bf16.mxu0 0
    %4333 = vmatpush1.bf16.msra.mxu0 0
    %4334 = vmatprep.subr.bf16.mxu0 0
    %4335 = vmatpush1.bf16.msra.mxu0 0
    %4336 = vmatprep.subr.bf16.mxu0 0
    %4337 = vmatpush1.bf16.msra.mxu0 0
    %4338 = vmatprep.subr.bf16.mxu0 0
    %4339 = vmatpush1.bf16.msra.mxu0 0
    %4340 = vmatprep.subr.bf16.mxu0 0
    %4341 = vmatpush1.bf16.msra.mxu0 0
    %4342 = vmatprep.subr.bf16.mxu0 0
    %4343 = vmatpush1.bf16.msra.mxu0 0
    %4344 = vmatprep.subr.bf16.mxu0 0
    %4345 = vmatpush1.bf16.msra.mxu0 0
    %4346 = vmatprep.subr.bf16.mxu0 0
    %4347 = vmatpush1.bf16.msra.mxu0 0
    %4348 = vmatprep.mubr.bf16.mxu0 0
    %4349 = vmatmul.mubr.bf16.gmra.mrb[0].mxu0 %v4305
    %v4350 = vpop.f32.mrb[0].mxu0
    %v4351 = vadd.f32 0.0, %v4350
    %v4352 = vpop.f32.mrb[0].mxu0
    %v4353 = vpop.f32.mrb[0].mxu0
    %v4354 = vadd.f32 0.0, %v4353
    %v4355 = vpop.f32.mrb[0].mxu0
    %4356 = vmatprep.mubr.bf16.mxu0 0
    %4357 = vmatmul.mubr.bf16.gmra.mrb[0].mxu0 %v4308
    %v4358 = vpop.f32.mrb[0].mxu0
    %v4359 = vadd.f32 0.0, %v4358
    %v4360 = vpop.f32.mrb[0].mxu0
    %v4361 = vpop.f32.mrb[0].mxu0
    %v4362 = vadd.f32 0.0, %v4361
    %v4363 = vpop.f32.mrb[0].mxu0
    %4364 = vmatprep.mubr.bf16.mxu0 0
    %4365 = vmatmul.mubr.bf16.gmra.mrb[0].mxu0 %v4311
    %v4366 = vpop.f32.mrb[0].mxu0
    %v4367 = vadd.f32 0.0, %v4366
    %v4368 = vpop.f32.mrb[0].mxu0
    %v4369 = vpop.f32.mrb[0].mxu0
    %v4370 = vadd.f32 0.0, %v4369
    %v4371 = vpop.f32.mrb[0].mxu0
    %4372 = vmatprep.mubr.bf16.mxu0 0
    %4373 = vmatmul.mubr.bf16.gmra.mrb[0].mxu0 %v4314
    %v4374 = vpop.f32.mrb[0].mxu0
    %v4375 = vadd.f32 0.0, %v4374
    %v4376 = vpop.f32.mrb[0].mxu0
    %v4377 = vpop.f32.mrb[0].mxu0
    %v4378 = vadd.f32 0.0, %v4377
    %v4379 = vpop.f32.mrb[0].mxu0
    %4380 = vdwg.mxu0
    %v4381 = vpack.c.bf16 %v4354, %v4351
    %v4382 = vpack.c.bf16 %v4362, %v4359
    %v4383 = vpack.c.bf16 %v4370, %v4367
    %v4384 = vpack.c.bf16 %v4378, %v4375
    %4389 = vrot.lane.b32.xlu0 %v4381, 16
    %v4390 = vpop.permute.xlu0 %4389
    %4391 = vrot.lane.b32.xlu0 %v4382, 16
    %v4392 = vpop.permute.xlu0 %4391
    %4393 = vrot.lane.b32.xlu0 %v4383, 16
    %v4394 = vpop.permute.xlu0 %4393
    %4395 = vrot.lane.b32.xlu0 %v4384, 16
    %v4396 = vpop.permute.xlu0 %4395
    %4401 = vst.msk [vmem:[#allocation2 + $0x20] sm:$0xff] %vm1865, %v4390
    %4402 = vst.msk [vmem:[#allocation2 + $0x28] sm:$0xff] %vm1865, %v4392
    %4403 = vst.msk [vmem:[#allocation2 + $0x30] sm:$0xff] %vm1865, %v4394
    %4404 = vst.msk [vmem:[#allocation2 + $0x38] sm:$0xff] %vm1865, %v4396
    %4405 = vrot.lane.b32.xlu0 %v286, 68
    %v4406 = vpop.permute.xlu0 %4405
    %4407 = vrot.lane.b32.xlu0 %v287, 68
    %v4408 = vpop.permute.xlu0 %4407
    %4409 = vrot.lane.b32.xlu0 %v288, 68
    %v4410 = vpop.permute.xlu0 %4409
    %4411 = vrot.lane.b32.xlu0 %v289, 68
    %v4412 = vpop.permute.xlu0 %4411
    %4413 = vrot.lane.b32.xlu0 %v286, 64
    %v4414 = vpop.permute.xlu0 %4413
    %4415 = vrot.lane.b32.xlu0 %v287, 64
    %v4416 = vpop.permute.xlu0 %4415
    %4417 = vrot.lane.b32.xlu0 %v288, 64
    %v4418 = vpop.permute.xlu0 %4417
    %4419 = vrot.lane.b32.xlu0 %v289, 64
    %v4420 = vpop.permute.xlu0 %4419
    %v4422 = vsel %vm302, %v4406, 0
    %v4425 = vsel %vm302, %v4408, 0
    %v4428 = vsel %vm302, %v4410, 0
    %v4431 = vsel %vm302, %v4412, 0
    %v4434 = vsel %vm302, %v4414, 0
    %v4437 = vsel %vm302, %v4416, 0
    %v4440 = vsel %vm302, %v4418, 0
    %v4443 = vsel %vm302, %v4420, 0
    %4445 = vmatprep.subr.bf16.mxu0 0
    %4446 = vmatpush1.bf16.xpose.msra.mxu0 %v4434
    %4447 = vmatprep.subr.bf16.mxu0 0
    %4448 = vmatpush1.bf16.xpose.msra.mxu0 %v4437
    %4449 = vmatprep.subr.bf16.mxu0 0
    %4450 = vmatpush1.bf16.xpose.msra.mxu0 %v4440
    %4451 = vmatprep.subr.bf16.mxu0 0
    %4452 = vmatpush1.bf16.xpose.msra.mxu0 %v4443
    %4453 = vmatprep.subr.bf16.mxu0 0
    %4454 = vmatpush1.bf16.xpose.msra.mxu0 0
    %4455 = vmatprep.subr.bf16.mxu0 0
    %4456 = vmatpush1.bf16.xpose.msra.mxu0 0
    %4457 = vmatprep.subr.bf16.mxu0 0
    %4458 = vmatpush1.bf16.xpose.msra.mxu0 0
    %4459 = vmatprep.subr.bf16.mxu0 0
    %4460 = vmatpush1.bf16.xpose.msra.mxu0 0
    %4461 = vmatprep.subr.bf16.mxu0 0
    %4462 = vmatpush1.bf16.xpose.msra.mxu0 0
    %4463 = vmatprep.subr.bf16.mxu0 0
    %4464 = vmatpush1.bf16.xpose.msra.mxu0 0
    %4465 = vmatprep.subr.bf16.mxu0 0
    %4466 = vmatpush1.bf16.xpose.msra.mxu0 0
    %4467 = vmatprep.subr.bf16.mxu0 0
    %4468 = vmatpush1.bf16.xpose.msra.mxu0 0
    %4469 = vmatprep.subr.bf16.mxu0 0
    %4470 = vmatpush1.bf16.xpose.msra.mxu0 0
    %4471 = vmatprep.subr.bf16.mxu0 0
    %4472 = vmatpush1.bf16.xpose.msra.mxu0 0
    %4473 = vmatprep.subr.bf16.mxu0 0
    %4474 = vmatpush1.bf16.xpose.msra.mxu0 0
    %4475 = vmatprep.subr.bf16.mxu0 0
    %4476 = vmatpush1.bf16.xpose.msra.mxu0 0
    %4477 = vmatprep.mubr.bf16.mxu0 0
    %4478 = vmatmul.mubr.bf16.gmra.mrb[0].mxu0 %v4422
    %v4479 = vpop.f32.mrb[0].mxu0
    %v4480 = vadd.f32 0.0, %v4479
    %v4481 = vpop.f32.mrb[0].mxu0
    %v4482 = vpop.f32.mrb[0].mxu0
    %v4483 = vadd.f32 0.0, %v4482
    %v4484 = vpop.f32.mrb[0].mxu0
    %4485 = vmatprep.mubr.bf16.mxu0 0
    %4486 = vmatmul.mubr.bf16.gmra.mrb[0].mxu0 %v4425
    %v4487 = vpop.f32.mrb[0].mxu0
    %v4488 = vadd.f32 0.0, %v4487
    %v4489 = vpop.f32.mrb[0].mxu0
    %v4490 = vpop.f32.mrb[0].mxu0
    %v4491 = vadd.f32 0.0, %v4490
    %v4492 = vpop.f32.mrb[0].mxu0
    %4493 = vmatprep.mubr.bf16.mxu0 0
    %4494 = vmatmul.mubr.bf16.gmra.mrb[0].mxu0 %v4428
    %v4495 = vpop.f32.mrb[0].mxu0
    %v4496 = vadd.f32 0.0, %v4495
    %v4497 = vpop.f32.mrb[0].mxu0
    %v4498 = vpop.f32.mrb[0].mxu0
    %v4499 = vadd.f32 0.0, %v4498
    %v4500 = vpop.f32.mrb[0].mxu0
    %4501 = vmatprep.mubr.bf16.mxu0 0
    %4502 = vmatmul.mubr.bf16.gmra.mrb[0].mxu0 %v4431
    %v4503 = vpop.f32.mrb[0].mxu0
    %v4504 = vadd.f32 0.0, %v4503
    %v4505 = vpop.f32.mrb[0].mxu0
    %v4506 = vpop.f32.mrb[0].mxu0
    %v4507 = vadd.f32 0.0, %v4506
    %v4508 = vpop.f32.mrb[0].mxu0
    %4509 = vdwg.mxu0
    %v4510 = vsel %vm392, %v4480, -inf
    %4511 = vmax.xlane.f32.xlu0 %v4510
    %v4512 = vpop.xlane.xlu0 %4511
    %v4513 = vsel %vm392, %v4483, -inf
    %4514 = vmax.xlane.f32.xlu0 %v4513
    %v4515 = vpop.xlane.xlu0 %4514
    %v4516 = vsel %vm392, %v4488, -inf
    %4517 = vmax.xlane.f32.xlu0 %v4516
    %v4518 = vpop.xlane.xlu0 %4517
    %v4519 = vsel %vm392, %v4491, -inf
    %4520 = vmax.xlane.f32.xlu0 %v4519
    %v4521 = vpop.xlane.xlu0 %4520
    %v4522 = vsel %vm392, %v4496, -inf
    %4523 = vmax.xlane.f32.xlu0 %v4522
    %v4524 = vpop.xlane.xlu0 %4523
    %v4525 = vsel %vm392, %v4499, -inf
    %4526 = vmax.xlane.f32.xlu0 %v4525
    %v4527 = vpop.xlane.xlu0 %4526
    %v4528 = vsel %vm392, %v4504, -inf
    %4529 = vmax.xlane.f32.xlu0 %v4528
    %v4530 = vpop.xlane.xlu0 %4529
    %v4531 = vsel %vm392, %v4507, -inf
    %4532 = vmax.xlane.f32.xlu0 %v4531
    %v4533 = vpop.xlane.xlu0 %4532
    %v4534 = vsub.f32 %v4480, %v4512
    %v4535 = vsub.f32 %v4483, %v4515
    %v4536 = vsub.f32 %v4488, %v4518
    %v4537 = vsub.f32 %v4491, %v4521
    %v4538 = vsub.f32 %v4496, %v4524
    %v4539 = vsub.f32 %v4499, %v4527
    %v4540 = vsub.f32 %v4504, %v4530
    %v4541 = vsub.f32 %v4507, %v4533
    %v4542 = vmul.f32 %v4534, 1.442695
    %v4543 = vpow.pop %v4542
    %v4544 = vmul.f32 %v4535, 1.442695
    %v4545 = vpow.pop %v4544
    %v4546 = vmul.f32 %v4536, 1.442695
    %v4547 = vpow.pop %v4546
    %v4548 = vmul.f32 %v4537, 1.442695
    %v4549 = vpow.pop %v4548
    %v4550 = vmul.f32 %v4538, 1.442695
    %v4551 = vpow.pop %v4550
    %v4552 = vmul.f32 %v4539, 1.442695
    %v4553 = vpow.pop %v4552
    %v4554 = vmul.f32 %v4540, 1.442695
    %v4555 = vpow.pop %v4554
    %v4556 = vmul.f32 %v4541, 1.442695
    %v4557 = vpow.pop %v4556
    %v4558 = vsel %vm392, %v4543, 0.0
    %4559 = vadd.xlane.f32.xlu0 %v4558
    %v4560 = vpop.xlane.xlu0 %4559
    %v4561 = vsel %vm392, %v4545, 0.0
    %4562 = vadd.xlane.f32.xlu0 %v4561
    %v4563 = vpop.xlane.xlu0 %4562
    %v4564 = vsel %vm392, %v4547, 0.0
    %4565 = vadd.xlane.f32.xlu0 %v4564
    %v4566 = vpop.xlane.xlu0 %4565
    %v4567 = vsel %vm392, %v4549, 0.0
    %4568 = vadd.xlane.f32.xlu0 %v4567
    %v4569 = vpop.xlane.xlu0 %4568
    %v4570 = vsel %vm392, %v4551, 0.0
    %4571 = vadd.xlane.f32.xlu0 %v4570
    %v4572 = vpop.xlane.xlu0 %4571
    %v4573 = vsel %vm392, %v4553, 0.0
    %4574 = vadd.xlane.f32.xlu0 %v4573
    %v4575 = vpop.xlane.xlu0 %4574
    %v4576 = vsel %vm392, %v4555, 0.0
    %4577 = vadd.xlane.f32.xlu0 %v4576
    %v4578 = vpop.xlane.xlu0 %4577
    %v4579 = vsel %vm392, %v4557, 0.0
    %4580 = vadd.xlane.f32.xlu0 %v4579
    %v4581 = vpop.xlane.xlu0 %4580
    %v4582 = vrcp.pop %v4560
    %v4583 = vrcp.pop %v4563
    %v4584 = vrcp.pop %v4566
    %v4585 = vrcp.pop %v4569
    %v4586 = vrcp.pop %v4572
    %v4587 = vrcp.pop %v4575
    %v4588 = vrcp.pop %v4578
    %v4589 = vrcp.pop %v4581
    %v4590 = vmul.f32 %v4543, %v4582
    %v4591 = vmul.f32 %v4545, %v4583
    %v4592 = vmul.f32 %v4547, %v4584
    %v4593 = vmul.f32 %v4549, %v4585
    %v4594 = vmul.f32 %v4551, %v4586
    %v4595 = vmul.f32 %v4553, %v4587
    %v4596 = vmul.f32 %v4555, %v4588
    %v4597 = vmul.f32 %v4557, %v4589
    %s4598 = scalar_lea.vmem [#allocation10], 832
    %4599 = vst.msk [vmem:[%s4598] sm:$0xff] %vm392, %v4590
    %4600 = vst.msk [vmem:[%s4598 + $0x8] sm:$0xff] %vm392, %v4591
    %4601 = vst.msk [vmem:[%s4598 + $0x10] sm:$0xff] %vm392, %v4592
    %4602 = vst.msk [vmem:[%s4598 + $0x18] sm:$0xff] %vm392, %v4593
    %4603 = vst.msk [vmem:[%s4598 + $0x20] sm:$0xff] %vm392, %v4594
    %4604 = vst.msk [vmem:[%s4598 + $0x28] sm:$0xff] %vm392, %v4595
    %4605 = vst.msk [vmem:[%s4598 + $0x30] sm:$0xff] %vm392, %v4596
    %4606 = vst.msk [vmem:[%s4598 + $0x38] sm:$0xff] %vm392, %v4597
    %v4607 = vpack.c.bf16 %v4591, %v4590
    %v4608 = vpack.c.bf16 %v4593, %v4592
    %v4609 = vpack.c.bf16 %v4595, %v4594
    %v4610 = vpack.c.bf16 %v4597, %v4596
    %4611 = vrot.lane.b32.xlu0 %v286, 60
    %v4612 = vpop.permute.xlu0 %4611
    %4613 = vrot.lane.b32.xlu0 %v287, 60
    %v4614 = vpop.permute.xlu0 %4613
    %4615 = vrot.lane.b32.xlu0 %v288, 60
    %v4616 = vpop.permute.xlu0 %4615
    %4617 = vrot.lane.b32.xlu0 %v289, 60
    %v4618 = vpop.permute.xlu0 %4617
    %v4624 = vsel %vm392, %v4607, 0
    %v4627 = vsel %vm392, %v4608, 0
    %v4630 = vsel %vm392, %v4609, 0
    %v4633 = vsel %vm392, %v4610, 0
    %4635 = vmatprep.subr.bf16.mxu0 0
    %4636 = vmatpush1.bf16.msra.mxu0 %v4612
    %4637 = vmatprep.subr.bf16.mxu0 0
    %4638 = vmatpush1.bf16.msra.mxu0 %v4614
    %4639 = vmatprep.subr.bf16.mxu0 0
    %4640 = vmatpush1.bf16.msra.mxu0 %v4616
    %4641 = vmatprep.subr.bf16.mxu0 0
    %4642 = vmatpush1.bf16.msra.mxu0 %v4618
    %4643 = vmatprep.subr.bf16.mxu0 0
    %4644 = vmatpush1.bf16.msra.mxu0 0
    %4645 = vmatprep.subr.bf16.mxu0 0
    %4646 = vmatpush1.bf16.msra.mxu0 0
    %4647 = vmatprep.subr.bf16.mxu0 0
    %4648 = vmatpush1.bf16.msra.mxu0 0
    %4649 = vmatprep.subr.bf16.mxu0 0
    %4650 = vmatpush1.bf16.msra.mxu0 0
    %4651 = vmatprep.subr.bf16.mxu0 0
    %4652 = vmatpush1.bf16.msra.mxu0 0
    %4653 = vmatprep.subr.bf16.mxu0 0
    %4654 = vmatpush1.bf16.msra.mxu0 0
    %4655 = vmatprep.subr.bf16.mxu0 0
    %4656 = vmatpush1.bf16.msra.mxu0 0
    %4657 = vmatprep.subr.bf16.mxu0 0
    %4658 = vmatpush1.bf16.msra.mxu0 0
    %4659 = vmatprep.subr.bf16.mxu0 0
    %4660 = vmatpush1.bf16.msra.mxu0 0
    %4661 = vmatprep.subr.bf16.mxu0 0
    %4662 = vmatpush1.bf16.msra.mxu0 0
    %4663 = vmatprep.subr.bf16.mxu0 0
    %4664 = vmatpush1.bf16.msra.mxu0 0
    %4665 = vmatprep.subr.bf16.mxu0 0
    %4666 = vmatpush1.bf16.msra.mxu0 0
    %4667 = vmatprep.mubr.bf16.mxu0 0
    %4668 = vmatmul.mubr.bf16.gmra.mrb[0].mxu0 %v4624
    %v4669 = vpop.f32.mrb[0].mxu0
    %v4670 = vadd.f32 0.0, %v4669
    %v4671 = vpop.f32.mrb[0].mxu0
    %v4672 = vpop.f32.mrb[0].mxu0
    %v4673 = vadd.f32 0.0, %v4672
    %v4674 = vpop.f32.mrb[0].mxu0
    %4675 = vmatprep.mubr.bf16.mxu0 0
    %4676 = vmatmul.mubr.bf16.gmra.mrb[0].mxu0 %v4627
    %v4677 = vpop.f32.mrb[0].mxu0
    %v4678 = vadd.f32 0.0, %v4677
    %v4679 = vpop.f32.mrb[0].mxu0
    %v4680 = vpop.f32.mrb[0].mxu0
    %v4681 = vadd.f32 0.0, %v4680
    %v4682 = vpop.f32.mrb[0].mxu0
    %4683 = vmatprep.mubr.bf16.mxu0 0
    %4684 = vmatmul.mubr.bf16.gmra.mrb[0].mxu0 %v4630
    %v4685 = vpop.f32.mrb[0].mxu0
    %v4686 = vadd.f32 0.0, %v4685
    %v4687 = vpop.f32.mrb[0].mxu0
    %v4688 = vpop.f32.mrb[0].mxu0
    %v4689 = vadd.f32 0.0, %v4688
    %v4690 = vpop.f32.mrb[0].mxu0
    %4691 = vmatprep.mubr.bf16.mxu0 0
    %4692 = vmatmul.mubr.bf16.gmra.mrb[0].mxu0 %v4633
    %v4693 = vpop.f32.mrb[0].mxu0
    %v4694 = vadd.f32 0.0, %v4693
    %v4695 = vpop.f32.mrb[0].mxu0
    %v4696 = vpop.f32.mrb[0].mxu0
    %v4697 = vadd.f32 0.0, %v4696
    %v4698 = vpop.f32.mrb[0].mxu0
    %4699 = vdwg.mxu0
    %v4700 = vpack.c.bf16 %v4673, %v4670
    %v4701 = vpack.c.bf16 %v4681, %v4678
    %v4702 = vpack.c.bf16 %v4689, %v4686
    %v4703 = vpack.c.bf16 %v4697, %v4694
    %4708 = vrot.lane.b32.xlu0 %v4700, 20
    %v4709 = vpop.permute.xlu0 %4708
    %4710 = vrot.lane.b32.xlu0 %v4701, 20
    %v4711 = vpop.permute.xlu0 %4710
    %4712 = vrot.lane.b32.xlu0 %v4702, 20
    %v4713 = vpop.permute.xlu0 %4712
    %4714 = vrot.lane.b32.xlu0 %v4703, 20
    %v4715 = vpop.permute.xlu0 %4714
    %4720 = vst.msk [vmem:[#allocation2 + $0x20] sm:$0xff] %vm2185, %v4709
    %4721 = vst.msk [vmem:[#allocation2 + $0x28] sm:$0xff] %vm2185, %v4711
    %4722 = vst.msk [vmem:[#allocation2 + $0x30] sm:$0xff] %vm2185, %v4713
    %4723 = vst.msk [vmem:[#allocation2 + $0x38] sm:$0xff] %vm2185, %v4715
    %4724 = vrot.lane.b32.xlu0 %v286, 56
    %v4725 = vpop.permute.xlu0 %4724
    %4726 = vrot.lane.b32.xlu0 %v287, 56
    %v4727 = vpop.permute.xlu0 %4726
    %4728 = vrot.lane.b32.xlu0 %v288, 56
    %v4729 = vpop.permute.xlu0 %4728
    %4730 = vrot.lane.b32.xlu0 %v289, 56
    %v4731 = vpop.permute.xlu0 %4730
    %4732 = vrot.lane.b32.xlu0 %v286, 52
    %v4733 = vpop.permute.xlu0 %4732
    %4734 = vrot.lane.b32.xlu0 %v287, 52
    %v4735 = vpop.permute.xlu0 %4734
    %4736 = vrot.lane.b32.xlu0 %v288, 52
    %v4737 = vpop.permute.xlu0 %4736
    %4738 = vrot.lane.b32.xlu0 %v289, 52
    %v4739 = vpop.permute.xlu0 %4738
    %v4741 = vsel %vm302, %v4725, 0
    %v4744 = vsel %vm302, %v4727, 0
    %v4747 = vsel %vm302, %v4729, 0
    %v4750 = vsel %vm302, %v4731, 0
    %v4753 = vsel %vm302, %v4733, 0
    %v4756 = vsel %vm302, %v4735, 0
    %v4759 = vsel %vm302, %v4737, 0
    %v4762 = vsel %vm302, %v4739, 0
    %4764 = vmatprep.subr.bf16.mxu0 0
    %4765 = vmatpush1.bf16.xpose.msra.mxu0 %v4753
    %4766 = vmatprep.subr.bf16.mxu0 0
    %4767 = vmatpush1.bf16.xpose.msra.mxu0 %v4756
    %4768 = vmatprep.subr.bf16.mxu0 0
    %4769 = vmatpush1.bf16.xpose.msra.mxu0 %v4759
    %4770 = vmatprep.subr.bf16.mxu0 0
    %4771 = vmatpush1.bf16.xpose.msra.mxu0 %v4762
    %4772 = vmatprep.subr.bf16.mxu0 0
    %4773 = vmatpush1.bf16.xpose.msra.mxu0 0
    %4774 = vmatprep.subr.bf16.mxu0 0
    %4775 = vmatpush1.bf16.xpose.msra.mxu0 0
    %4776 = vmatprep.subr.bf16.mxu0 0
    %4777 = vmatpush1.bf16.xpose.msra.mxu0 0
    %4778 = vmatprep.subr.bf16.mxu0 0
    %4779 = vmatpush1.bf16.xpose.msra.mxu0 0
    %4780 = vmatprep.subr.bf16.mxu0 0
    %4781 = vmatpush1.bf16.xpose.msra.mxu0 0
    %4782 = vmatprep.subr.bf16.mxu0 0
    %4783 = vmatpush1.bf16.xpose.msra.mxu0 0
    %4784 = vmatprep.subr.bf16.mxu0 0
    %4785 = vmatpush1.bf16.xpose.msra.mxu0 0
    %4786 = vmatprep.subr.bf16.mxu0 0
    %4787 = vmatpush1.bf16.xpose.msra.mxu0 0
    %4788 = vmatprep.subr.bf16.mxu0 0
    %4789 = vmatpush1.bf16.xpose.msra.mxu0 0
    %4790 = vmatprep.subr.bf16.mxu0 0
    %4791 = vmatpush1.bf16.xpose.msra.mxu0 0
    %4792 = vmatprep.subr.bf16.mxu0 0
    %4793 = vmatpush1.bf16.xpose.msra.mxu0 0
    %4794 = vmatprep.subr.bf16.mxu0 0
    %4795 = vmatpush1.bf16.xpose.msra.mxu0 0
    %4796 = vmatprep.mubr.bf16.mxu0 0
    %4797 = vmatmul.mubr.bf16.gmra.mrb[0].mxu0 %v4741
    %v4798 = vpop.f32.mrb[0].mxu0
    %v4799 = vadd.f32 0.0, %v4798
    %v4800 = vpop.f32.mrb[0].mxu0
    %v4801 = vpop.f32.mrb[0].mxu0
    %v4802 = vadd.f32 0.0, %v4801
    %v4803 = vpop.f32.mrb[0].mxu0
    %4804 = vmatprep.mubr.bf16.mxu0 0
    %4805 = vmatmul.mubr.bf16.gmra.mrb[0].mxu0 %v4744
    %v4806 = vpop.f32.mrb[0].mxu0
    %v4807 = vadd.f32 0.0, %v4806
    %v4808 = vpop.f32.mrb[0].mxu0
    %v4809 = vpop.f32.mrb[0].mxu0
    %v4810 = vadd.f32 0.0, %v4809
    %v4811 = vpop.f32.mrb[0].mxu0
    %4812 = vmatprep.mubr.bf16.mxu0 0
    %4813 = vmatmul.mubr.bf16.gmra.mrb[0].mxu0 %v4747
    %v4814 = vpop.f32.mrb[0].mxu0
    %v4815 = vadd.f32 0.0, %v4814
    %v4816 = vpop.f32.mrb[0].mxu0
    %v4817 = vpop.f32.mrb[0].mxu0
    %v4818 = vadd.f32 0.0, %v4817
    %v4819 = vpop.f32.mrb[0].mxu0
    %4820 = vmatprep.mubr.bf16.mxu0 0
    %4821 = vmatmul.mubr.bf16.gmra.mrb[0].mxu0 %v4750
    %v4822 = vpop.f32.mrb[0].mxu0
    %v4823 = vadd.f32 0.0, %v4822
    %v4824 = vpop.f32.mrb[0].mxu0
    %v4825 = vpop.f32.mrb[0].mxu0
    %v4826 = vadd.f32 0.0, %v4825
    %v4827 = vpop.f32.mrb[0].mxu0
    %4828 = vdwg.mxu0
    %v4829 = vsel %vm392, %v4799, -inf
    %4830 = vmax.xlane.f32.xlu0 %v4829
    %v4831 = vpop.xlane.xlu0 %4830
    %v4832 = vsel %vm392, %v4802, -inf
    %4833 = vmax.xlane.f32.xlu0 %v4832
    %v4834 = vpop.xlane.xlu0 %4833
    %v4835 = vsel %vm392, %v4807, -inf
    %4836 = vmax.xlane.f32.xlu0 %v4835
    %v4837 = vpop.xlane.xlu0 %4836
    %v4838 = vsel %vm392, %v4810, -inf
    %4839 = vmax.xlane.f32.xlu0 %v4838
    %v4840 = vpop.xlane.xlu0 %4839
    %v4841 = vsel %vm392, %v4815, -inf
    %4842 = vmax.xlane.f32.xlu0 %v4841
    %v4843 = vpop.xlane.xlu0 %4842
    %v4844 = vsel %vm392, %v4818, -inf
    %4845 = vmax.xlane.f32.xlu0 %v4844
    %v4846 = vpop.xlane.xlu0 %4845
    %v4847 = vsel %vm392, %v4823, -inf
    %4848 = vmax.xlane.f32.xlu0 %v4847
    %v4849 = vpop.xlane.xlu0 %4848
    %v4850 = vsel %vm392, %v4826, -inf
    %4851 = vmax.xlane.f32.xlu0 %v4850
    %v4852 = vpop.xlane.xlu0 %4851
    %v4853 = vsub.f32 %v4799, %v4831
    %v4854 = vsub.f32 %v4802, %v4834
    %v4855 = vsub.f32 %v4807, %v4837
    %v4856 = vsub.f32 %v4810, %v4840
    %v4857 = vsub.f32 %v4815, %v4843
    %v4858 = vsub.f32 %v4818, %v4846
    %v4859 = vsub.f32 %v4823, %v4849
    %v4860 = vsub.f32 %v4826, %v4852
    %v4861 = vmul.f32 %v4853, 1.442695
    %v4862 = vpow.pop %v4861
    %v4863 = vmul.f32 %v4854, 1.442695
    %v4864 = vpow.pop %v4863
    %v4865 = vmul.f32 %v4855, 1.442695
    %v4866 = vpow.pop %v4865
    %v4867 = vmul.f32 %v4856, 1.442695
    %v4868 = vpow.pop %v4867
    %v4869 = vmul.f32 %v4857, 1.442695
    %v4870 = vpow.pop %v4869
    %v4871 = vmul.f32 %v4858, 1.442695
    %v4872 = vpow.pop %v4871
    %v4873 = vmul.f32 %v4859, 1.442695
    %v4874 = vpow.pop %v4873
    %v4875 = vmul.f32 %v4860, 1.442695
    %v4876 = vpow.pop %v4875
    %v4877 = vsel %vm392, %v4862, 0.0
    %4878 = vadd.xlane.f32.xlu0 %v4877
    %v4879 = vpop.xlane.xlu0 %4878
    %v4880 = vsel %vm392, %v4864, 0.0
    %4881 = vadd.xlane.f32.xlu0 %v4880
    %v4882 = vpop.xlane.xlu0 %4881
    %v4883 = vsel %vm392, %v4866, 0.0
    %4884 = vadd.xlane.f32.xlu0 %v4883
    %v4885 = vpop.xlane.xlu0 %4884
    %v4886 = vsel %vm392, %v4868, 0.0
    %4887 = vadd.xlane.f32.xlu0 %v4886
    %v4888 = vpop.xlane.xlu0 %4887
    %v4889 = vsel %vm392, %v4870, 0.0
    %4890 = vadd.xlane.f32.xlu0 %v4889
    %v4891 = vpop.xlane.xlu0 %4890
    %v4892 = vsel %vm392, %v4872, 0.0
    %4893 = vadd.xlane.f32.xlu0 %v4892
    %v4894 = vpop.xlane.xlu0 %4893
    %v4895 = vsel %vm392, %v4874, 0.0
    %4896 = vadd.xlane.f32.xlu0 %v4895
    %v4897 = vpop.xlane.xlu0 %4896
    %v4898 = vsel %vm392, %v4876, 0.0
    %4899 = vadd.xlane.f32.xlu0 %v4898
    %v4900 = vpop.xlane.xlu0 %4899
    %v4901 = vrcp.pop %v4879
    %v4902 = vrcp.pop %v4882
    %v4903 = vrcp.pop %v4885
    %v4904 = vrcp.pop %v4888
    %v4905 = vrcp.pop %v4891
    %v4906 = vrcp.pop %v4894
    %v4907 = vrcp.pop %v4897
    %v4908 = vrcp.pop %v4900
    %v4909 = vmul.f32 %v4862, %v4901
    %v4910 = vmul.f32 %v4864, %v4902
    %v4911 = vmul.f32 %v4866, %v4903
    %v4912 = vmul.f32 %v4868, %v4904
    %v4913 = vmul.f32 %v4870, %v4905
    %v4914 = vmul.f32 %v4872, %v4906
    %v4915 = vmul.f32 %v4874, %v4907
    %v4916 = vmul.f32 %v4876, %v4908
    %s4917 = scalar_lea.vmem [#allocation10], 896
    %4918 = vst.msk [vmem:[%s4917] sm:$0xff] %vm392, %v4909
    %4919 = vst.msk [vmem:[%s4917 + $0x8] sm:$0xff] %vm392, %v4910
    %4920 = vst.msk [vmem:[%s4917 + $0x10] sm:$0xff] %vm392, %v4911
    %4921 = vst.msk [vmem:[%s4917 + $0x18] sm:$0xff] %vm392, %v4912
    %4922 = vst.msk [vmem:[%s4917 + $0x20] sm:$0xff] %vm392, %v4913
    %4923 = vst.msk [vmem:[%s4917 + $0x28] sm:$0xff] %vm392, %v4914
    %4924 = vst.msk [vmem:[%s4917 + $0x30] sm:$0xff] %vm392, %v4915
    %4925 = vst.msk [vmem:[%s4917 + $0x38] sm:$0xff] %vm392, %v4916
    %v4926 = vpack.c.bf16 %v4910, %v4909
    %v4927 = vpack.c.bf16 %v4912, %v4911
    %v4928 = vpack.c.bf16 %v4914, %v4913
    %v4929 = vpack.c.bf16 %v4916, %v4915
    %4930 = vrot.lane.b32.xlu0 %v286, 48
    %v4931 = vpop.permute.xlu0 %4930
    %4932 = vrot.lane.b32.xlu0 %v287, 48
    %v4933 = vpop.permute.xlu0 %4932
    %4934 = vrot.lane.b32.xlu0 %v288, 48
    %v4935 = vpop.permute.xlu0 %4934
    %4936 = vrot.lane.b32.xlu0 %v289, 48
    %v4937 = vpop.permute.xlu0 %4936
    %v4943 = vsel %vm392, %v4926, 0
    %v4946 = vsel %vm392, %v4927, 0
    %v4949 = vsel %vm392, %v4928, 0
    %v4952 = vsel %vm392, %v4929, 0
    %4954 = vmatprep.subr.bf16.mxu0 0
    %4955 = vmatpush1.bf16.msra.mxu0 %v4931
    %4956 = vmatprep.subr.bf16.mxu0 0
    %4957 = vmatpush1.bf16.msra.mxu0 %v4933
    %4958 = vmatprep.subr.bf16.mxu0 0
    %4959 = vmatpush1.bf16.msra.mxu0 %v4935
    %4960 = vmatprep.subr.bf16.mxu0 0
    %4961 = vmatpush1.bf16.msra.mxu0 %v4937
    %4962 = vmatprep.subr.bf16.mxu0 0
    %4963 = vmatpush1.bf16.msra.mxu0 0
    %4964 = vmatprep.subr.bf16.mxu0 0
    %4965 = vmatpush1.bf16.msra.mxu0 0
    %4966 = vmatprep.subr.bf16.mxu0 0
    %4967 = vmatpush1.bf16.msra.mxu0 0
    %4968 = vmatprep.subr.bf16.mxu0 0
    %4969 = vmatpush1.bf16.msra.mxu0 0
    %4970 = vmatprep.subr.bf16.mxu0 0
    %4971 = vmatpush1.bf16.msra.mxu0 0
    %4972 = vmatprep.subr.bf16.mxu0 0
    %4973 = vmatpush1.bf16.msra.mxu0 0
    %4974 = vmatprep.subr.bf16.mxu0 0
    %4975 = vmatpush1.bf16.msra.mxu0 0
    %4976 = vmatprep.subr.bf16.mxu0 0
    %4977 = vmatpush1.bf16.msra.mxu0 0
    %4978 = vmatprep.subr.bf16.mxu0 0
    %4979 = vmatpush1.bf16.msra.mxu0 0
    %4980 = vmatprep.subr.bf16.mxu0 0
    %4981 = vmatpush1.bf16.msra.mxu0 0
    %4982 = vmatprep.subr.bf16.mxu0 0
    %4983 = vmatpush1.bf16.msra.mxu0 0
    %4984 = vmatprep.subr.bf16.mxu0 0
    %4985 = vmatpush1.bf16.msra.mxu0 0
    %4986 = vmatprep.mubr.bf16.mxu0 0
    %4987 = vmatmul.mubr.bf16.gmra.mrb[0].mxu0 %v4943
    %v4988 = vpop.f32.mrb[0].mxu0
    %v4989 = vadd.f32 0.0, %v4988
    %v4990 = vpop.f32.mrb[0].mxu0
    %v4991 = vpop.f32.mrb[0].mxu0
    %v4992 = vadd.f32 0.0, %v4991
    %v4993 = vpop.f32.mrb[0].mxu0
    %4994 = vmatprep.mubr.bf16.mxu0 0
    %4995 = vmatmul.mubr.bf16.gmra.mrb[0].mxu0 %v4946
    %v4996 = vpop.f32.mrb[0].mxu0
    %v4997 = vadd.f32 0.0, %v4996
    %v4998 = vpop.f32.mrb[0].mxu0
    %v4999 = vpop.f32.mrb[0].mxu0
    %v5000 = vadd.f32 0.0, %v4999
    %v5001 = vpop.f32.mrb[0].mxu0
    %5002 = vmatprep.mubr.bf16.mxu0 0
    %5003 = vmatmul.mubr.bf16.gmra.mrb[0].mxu0 %v4949
    %v5004 = vpop.f32.mrb[0].mxu0
    %v5005 = vadd.f32 0.0, %v5004
    %v5006 = vpop.f32.mrb[0].mxu0
    %v5007 = vpop.f32.mrb[0].mxu0
    %v5008 = vadd.f32 0.0, %v5007
    %v5009 = vpop.f32.mrb[0].mxu0
    %5010 = vmatprep.mubr.bf16.mxu0 0
    %5011 = vmatmul.mubr.bf16.gmra.mrb[0].mxu0 %v4952
    %v5012 = vpop.f32.mrb[0].mxu0
    %v5013 = vadd.f32 0.0, %v5012
    %v5014 = vpop.f32.mrb[0].mxu0
    %v5015 = vpop.f32.mrb[0].mxu0
    %v5016 = vadd.f32 0.0, %v5015
    %v5017 = vpop.f32.mrb[0].mxu0
    %5018 = vdwg.mxu0
    %v5019 = vpack.c.bf16 %v4992, %v4989
    %v5020 = vpack.c.bf16 %v5000, %v4997
    %v5021 = vpack.c.bf16 %v5008, %v5005
    %v5022 = vpack.c.bf16 %v5016, %v5013
    %5027 = vrot.lane.b32.xlu0 %v5019, 24
    %v5028 = vpop.permute.xlu0 %5027
    %5029 = vrot.lane.b32.xlu0 %v5020, 24
    %v5030 = vpop.permute.xlu0 %5029
    %5031 = vrot.lane.b32.xlu0 %v5021, 24
    %v5032 = vpop.permute.xlu0 %5031
    %5033 = vrot.lane.b32.xlu0 %v5022, 24
    %v5034 = vpop.permute.xlu0 %5033
    %5039 = vst.msk [vmem:[#allocation2 + $0x20] sm:$0xff] %vm2505, %v5028
    %5040 = vst.msk [vmem:[#allocation2 + $0x28] sm:$0xff] %vm2505, %v5030
    %5041 = vst.msk [vmem:[#allocation2 + $0x30] sm:$0xff] %vm2505, %v5032
    %5042 = vst.msk [vmem:[#allocation2 + $0x38] sm:$0xff] %vm2505, %v5034
    %5043 = vrot.lane.b32.xlu0 %v286, 44
    %v5044 = vpop.permute.xlu0 %5043
    %5045 = vrot.lane.b32.xlu0 %v287, 44
    %v5046 = vpop.permute.xlu0 %5045
    %5047 = vrot.lane.b32.xlu0 %v288, 44
    %v5048 = vpop.permute.xlu0 %5047
    %5049 = vrot.lane.b32.xlu0 %v289, 44
    %v5050 = vpop.permute.xlu0 %5049
    %5051 = vrot.lane.b32.xlu0 %v286, 40
    %v5052 = vpop.permute.xlu0 %5051
    %5053 = vrot.lane.b32.xlu0 %v287, 40
    %v5054 = vpop.permute.xlu0 %5053
    %5055 = vrot.lane.b32.xlu0 %v288, 40
    %v5056 = vpop.permute.xlu0 %5055
    %5057 = vrot.lane.b32.xlu0 %v289, 40
    %v5058 = vpop.permute.xlu0 %5057
    %v5060 = vsel %vm302, %v5044, 0
    %v5063 = vsel %vm302, %v5046, 0
    %v5066 = vsel %vm302, %v5048, 0
    %v5069 = vsel %vm302, %v5050, 0
    %v5072 = vsel %vm302, %v5052, 0
    %v5075 = vsel %vm302, %v5054, 0
    %v5078 = vsel %vm302, %v5056, 0
    %v5081 = vsel %vm302, %v5058, 0
    %5083 = vmatprep.subr.bf16.mxu0 0
    %5084 = vmatpush1.bf16.xpose.msra.mxu0 %v5072
    %5085 = vmatprep.subr.bf16.mxu0 0
    %5086 = vmatpush1.bf16.xpose.msra.mxu0 %v5075
    %5087 = vmatprep.subr.bf16.mxu0 0
    %5088 = vmatpush1.bf16.xpose.msra.mxu0 %v5078
    %5089 = vmatprep.subr.bf16.mxu0 0
    %5090 = vmatpush1.bf16.xpose.msra.mxu0 %v5081
    %5091 = vmatprep.subr.bf16.mxu0 0
    %5092 = vmatpush1.bf16.xpose.msra.mxu0 0
    %5093 = vmatprep.subr.bf16.mxu0 0
    %5094 = vmatpush1.bf16.xpose.msra.mxu0 0
    %5095 = vmatprep.subr.bf16.mxu0 0
    %5096 = vmatpush1.bf16.xpose.msra.mxu0 0
    %5097 = vmatprep.subr.bf16.mxu0 0
    %5098 = vmatpush1.bf16.xpose.msra.mxu0 0
    %5099 = vmatprep.subr.bf16.mxu0 0
    %5100 = vmatpush1.bf16.xpose.msra.mxu0 0
    %5101 = vmatprep.subr.bf16.mxu0 0
    %5102 = vmatpush1.bf16.xpose.msra.mxu0 0
    %5103 = vmatprep.subr.bf16.mxu0 0
    %5104 = vmatpush1.bf16.xpose.msra.mxu0 0
    %5105 = vmatprep.subr.bf16.mxu0 0
    %5106 = vmatpush1.bf16.xpose.msra.mxu0 0
    %5107 = vmatprep.subr.bf16.mxu0 0
    %5108 = vmatpush1.bf16.xpose.msra.mxu0 0
    %5109 = vmatprep.subr.bf16.mxu0 0
    %5110 = vmatpush1.bf16.xpose.msra.mxu0 0
    %5111 = vmatprep.subr.bf16.mxu0 0
    %5112 = vmatpush1.bf16.xpose.msra.mxu0 0
    %5113 = vmatprep.subr.bf16.mxu0 0
    %5114 = vmatpush1.bf16.xpose.msra.mxu0 0
    %5115 = vmatprep.mubr.bf16.mxu0 0
    %5116 = vmatmul.mubr.bf16.gmra.mrb[0].mxu0 %v5060
    %v5117 = vpop.f32.mrb[0].mxu0
    %v5118 = vadd.f32 0.0, %v5117
    %v5119 = vpop.f32.mrb[0].mxu0
    %v5120 = vpop.f32.mrb[0].mxu0
    %v5121 = vadd.f32 0.0, %v5120
    %v5122 = vpop.f32.mrb[0].mxu0
    %5123 = vmatprep.mubr.bf16.mxu0 0
    %5124 = vmatmul.mubr.bf16.gmra.mrb[0].mxu0 %v5063
    %v5125 = vpop.f32.mrb[0].mxu0
    %v5126 = vadd.f32 0.0, %v5125
    %v5127 = vpop.f32.mrb[0].mxu0
    %v5128 = vpop.f32.mrb[0].mxu0
    %v5129 = vadd.f32 0.0, %v5128
    %v5130 = vpop.f32.mrb[0].mxu0
    %5131 = vmatprep.mubr.bf16.mxu0 0
    %5132 = vmatmul.mubr.bf16.gmra.mrb[0].mxu0 %v5066
    %v5133 = vpop.f32.mrb[0].mxu0
    %v5134 = vadd.f32 0.0, %v5133
    %v5135 = vpop.f32.mrb[0].mxu0
    %v5136 = vpop.f32.mrb[0].mxu0
    %v5137 = vadd.f32 0.0, %v5136
    %v5138 = vpop.f32.mrb[0].mxu0
    %5139 = vmatprep.mubr.bf16.mxu0 0
    %5140 = vmatmul.mubr.bf16.gmra.mrb[0].mxu0 %v5069
    %v5141 = vpop.f32.mrb[0].mxu0
    %v5142 = vadd.f32 0.0, %v5141
    %v5143 = vpop.f32.mrb[0].mxu0
    %v5144 = vpop.f32.mrb[0].mxu0
    %v5145 = vadd.f32 0.0, %v5144
    %v5146 = vpop.f32.mrb[0].mxu0
    %5147 = vdwg.mxu0
    %v5148 = vsel %vm392, %v5118, -inf
    %5149 = vmax.xlane.f32.xlu0 %v5148
    %v5150 = vpop.xlane.xlu0 %5149
    %v5151 = vsel %vm392, %v5121, -inf
    %5152 = vmax.xlane.f32.xlu0 %v5151
    %v5153 = vpop.xlane.xlu0 %5152
    %v5154 = vsel %vm392, %v5126, -inf
    %5155 = vmax.xlane.f32.xlu0 %v5154
    %v5156 = vpop.xlane.xlu0 %5155
    %v5157 = vsel %vm392, %v5129, -inf
    %5158 = vmax.xlane.f32.xlu0 %v5157
    %v5159 = vpop.xlane.xlu0 %5158
    %v5160 = vsel %vm392, %v5134, -inf
    %5161 = vmax.xlane.f32.xlu0 %v5160
    %v5162 = vpop.xlane.xlu0 %5161
    %v5163 = vsel %vm392, %v5137, -inf
    %5164 = vmax.xlane.f32.xlu0 %v5163
    %v5165 = vpop.xlane.xlu0 %5164
    %v5166 = vsel %vm392, %v5142, -inf
    %5167 = vmax.xlane.f32.xlu0 %v5166
    %v5168 = vpop.xlane.xlu0 %5167
    %v5169 = vsel %vm392, %v5145, -inf
    %5170 = vmax.xlane.f32.xlu0 %v5169
    %v5171 = vpop.xlane.xlu0 %5170
    %v5172 = vsub.f32 %v5118, %v5150
    %v5173 = vsub.f32 %v5121, %v5153
    %v5174 = vsub.f32 %v5126, %v5156
    %v5175 = vsub.f32 %v5129, %v5159
    %v5176 = vsub.f32 %v5134, %v5162
    %v5177 = vsub.f32 %v5137, %v5165
    %v5178 = vsub.f32 %v5142, %v5168
    %v5179 = vsub.f32 %v5145, %v5171
    %v5180 = vmul.f32 %v5172, 1.442695
    %v5181 = vpow.pop %v5180
    %v5182 = vmul.f32 %v5173, 1.442695
    %v5183 = vpow.pop %v5182
    %v5184 = vmul.f32 %v5174, 1.442695
    %v5185 = vpow.pop %v5184
    %v5186 = vmul.f32 %v5175, 1.442695
    %v5187 = vpow.pop %v5186
    %v5188 = vmul.f32 %v5176, 1.442695
    %v5189 = vpow.pop %v5188
    %v5190 = vmul.f32 %v5177, 1.442695
    %v5191 = vpow.pop %v5190
    %v5192 = vmul.f32 %v5178, 1.442695
    %v5193 = vpow.pop %v5192
    %v5194 = vmul.f32 %v5179, 1.442695
    %v5195 = vpow.pop %v5194
    %v5196 = vsel %vm392, %v5181, 0.0
    %5197 = vadd.xlane.f32.xlu0 %v5196
    %v5198 = vpop.xlane.xlu0 %5197
    %v5199 = vsel %vm392, %v5183, 0.0
    %5200 = vadd.xlane.f32.xlu0 %v5199
    %v5201 = vpop.xlane.xlu0 %5200
    %v5202 = vsel %vm392, %v5185, 0.0
    %5203 = vadd.xlane.f32.xlu0 %v5202
    %v5204 = vpop.xlane.xlu0 %5203
    %v5205 = vsel %vm392, %v5187, 0.0
    %5206 = vadd.xlane.f32.xlu0 %v5205
    %v5207 = vpop.xlane.xlu0 %5206
    %v5208 = vsel %vm392, %v5189, 0.0
    %5209 = vadd.xlane.f32.xlu0 %v5208
    %v5210 = vpop.xlane.xlu0 %5209
    %v5211 = vsel %vm392, %v5191, 0.0
    %5212 = vadd.xlane.f32.xlu0 %v5211
    %v5213 = vpop.xlane.xlu0 %5212
    %v5214 = vsel %vm392, %v5193, 0.0
    %5215 = vadd.xlane.f32.xlu0 %v5214
    %v5216 = vpop.xlane.xlu0 %5215
    %v5217 = vsel %vm392, %v5195, 0.0
    %5218 = vadd.xlane.f32.xlu0 %v5217
    %v5219 = vpop.xlane.xlu0 %5218
    %v5220 = vrcp.pop %v5198
    %v5221 = vrcp.pop %v5201
    %v5222 = vrcp.pop %v5204
    %v5223 = vrcp.pop %v5207
    %v5224 = vrcp.pop %v5210
    %v5225 = vrcp.pop %v5213
    %v5226 = vrcp.pop %v5216
    %v5227 = vrcp.pop %v5219
    %v5228 = vmul.f32 %v5181, %v5220
    %v5229 = vmul.f32 %v5183, %v5221
    %v5230 = vmul.f32 %v5185, %v5222
    %v5231 = vmul.f32 %v5187, %v5223
    %v5232 = vmul.f32 %v5189, %v5224
    %v5233 = vmul.f32 %v5191, %v5225
    %v5234 = vmul.f32 %v5193, %v5226
    %v5235 = vmul.f32 %v5195, %v5227
    %s5236 = scalar_lea.vmem [#allocation10], 960
    %5237 = vst.msk [vmem:[%s5236] sm:$0xff] %vm392, %v5228
    %5238 = vst.msk [vmem:[%s5236 + $0x8] sm:$0xff] %vm392, %v5229
    %5239 = vst.msk [vmem:[%s5236 + $0x10] sm:$0xff] %vm392, %v5230
    %5240 = vst.msk [vmem:[%s5236 + $0x18] sm:$0xff] %vm392, %v5231
    %5241 = vst.msk [vmem:[%s5236 + $0x20] sm:$0xff] %vm392, %v5232
    %5242 = vst.msk [vmem:[%s5236 + $0x28] sm:$0xff] %vm392, %v5233
    %5243 = vst.msk [vmem:[%s5236 + $0x30] sm:$0xff] %vm392, %v5234
    %5244 = vst.msk [vmem:[%s5236 + $0x38] sm:$0xff] %vm392, %v5235
    %v5245 = vpack.c.bf16 %v5229, %v5228
    %v5246 = vpack.c.bf16 %v5231, %v5230
    %v5247 = vpack.c.bf16 %v5233, %v5232
    %v5248 = vpack.c.bf16 %v5235, %v5234
    %5249 = vrot.lane.b32.xlu0 %v286, 36
    %v5250 = vpop.permute.xlu0 %5249
    %5251 = vrot.lane.b32.xlu0 %v287, 36
    %v5252 = vpop.permute.xlu0 %5251
    %5253 = vrot.lane.b32.xlu0 %v288, 36
    %v5254 = vpop.permute.xlu0 %5253
    %5255 = vrot.lane.b32.xlu0 %v289, 36
    %v5256 = vpop.permute.xlu0 %5255
    %v5262 = vsel %vm392, %v5245, 0
    %v5265 = vsel %vm392, %v5246, 0
    %v5268 = vsel %vm392, %v5247, 0
    %v5271 = vsel %vm392, %v5248, 0
    %5273 = vmatprep.subr.bf16.mxu0 0
    %5274 = vmatpush1.bf16.msra.mxu0 %v5250
    %5275 = vmatprep.subr.bf16.mxu0 0
    %5276 = vmatpush1.bf16.msra.mxu0 %v5252
    %5277 = vmatprep.subr.bf16.mxu0 0
    %5278 = vmatpush1.bf16.msra.mxu0 %v5254
    %5279 = vmatprep.subr.bf16.mxu0 0
    %5280 = vmatpush1.bf16.msra.mxu0 %v5256
    %5281 = vmatprep.subr.bf16.mxu0 0
    %5282 = vmatpush1.bf16.msra.mxu0 0
    %5283 = vmatprep.subr.bf16.mxu0 0
    %5284 = vmatpush1.bf16.msra.mxu0 0
    %5285 = vmatprep.subr.bf16.mxu0 0
    %5286 = vmatpush1.bf16.msra.mxu0 0
    %5287 = vmatprep.subr.bf16.mxu0 0
    %5288 = vmatpush1.bf16.msra.mxu0 0
    %5289 = vmatprep.subr.bf16.mxu0 0
    %5290 = vmatpush1.bf16.msra.mxu0 0
    %5291 = vmatprep.subr.bf16.mxu0 0
    %5292 = vmatpush1.bf16.msra.mxu0 0
    %5293 = vmatprep.subr.bf16.mxu0 0
    %5294 = vmatpush1.bf16.msra.mxu0 0
    %5295 = vmatprep.subr.bf16.mxu0 0
    %5296 = vmatpush1.bf16.msra.mxu0 0
    %5297 = vmatprep.subr.bf16.mxu0 0
    %5298 = vmatpush1.bf16.msra.mxu0 0
    %5299 = vmatprep.subr.bf16.mxu0 0
    %5300 = vmatpush1.bf16.msra.mxu0 0
    %5301 = vmatprep.subr.bf16.mxu0 0
    %5302 = vmatpush1.bf16.msra.mxu0 0
    %5303 = vmatprep.subr.bf16.mxu0 0
    %5304 = vmatpush1.bf16.msra.mxu0 0
    %5305 = vmatprep.mubr.bf16.mxu0 0
    %5306 = vmatmul.mubr.bf16.gmra.mrb[0].mxu0 %v5262
    %v5307 = vpop.f32.mrb[0].mxu0
    %v5308 = vadd.f32 0.0, %v5307
    %v5309 = vpop.f32.mrb[0].mxu0
    %v5310 = vpop.f32.mrb[0].mxu0
    %v5311 = vadd.f32 0.0, %v5310
    %v5312 = vpop.f32.mrb[0].mxu0
    %5313 = vmatprep.mubr.bf16.mxu0 0
    %5314 = vmatmul.mubr.bf16.gmra.mrb[0].mxu0 %v5265
    %v5315 = vpop.f32.mrb[0].mxu0
    %v5316 = vadd.f32 0.0, %v5315
    %v5317 = vpop.f32.mrb[0].mxu0
    %v5318 = vpop.f32.mrb[0].mxu0
    %v5319 = vadd.f32 0.0, %v5318
    %v5320 = vpop.f32.mrb[0].mxu0
    %5321 = vmatprep.mubr.bf16.mxu0 0
    %5322 = vmatmul.mubr.bf16.gmra.mrb[0].mxu0 %v5268
    %v5323 = vpop.f32.mrb[0].mxu0
    %v5324 = vadd.f32 0.0, %v5323
    %v5325 = vpop.f32.mrb[0].mxu0
    %v5326 = vpop.f32.mrb[0].mxu0
    %v5327 = vadd.f32 0.0, %v5326
    %v5328 = vpop.f32.mrb[0].mxu0
    %5329 = vmatprep.mubr.bf16.mxu0 0
    %5330 = vmatmul.mubr.bf16.gmra.mrb[0].mxu0 %v5271
    %v5331 = vpop.f32.mrb[0].mxu0
    %v5332 = vadd.f32 0.0, %v5331
    %v5333 = vpop.f32.mrb[0].mxu0
    %v5334 = vpop.f32.mrb[0].mxu0
    %v5335 = vadd.f32 0.0, %v5334
    %v5336 = vpop.f32.mrb[0].mxu0
    %5337 = vdwg.mxu0
    %v5338 = vpack.c.bf16 %v5311, %v5308
    %v5339 = vpack.c.bf16 %v5319, %v5316
    %v5340 = vpack.c.bf16 %v5327, %v5324
    %v5341 = vpack.c.bf16 %v5335, %v5332
    %5346 = vrot.lane.b32.xlu0 %v5338, 28
    %v5347 = vpop.permute.xlu0 %5346
    %5348 = vrot.lane.b32.xlu0 %v5339, 28
    %v5349 = vpop.permute.xlu0 %5348
    %5350 = vrot.lane.b32.xlu0 %v5340, 28
    %v5351 = vpop.permute.xlu0 %5350
    %5352 = vrot.lane.b32.xlu0 %v5341, 28
    %v5353 = vpop.permute.xlu0 %5352
    %5358 = vst.msk [vmem:[#allocation2 + $0x20] sm:$0xff] %vm2825, %v5347
    %5359 = vst.msk [vmem:[#allocation2 + $0x28] sm:$0xff] %vm2825, %v5349
    %5360 = vst.msk [vmem:[#allocation2 + $0x30] sm:$0xff] %vm2825, %v5351
    %5361 = vst.msk [vmem:[#allocation2 + $0x38] sm:$0xff] %vm2825, %v5353
    %v5362 = vld [vmem:[#allocation2] sm:$0xff]
    %v5363 = vld [vmem:[#allocation2 + $0x8] sm:$0xff]
    %v5364 = vld [vmem:[#allocation2 + $0x10] sm:$0xff]
    %v5365 = vld [vmem:[#allocation2 + $0x18] sm:$0xff]
    %v5366 = vld [vmem:[#allocation2 + $0x20] sm:$0xff]
    %v5367 = vld [vmem:[#allocation2 + $0x28] sm:$0xff]
    %v5368 = vld [vmem:[#allocation2 + $0x30] sm:$0xff]
    %v5369 = vld [vmem:[#allocation2 + $0x38] sm:$0xff]
    %v5370 = vld [vmem:[#allocation8] sm:$0xf]
    %v5371 = vld [vmem:[#allocation8 + $0x4] sm:$0xf]
    %v5372 = vld [vmem:[#allocation8 + $0x8] sm:$0xf]
    %v5373 = vld [vmem:[#allocation8 + $0xc] sm:$0xf]
    %v5374 = vld [vmem:[%s3] sm:$0x1]
    %v5376 = vlaneseq
    %v5377 = vshrl.u32 %v5376, 7
    %v5378 = vsub.s32 0, %v5377
    %v5379 = vrot.slane %v5374, %v5378
    %v5385 = vunpack.c.l.b16 %v5370
    %v5386 = vunpack.c.l.b16 %v5371
    %v5387 = vunpack.c.l.b16 %v5372
    %v5388 = vunpack.c.l.b16 %v5373
    %v5389 = vpack.c.b16 %v5386, %v5385
    %v5390 = vpack.c.b16 %v5388, %v5387
    %v5394 = vsel %vm160, %v5362, 0
    %v5397 = vsel %vm160, %v5363, 0
    %v5400 = vsel %vm160, %v5364, 0
    %v5403 = vsel %vm160, %v5365, 0
    %v5406 = vsel %vm160, %v5366, 0
    %v5409 = vsel %vm160, %v5367, 0
    %v5412 = vsel %vm160, %v5368, 0
    %v5415 = vsel %vm160, %v5369, 0
    %5417 = vmatprep.subr.bf16.mxu0 0
    %5418 = vmatpush1.bf16.msra.mxu0 %v5389
    %5419 = vmatprep.subr.bf16.mxu0 0
    %5420 = vmatpush1.bf16.msra.mxu0 %v5390
    %5421 = vmatprep.subr.bf16.mxu0 0
    %5422 = vmatpush1.bf16.msra.mxu0 0
    %5423 = vmatprep.subr.bf16.mxu0 0
    %5424 = vmatpush1.bf16.msra.mxu0 0
    %5425 = vmatprep.subr.bf16.mxu0 0
    %5426 = vmatpush1.bf16.msra.mxu0 0
    %5427 = vmatprep.subr.bf16.mxu0 0
    %5428 = vmatpush1.bf16.msra.mxu0 0
    %5429 = vmatprep.subr.bf16.mxu0 0
    %5430 = vmatpush1.bf16.msra.mxu0 0
    %5431 = vmatprep.subr.bf16.mxu0 0
    %5432 = vmatpush1.bf16.msra.mxu0 0
    %5433 = vmatprep.subr.bf16.mxu0 0
    %5434 = vmatpush1.bf16.msra.mxu0 0
    %5435 = vmatprep.subr.bf16.mxu0 0
    %5436 = vmatpush1.bf16.msra.mxu0 0
    %5437 = vmatprep.subr.bf16.mxu0 0
    %5438 = vmatpush1.bf16.msra.mxu0 0
    %5439 = vmatprep.subr.bf16.mxu0 0
    %5440 = vmatpush1.bf16.msra.mxu0 0
    %5441 = vmatprep.subr.bf16.mxu0 0
    %5442 = vmatpush1.bf16.msra.mxu0 0
    %5443 = vmatprep.subr.bf16.mxu0 0
    %5444 = vmatpush1.bf16.msra.mxu0 0
    %5445 = vmatprep.subr.bf16.mxu0 0
    %5446 = vmatpush1.bf16.msra.mxu0 0
    %5447 = vmatprep.subr.bf16.mxu0 0
    %5448 = vmatpush1.bf16.msra.mxu0 0
    %5449 = vmatprep.mubr.bf16.mxu0 0
    %5450 = vmatmul.mubr.bf16.gmra.mrb[0].mxu0 %v5394
    %v5451 = vpop.f32.mrb[0].mxu0
    %v5452 = vadd.f32 %v5379, %v5451
    %v5453 = vpop.f32.mrb[0].mxu0
    %v5454 = vpop.f32.mrb[0].mxu0
    %v5455 = vadd.f32 %v5379, %v5454
    %v5456 = vpop.f32.mrb[0].mxu0
    %5457 = vmatprep.mubr.bf16.mxu0 0
    %5458 = vmatmul.mubr.bf16.gmra.mrb[0].mxu0 %v5397
    %v5459 = vpop.f32.mrb[0].mxu0
    %v5460 = vadd.f32 %v5379, %v5459
    %v5461 = vpop.f32.mrb[0].mxu0
    %v5462 = vpop.f32.mrb[0].mxu0
    %v5463 = vadd.f32 %v5379, %v5462
    %v5464 = vpop.f32.mrb[0].mxu0
    %5465 = vmatprep.mubr.bf16.mxu0 0
    %5466 = vmatmul.mubr.bf16.gmra.mrb[0].mxu0 %v5400
    %v5467 = vpop.f32.mrb[0].mxu0
    %v5468 = vadd.f32 %v5379, %v5467
    %v5469 = vpop.f32.mrb[0].mxu0
    %v5470 = vpop.f32.mrb[0].mxu0
    %v5471 = vadd.f32 %v5379, %v5470
    %v5472 = vpop.f32.mrb[0].mxu0
    %5473 = vmatprep.mubr.bf16.mxu0 0
    %5474 = vmatmul.mubr.bf16.gmra.mrb[0].mxu0 %v5403
    %v5475 = vpop.f32.mrb[0].mxu0
    %v5476 = vadd.f32 %v5379, %v5475
    %v5477 = vpop.f32.mrb[0].mxu0
    %v5478 = vpop.f32.mrb[0].mxu0
    %v5479 = vadd.f32 %v5379, %v5478
    %v5480 = vpop.f32.mrb[0].mxu0
    %5481 = vmatprep.mubr.bf16.mxu0 0
    %5482 = vmatmul.mubr.bf16.gmra.mrb[0].mxu0 %v5406
    %v5483 = vpop.f32.mrb[0].mxu0
    %v5484 = vadd.f32 %v5379, %v5483
    %v5485 = vpop.f32.mrb[0].mxu0
    %v5486 = vpop.f32.mrb[0].mxu0
    %v5487 = vadd.f32 %v5379, %v5486
    %v5488 = vpop.f32.mrb[0].mxu0
    %5489 = vmatprep.mubr.bf16.mxu0 0
    %5490 = vmatmul.mubr.bf16.gmra.mrb[0].mxu0 %v5409
    %v5491 = vpop.f32.mrb[0].mxu0
    %v5492 = vadd.f32 %v5379, %v5491
    %v5493 = vpop.f32.mrb[0].mxu0
    %v5494 = vpop.f32.mrb[0].mxu0
    %v5495 = vadd.f32 %v5379, %v5494
    %v5496 = vpop.f32.mrb[0].mxu0
    %5497 = vmatprep.mubr.bf16.mxu0 0
    %5498 = vmatmul.mubr.bf16.gmra.mrb[0].mxu0 %v5412
    %v5499 = vpop.f32.mrb[0].mxu0
    %v5500 = vadd.f32 %v5379, %v5499
    %v5501 = vpop.f32.mrb[0].mxu0
    %v5502 = vpop.f32.mrb[0].mxu0
    %v5503 = vadd.f32 %v5379, %v5502
    %v5504 = vpop.f32.mrb[0].mxu0
    %5505 = vmatprep.mubr.bf16.mxu0 0
    %5506 = vmatmul.mubr.bf16.gmra.mrb[0].mxu0 %v5415
    %v5507 = vpop.f32.mrb[0].mxu0
    %v5508 = vadd.f32 %v5379, %v5507
    %v5509 = vpop.f32.mrb[0].mxu0
    %v5510 = vpop.f32.mrb[0].mxu0
    %v5511 = vadd.f32 %v5379, %v5510
    %v5512 = vpop.f32.mrb[0].mxu0
    %5513 = vdwg.mxu0
    %5514 = vxpose.xlu0.b32.start [1/16] %v5452, 128
    %5515 = vxpose.xlu0.b32.cont [2/16] %v5455, 128
    %5516 = vxpose.xlu0.b32.cont [3/16] %v5460, 128
    %5517 = vxpose.xlu0.b32.cont [4/16] %v5463, 128
    %5518 = vxpose.xlu0.b32.cont [5/16] %v5468, 128
    %5519 = vxpose.xlu0.b32.cont [6/16] %v5471, 128
    %5520 = vxpose.xlu0.b32.cont [7/16] %v5476, 128
    %5521 = vxpose.xlu0.b32.cont [8/16] %v5479, 128
    %5522 = vxpose.xlu0.b32.cont [9/16] 0.0, 128
    %5523 = vxpose.xlu0.b32.cont [10/16] 0.0, 128
    %5524 = vxpose.xlu0.b32.cont [11/16] 0.0, 128
    %5525 = vxpose.xlu0.b32.cont [12/16] 0.0, 128
    %5526 = vxpose.xlu0.b32.cont [13/16] 0.0, 128
    %5527 = vxpose.xlu0.b32.cont [14/16] 0.0, 128
    %5528 = vxpose.xlu0.b32.cont [15/16] 0.0, 128
    %5529 = vxpose.xlu0.b32.end [16/16] 0.0, 128
    %v5530 = vpop.trf.xlu0
    %v5531 = vpop.trf.xlu0
    %v5532 = vpop.trf.xlu0
    %v5533 = vpop.trf.xlu0
    %v5534 = vpop.trf.xlu0
    %v5535 = vpop.trf.xlu0
    %v5536 = vpop.trf.xlu0
    %v5537 = vpop.trf.xlu0
    %v5538 = vpop.trf.xlu0
    %v5539 = vpop.trf.xlu0
    %v5540 = vpop.trf.xlu0
    %v5541 = vpop.trf.xlu0
    %v5542 = vpop.trf.xlu0
    %v5543 = vpop.trf.xlu0
    %v5544 = vpop.trf.xlu0
    %v5545 = vpop.trf.xlu0
    %5546 = vst.msk [vmem:[#allocation9] sm:$0xff] %vm392, %v5530
    %5547 = vst.msk [vmem:[#allocation9 + $0x8] sm:$0xff] %vm392, %v5531
    %5548 = vst.msk [vmem:[#allocation9 + $0x10] sm:$0xff] %vm392, %v5532
    %5549 = vst.msk [vmem:[#allocation9 + $0x18] sm:$0xff] %vm392, %v5533
    %5550 = vxpose.xlu0.b32.start [1/16] %v5484, 128
    %5551 = vxpose.xlu0.b32.cont [2/16] %v5487, 128
    %5552 = vxpose.xlu0.b32.cont [3/16] %v5492, 128
    %5553 = vxpose.xlu0.b32.cont [4/16] %v5495, 128
    %5554 = vxpose.xlu0.b32.cont [5/16] %v5500, 128
    %5555 = vxpose.xlu0.b32.cont [6/16] %v5503, 128
    %5556 = vxpose.xlu0.b32.cont [7/16] %v5508, 128
    %5557 = vxpose.xlu0.b32.cont [8/16] %v5511, 128
    %5558 = vxpose.xlu0.b32.cont [9/16] 0.0, 128
    %5559 = vxpose.xlu0.b32.cont [10/16] 0.0, 128
    %5560 = vxpose.xlu0.b32.cont [11/16] 0.0, 128
    %5561 = vxpose.xlu0.b32.cont [12/16] 0.0, 128
    %5562 = vxpose.xlu0.b32.cont [13/16] 0.0, 128
    %5563 = vxpose.xlu0.b32.cont [14/16] 0.0, 128
    %5564 = vxpose.xlu0.b32.cont [15/16] 0.0, 128
    %5565 = vxpose.xlu0.b32.end [16/16] 0.0, 128
    %v5566 = vpop.trf.xlu0
    %v5567 = vpop.trf.xlu0
    %v5568 = vpop.trf.xlu0
    %v5569 = vpop.trf.xlu0
    %v5570 = vpop.trf.xlu0
    %v5571 = vpop.trf.xlu0
    %v5572 = vpop.trf.xlu0
    %v5573 = vpop.trf.xlu0
    %v5574 = vpop.trf.xlu0
    %v5575 = vpop.trf.xlu0
    %v5576 = vpop.trf.xlu0
    %v5577 = vpop.trf.xlu0
    %v5578 = vpop.trf.xlu0
    %v5579 = vpop.trf.xlu0
    %v5580 = vpop.trf.xlu0
    %v5581 = vpop.trf.xlu0
    %s5582 = scalar_lea.vmem [#allocation9], 32
    %5583 = vst.msk [vmem:[%s5582] sm:$0xff] %vm392, %v5566
    %5584 = vst.msk [vmem:[%s5582 + $0x8] sm:$0xff] %vm392, %v5567
    %5585 = vst.msk [vmem:[%s5582 + $0x10] sm:$0xff] %vm392, %v5568
    %5586 = vst.msk [vmem:[%s5582 + $0x18] sm:$0xff] %vm392, %v5569
    // Predicated region
    $region30: #{tpu_custom_call.1} parent=1 // pred_check
      _
    $region31: #{tpu_custom_call.1} parent=1 // pred_check_branch
      %5588 = sbr.rel (0) target = $region33
    $region32: #{tpu_custom_call.1} parent=1 // pred_region
      %s5590 = ssub.s32 1024, 1024
      %5591 = vsyncadd [#allocation5], %s5590
      %s5592 = sshll.u32 [#allocation9], 4
      %s5593 = int_to_ptr.vmem [resolvable:$true] %s5592
      %5598 = dma.vmem_to_hbm [thread:$0]  %s5593, 1024, %s4, [#allocation5], 128, 128, 8
    $region33: #{tpu_custom_call.1} parent=1 // pred_fallthru
      _
    // Predicated region
    $region34: #{tpu_custom_call.1} parent=1 // pred_check
      _
    $region35: #{tpu_custom_call.1} parent=1 // pred_check_branch
      %5600 = sbr.rel (0) target = $region37
    $region36: #{tpu_custom_call.1} parent=1 // pred_region
      %s5602 = ssub.s32 16384, 16384
      %5603 = vsyncadd [#allocation11], %s5602
      %s5604 = sshll.u32 [#allocation10], 4
      %s5605 = int_to_ptr.vmem [resolvable:$true] %s5604
      %5610 = dma.vmem_to_hbm [thread:$0]  %s5605, 16384, %s5, [#allocation11], 128, 128, 8
    $region37: #{tpu_custom_call.1} parent=1 // pred_fallthru
      _
    // Predicated region
    $region38: #{tpu_custom_call.1} parent=1 // pred_check
      _
    $region39: #{tpu_custom_call.1} parent=1 // pred_check_branch
      %5612 = sbr.rel (0) target = $region41
    $region40: #{tpu_custom_call.1} parent=1 // pred_region
      %5613 = dma.done [#allocation5], 1024
    $region41: #{tpu_custom_call.1} parent=1 // pred_fallthru
      _
    // Predicated region
    $region42: #{tpu_custom_call.1} parent=1 // pred_check
      _
    $region43: #{tpu_custom_call.1} parent=1 // pred_check_branch
      %5615 = sbr.rel (0) target = $region45
    $region44: #{tpu_custom_call.1} parent=1 // pred_region
      %5616 = dma.done [#allocation11], 16384
    $region45: #{tpu_custom_call.1} parent=1 // pred_fallthru
      _
    %5617 = vsyncpa [#allocation4], 1
    %5618 = vsyncpa [#allocation7], 1
    %5619 = vsyncpa [#allocation5], 1
    %5620 = vsyncpa [#allocation11], 1

</llo_original>
